<compile_context>
chip_gen: v6e
topology: v6e:2x2x1
jax: 0.10.0
libtpu: 0.0.40
codegen_flags: <defaults>
</compile_context>

<pallas_src>
import functools

import numpy as np
import jax
import jax.numpy as jnp
from jax import lax
from jax.experimental import pallas as pl
from jax.experimental.pallas import tpu as pltpu


_VMEM_LIMIT = 48 * 1024 * 1024   # headroom under v7x's 64 MiB VMEM


def _pick_tile(n, cap):
    """Largest tile <= cap that divides n and is a multiple of 8 (else n)."""
    if n <= cap:
        return n
    for t in range(cap, 7, -1):
        if n % t == 0 and t % 8 == 0:
            return t
    return n


# ---------------------------------------------------------------------------
# Kernels
# ---------------------------------------------------------------------------
def qkv_rotary_kernel(x_ref, w_ref, b_ref, cos_ref, sin_ref,
                      q_ref, k_ref, v_ref, *, num_heads):
    """Fused QKV projection + rotary embedding, one (batch, L-tile) per step.

    x_ref:   (1, tl, E)     f32
    w_ref:   (E, 3E)        bf16  [wq_perm*scale | wk_perm | wv] (pre-transposed)
    b_ref:   (1, 3E)        f32
    cos/sin: (tl, E//2)     f32   per-head pattern tiled across heads
    q/k/v:   (1, H, tl, HD) bf16  head-major outputs
    """
    E = x_ref.shape[-1]
    E2 = E // 2
    HD = E // num_heads
    HD2 = HD // 2

    x = x_ref[0].astype(jnp.bfloat16)                          # (tl, E)
    y = jnp.dot(x, w_ref[...],
                preferred_element_type=jnp.float32) + b_ref[...]   # (tl, 3E)

    cos = cos_ref[...]
    sin = sin_ref[...]

    def rotate(t):
        # t columns are laid out [all even pair-components | all odd ones].
        te = t[:, :E2]
        to = t[:, E2:]
        return te * cos - to * sin, te * sin + to * cos

    q = y[:, :E]
    k = y[:, E:2 * E]
    v = y[:, 2 * E:]

    qe, qo = rotate(q)
    ke, ko = rotate(k)

    # Per-head stores (static unroll).  Q/K head layout is [evens | odds],
    # which only needs to be consistent between q and k.
    for h in range(num_heads):
        sl = slice(h * HD2, (h + 1) * HD2)
        q_ref[0, h] = jnp.concatenate([qe[:, sl], qo[:, sl]],
                                      axis=-1).astype(q_ref.dtype)
        k_ref[0, h] = jnp.concatenate([ke[:, sl], ko[:, sl]],
                                      axis=-1).astype(k_ref.dtype)
        v_ref[0, h] = v[:, h * HD:(h + 1) * HD].astype(v_ref.dtype)


def flash_attention_kernel(q_ref, k_ref, v_ref, o_ref, m_scr, l_scr, acc_scr):
    """Online-softmax attention.  Grid (B, H, Lq/tq, Lk/tk); kv axis last."""
    ki = pl.program_id(3)

    @pl.when(ki == 0)
    def _init():
        m_scr[...] = jnp.full(m_scr.shape, -jnp.inf, dtype=m_scr.dtype)
        l_scr[...] = jnp.zeros(l_scr.shape, dtype=l_scr.dtype)
        acc_scr[...] = jnp.zeros(acc_scr.shape, dtype=acc_scr.dtype)

    q = q_ref[0, 0]                                            # (tq, HD) bf16
    k = k_ref[0, 0]                                            # (tk, HD) bf16
    v = v_ref[0, 0]                                            # (tk, HD) bf16

    # 1/sqrt(head_dim) is already folded into the Q projection weights.
    s = lax.dot_general(q, k, (((1,), (1,)), ((), ())),
                        preferred_element_type=jnp.float32)    # (tq, tk)

    m_prev = m_scr[...]
    m_new = jnp.maximum(m_prev, jnp.max(s, axis=-1, keepdims=True))
    alpha = jnp.exp(m_prev - m_new)
    p = jnp.exp(s - m_new)
    l_scr[...] = alpha * l_scr[...] + jnp.sum(p, axis=-1, keepdims=True)
    acc_scr[...] = alpha * acc_scr[...] + jnp.dot(
        p.astype(jnp.bfloat16), v, preferred_element_type=jnp.float32)
    m_scr[...] = m_new

    @pl.when(ki == pl.num_programs(3) - 1)
    def _finalize():
        inv_l = pl.reciprocal(l_scr[...], approx=True)
        o_ref[0, 0] = (acc_scr[...] * inv_l).astype(o_ref.dtype)


def out_proj_kernel(a_ref, w_ref, b_ref, o_ref, *, num_heads):
    """a_ref: (1, H, tl, HD) bf16 ; w_ref: (E, E) bf16 ; b_ref: (1, E) f32."""
    xh = [a_ref[0, h] for h in range(num_heads)]
    x = jnp.concatenate(xh, axis=-1).astype(jnp.bfloat16)      # (tl, E)
    y = jnp.dot(x, w_ref[...],
                preferred_element_type=jnp.float32) + b_ref[...]
    o_ref[0] = y.astype(o_ref.dtype)


# ---------------------------------------------------------------------------
# Module forward (weight prep in plain JAX at trace time, compute in Pallas)
# ---------------------------------------------------------------------------
def rotary_mha_forward(x, cos, sin, params, num_heads):
    """x: (B, L, E) f32; cos/sin: (L, head_dim//2) = real/imag of rotary_freqs."""
    B, L, E = x.shape
    H = num_heads
    HD = E // H
    HD2 = HD // 2
    E2 = E // 2
    scale = 1.0 / float(np.sqrt(HD))

    # ---- trace-time weight preparation (tiny, one-off) --------------------
    # Permutation that de-interleaves rotary pairs of every head:
    #   new col (h*HD2 + i)        <- old col (h*HD + 2i)      (even parts)
    #   new col (E/2 + h*HD2 + i)  <- old col (h*HD + 2i + 1)  (odd parts)
    perm = np.empty((E,), dtype=np.int32)
    for h in range(H):
        for i in range(HD2):
            perm[h * HD2 + i] = h * HD + 2 * i
            perm[E2 + h * HD2 + i] = h * HD + 2 * i + 1

    wq, bq = params["wq"], params["bq"]
    wk, bk = params["wk"], params["bk"]
    wv, bv = params["wv"], params["bv"]
    wo, bo = params["wo"], params["bo"]

    wq_t = wq.T[:, perm] * scale            # fold softmax scale into Q
    bq_p = bq[perm] * scale
    wk_t = wk.T[:, perm]
    bk_p = bk[perm]

    # TODO(synk): for very large E, additionally tile the (E, 3E)/(E, E)
    # weights over the contraction dim with a K grid axis + f32 accumulator.
    w_qkv = jnp.concatenate([wq_t, wk_t, wv.T], axis=1).astype(jnp.bfloat16)
    b_qkv = jnp.concatenate([bq_p, bk_p, bv])[None, :].astype(jnp.float32)

    cos_t = jnp.tile(cos, (1, H)).astype(jnp.float32)          # (L, E/2)
    sin_t = jnp.tile(sin, (1, H)).astype(jnp.float32)

    wo_t = wo.T.astype(jnp.bfloat16)
    bo_r = bo[None, :].astype(jnp.float32)

    # ---- fused QKV projection + rotary ------------------------------------
    tl = _pick_tile(L, 256)
    n_l = L // tl
    qkv_shape = jax.ShapeDtypeStruct((B, H, L, HD), jnp.bfloat16)

    q, k, v = pl.pallas_call(
        functools.partial(qkv_rotary_kernel, num_heads=H),
        out_shape=(qkv_shape, qkv_shape, qkv_shape),
        grid=(B, n_l),
        in_specs=[
            pl.BlockSpec((1, tl, E), lambda b, li: (b, li, 0)),
            pl.BlockSpec((E, 3 * E), lambda b, li: (0, 0)),
            pl.BlockSpec((1, 3 * E), lambda b, li: (0, 0)),
            pl.BlockSpec((tl, E2), lambda b, li: (li, 0)),
            pl.BlockSpec((tl, E2), lambda b, li: (li, 0)),
        ],
        out_specs=(
            pl.BlockSpec((1, H, tl, HD), lambda b, li: (b, 0, li, 0)),
            pl.BlockSpec((1, H, tl, HD), lambda b, li: (b, 0, li, 0)),
            pl.BlockSpec((1, H, tl, HD), lambda b, li: (b, 0, li, 0)),
        ),
        compiler_params=pltpu.CompilerParams(
            dimension_semantics=("parallel", "parallel"),
            vmem_limit_bytes=_VMEM_LIMIT),
    )(x, w_qkv, b_qkv, cos_t, sin_t)

    # ---- flash attention ---------------------------------------------------
    tq = _pick_tile(L, 128)
    tk = _pick_tile(L, 128)
    nq, nk = L // tq, L // tk

    att = pl.pallas_call(
        flash_attention_kernel,
        out_shape=jax.ShapeDtypeStruct((B, H, L, HD), jnp.bfloat16),
        grid=(B, H, nq, nk),
        in_specs=[
            pl.BlockSpec((1, 1, tq, HD), lambda b, h, qi, ki: (b, h, qi, 0)),
            pl.BlockSpec((1, 1, tk, HD), lambda b, h, qi, ki: (b, h, ki, 0)),
            pl.BlockSpec((1, 1, tk, HD), lambda b, h, qi, ki: (b, h, ki, 0)),
        ],
        out_specs=pl.BlockSpec((1, 1, tq, HD),
                               lambda b, h, qi, ki: (b, h, qi, 0)),
        scratch_shapes=[
            pltpu.VMEM((tq, 1), jnp.float32),    # running max
            pltpu.VMEM((tq, 1), jnp.float32),    # running denom
            pltpu.VMEM((tq, HD), jnp.float32),   # running numerator
        ],
        compiler_params=pltpu.CompilerParams(
            dimension_semantics=("parallel", "parallel", "parallel",
                                 "arbitrary"),
            vmem_limit_bytes=_VMEM_LIMIT),
    )(q, k, v)

    # ---- output projection (dropout_projection is identity at inference) --
    out = pl.pallas_call(
        functools.partial(out_proj_kernel, num_heads=H),
        out_shape=jax.ShapeDtypeStruct((B, L, E), jnp.float32),
        grid=(B, n_l),
        in_specs=[
            pl.BlockSpec((1, H, tl, HD), lambda b, li: (b, 0, li, 0)),
            pl.BlockSpec((E, E), lambda b, li: (0, 0)),
            pl.BlockSpec((1, E), lambda b, li: (0, 0)),
        ],
        out_specs=pl.BlockSpec((1, tl, E), lambda b, li: (b, li, 0)),
        compiler_params=pltpu.CompilerParams(
            dimension_semantics=("parallel", "parallel"),
            vmem_limit_bytes=_VMEM_LIMIT),
    )(att, wo_t, bo_r)

    return out


# ---------------------------------------------------------------------------
# Pure-JAX reference (mirrors the PyTorch CPU path of the module)
# ---------------------------------------------------------------------------
def reference_forward(x, cos, sin, params, num_heads):
    B, L, E = x.shape
    head_dim = E // num_heads

    def lin(t, w, b):
        return t @ w.T + b

    q = lin(x, params["wq"], params["bq"]).reshape(B, L, num_heads, head_dim)
    k = lin(x, params["wk"], params["bk"]).reshape(B, L, num_heads, head_dim)
    v = lin(x, params["wv"], params["bv"]).reshape(B, L, num_heads, head_dim)

    def rot(t):
        te, to = t[..., 0::2], t[..., 1::2]
        c = cos[None, :, None, :]
        s = sin[None, :, None, :]
        oe = te * c - to * s
        oo = te * s + to * c
        return jnp.stack([oe, oo], axis=-1).reshape(t.shape)

    q, k = rot(q), rot(k)

    qt = q.transpose(0, 2, 1, 3)
    kt = k.transpose(0, 2, 1, 3)
    vt = v.transpose(0, 2, 1, 3)
    scores = jnp.einsum("bhqd,bhkd->bhqk", qt, kt) / np.sqrt(head_dim)
    p = jax.nn.softmax(scores, axis=-1)
    o = jnp.einsum("bhqk,bhkd->bhqd", p, vt)
    o = o.transpose(0, 2, 1, 3).reshape(B, L, E)
    return lin(o, params["wo"], params["bo"])


# ---------------------------------------------------------------------------
if __name__ == "__main__":
    B, L, E, H = 2, 256, 32, 4       # L=256 exercises multi-tile flash grid
    HD = E // H

    key = jax.random.PRNGKey(0)
    keys = jax.random.split(key, 9)
    x = jax.random.normal(keys[0], (B, L, E), dtype=jnp.float32)

    params = {
        "wq": 0.05 * jax.random.normal(keys[1], (E, E), dtype=jnp.float32),
        "bq": 0.01 * jax.random.normal(keys[2], (E,), dtype=jnp.float32),
        "wk": 0.05 * jax.random.normal(keys[3], (E, E), dtype=jnp.float32),
        "bk": 0.01 * jax.random.normal(keys[4], (E,), dtype=jnp.float32),
        "wv": 0.05 * jax.random.normal(keys[5], (E, E), dtype=jnp.float32),
        "bv": 0.01 * jax.random.normal(keys[6], (E,), dtype=jnp.float32),
        "wo": 0.05 * jax.random.normal(keys[7], (E, E), dtype=jnp.float32),
        "bo": 0.01 * jax.random.normal(keys[8], (E,), dtype=jnp.float32),
    }

    # rotary_freqs: standard RoPE angles as cos/sin of shape (L, HD/2)
    inv_freq = 1.0 / (10000.0 ** (np.arange(0, HD, 2, dtype=np.float32) / HD))
    angles = np.arange(L, dtype=np.float32)[:, None] * inv_freq[None, :]
    cos = jnp.asarray(np.cos(angles))
    sin = jnp.asarray(np.sin(angles))

    out = rotary_mha_forward(x, cos, sin, params, num_heads=H)
    out = jax.block_until_ready(out)

    ref = reference_forward(x, cos, sin, params, num_heads=H)
    np.testing.assert_allclose(np.asarray(out), np.asarray(ref),
                               rtol=2e-2, atol=2e-2)
    print("KERNEL_OK")
</pallas_src>

<mosaic_0001>
module attributes {stable_mosaic.version = 11 : i64} {
  func.func @qkv_rotary_kernel(%arg0: i32, %arg1: i32, %arg2: memref<1x256x32xf32, #tpu.memory_space<vmem>>, %arg3: memref<32x96xbf16, #tpu.memory_space<vmem>>, %arg4: memref<1x96xf32, #tpu.memory_space<vmem>>, %arg5: memref<256x16xf32, #tpu.memory_space<vmem>>, %arg6: memref<256x16xf32, #tpu.memory_space<vmem>>, %arg7: memref<1x4x256x8xbf16, #tpu.memory_space<vmem>>, %arg8: memref<1x4x256x8xbf16, #tpu.memory_space<vmem>>, %arg9: memref<1x4x256x8xbf16, #tpu.memory_space<vmem>>) attributes {dimension_semantics = [#tpu.dimension_semantics<parallel>, #tpu.dimension_semantics<parallel>], iteration_bounds = array<i64: 2, 1>, scalar_prefetch = 0 : i64, scratch_operands = 0 : i64, tpu.core_type = #tpu.core_type<tc>, window_params = [{transform_indices = @transform_0, window_bounds = array<i64: 1, 256, 32>}, {pipeline_mode = #tpu.pipeline_mode<synchronous>, transform_indices = @transform_1, window_bounds = array<i64: 32, 96>}, {pipeline_mode = #tpu.pipeline_mode<synchronous>, transform_indices = @transform_2, window_bounds = array<i64: 1, 96>}, {transform_indices = @transform_3, window_bounds = array<i64: 256, 16>}, {transform_indices = @transform_4, window_bounds = array<i64: 256, 16>}, {transform_indices = @transform_5, window_bounds = array<i64: 1, 4, 256, 8>}, {transform_indices = @transform_6, window_bounds = array<i64: 1, 4, 256, 8>}, {transform_indices = @transform_7, window_bounds = array<i64: 1, 4, 256, 8>}]} {
    %c0 = arith.constant 0 : index
    %c0_0 = arith.constant 0 : index
    %c0_1 = arith.constant 0 : index
    %0 = vector.load %arg2[%c0, %c0_0, %c0_1] : memref<1x256x32xf32, #tpu.memory_space<vmem>>, vector<1x256x32xf32>
    %1 = vector.shape_cast %0 : vector<1x256x32xf32> to vector<256x32xf32>
    %2 = arith.truncf %1 : vector<256x32xf32> to vector<256x32xbf16>
    %c0_2 = arith.constant 0 : index
    %c0_3 = arith.constant 0 : index
    %3 = vector.load %arg3[%c0_2, %c0_3] : memref<32x96xbf16, #tpu.memory_space<vmem>>, vector<32x96xbf16>
    %cst = arith.constant dense<0.000000e+00> : vector<256x96xf32>
    %4 = tpu.matmul %2, %3, %cst {dimension_numbers = #tpu.dot_dimension_numbers<[1], [0], [0], [1], [0, 0, 1, 1], [], []>} : vector<256x32xbf16>, vector<32x96xbf16>, vector<256x96xf32> -> vector<256x96xf32>
    %c0_4 = arith.constant 0 : index
    %c0_5 = arith.constant 0 : index
    %5 = vector.load %arg4[%c0_4, %c0_5] : memref<1x96xf32, #tpu.memory_space<vmem>>, vector<1x96xf32>
    %6 = vector.broadcast %5 : vector<1x96xf32> to vector<256x96xf32>
    %7 = arith.addf %4, %6 : vector<256x96xf32>
    %c0_6 = arith.constant 0 : index
    %c0_7 = arith.constant 0 : index
    %8 = vector.load %arg5[%c0_6, %c0_7] : memref<256x16xf32, #tpu.memory_space<vmem>>, vector<256x16xf32>
    %c0_8 = arith.constant 0 : index
    %c0_9 = arith.constant 0 : index
    %9 = vector.load %arg6[%c0_8, %c0_9] : memref<256x16xf32, #tpu.memory_space<vmem>>, vector<256x16xf32>
    %10 = vector.extract_strided_slice %7 {offsets = [0, 0], sizes = [256, 32], strides = [1, 1]} : vector<256x96xf32> to vector<256x32xf32>
    %11 = vector.extract_strided_slice %7 {offsets = [0, 32], sizes = [256, 32], strides = [1, 1]} : vector<256x96xf32> to vector<256x32xf32>
    %12 = vector.extract_strided_slice %7 {offsets = [0, 64], sizes = [256, 32], strides = [1, 1]} : vector<256x96xf32> to vector<256x32xf32>
    %13 = vector.extract_strided_slice %10 {offsets = [0, 0], sizes = [256, 16], strides = [1, 1]} : vector<256x32xf32> to vector<256x16xf32>
    %14 = vector.extract_strided_slice %10 {offsets = [0, 16], sizes = [256, 16], strides = [1, 1]} : vector<256x32xf32> to vector<256x16xf32>
    %15 = arith.mulf %13, %8 : vector<256x16xf32>
    %16 = arith.mulf %14, %9 : vector<256x16xf32>
    %17 = arith.subf %15, %16 : vector<256x16xf32>
    %18 = arith.mulf %13, %9 : vector<256x16xf32>
    %19 = arith.mulf %14, %8 : vector<256x16xf32>
    %20 = arith.addf %18, %19 : vector<256x16xf32>
    %21 = vector.extract_strided_slice %11 {offsets = [0, 0], sizes = [256, 16], strides = [1, 1]} : vector<256x32xf32> to vector<256x16xf32>
    %22 = vector.extract_strided_slice %11 {offsets = [0, 16], sizes = [256, 16], strides = [1, 1]} : vector<256x32xf32> to vector<256x16xf32>
    %23 = arith.mulf %21, %8 : vector<256x16xf32>
    %24 = arith.mulf %22, %9 : vector<256x16xf32>
    %25 = arith.subf %23, %24 : vector<256x16xf32>
    %26 = arith.mulf %21, %9 : vector<256x16xf32>
    %27 = arith.mulf %22, %8 : vector<256x16xf32>
    %28 = arith.addf %26, %27 : vector<256x16xf32>
    %29 = vector.extract_strided_slice %17 {offsets = [0, 0], sizes = [256, 4], strides = [1, 1]} : vector<256x16xf32> to vector<256x4xf32>
    %30 = vector.extract_strided_slice %20 {offsets = [0, 0], sizes = [256, 4], strides = [1, 1]} : vector<256x16xf32> to vector<256x4xf32>
    %31 = tpu.concatenate %29, %30 in 1 : vector<256x4xf32>, vector<256x4xf32> -> vector<256x8xf32>
    %32 = arith.truncf %31 : vector<256x8xf32> to vector<256x8xbf16>
    %c0_10 = arith.constant 0 : index
    %c0_11 = arith.constant 0 : index
    %c0_12 = arith.constant 0 : index
    %c0_13 = arith.constant 0 : index
    %33 = vector.load %arg7[%c0_10, %c0_11, %c0_12, %c0_13] : memref<1x4x256x8xbf16, #tpu.memory_space<vmem>>, vector<1x1x256x8xbf16>
    %34 = vector.shape_cast %33 : vector<1x1x256x8xbf16> to vector<256x8xbf16>
    %35 = vector.shape_cast %32 : vector<256x8xbf16> to vector<1x1x256x8xbf16>
    tpu.vector_store %arg7[%c0_10, %c0_11, %c0_12, %c0_13], %35 {strides = array<i32>} : memref<1x4x256x8xbf16, #tpu.memory_space<vmem>>, vector<1x1x256x8xbf16>,
    %36 = vector.extract_strided_slice %25 {offsets = [0, 0], sizes = [256, 4], strides = [1, 1]} : vector<256x16xf32> to vector<256x4xf32>
    %37 = vector.extract_strided_slice %28 {offsets = [0, 0], sizes = [256, 4], strides = [1, 1]} : vector<256x16xf32> to vector<256x4xf32>
    %38 = tpu.concatenate %36, %37 in 1 : vector<256x4xf32>, vector<256x4xf32> -> vector<256x8xf32>
    %39 = arith.truncf %38 : vector<256x8xf32> to vector<256x8xbf16>
    %c0_14 = arith.constant 0 : index
    %c0_15 = arith.constant 0 : index
    %c0_16 = arith.constant 0 : index
    %c0_17 = arith.constant 0 : index
    %40 = vector.load %arg8[%c0_14, %c0_15, %c0_16, %c0_17] : memref<1x4x256x8xbf16, #tpu.memory_space<vmem>>, vector<1x1x256x8xbf16>
    %41 = vector.shape_cast %40 : vector<1x1x256x8xbf16> to vector<256x8xbf16>
    %42 = vector.shape_cast %39 : vector<256x8xbf16> to vector<1x1x256x8xbf16>
    tpu.vector_store %arg8[%c0_14, %c0_15, %c0_16, %c0_17], %42 {strides = array<i32>} : memref<1x4x256x8xbf16, #tpu.memory_space<vmem>>, vector<1x1x256x8xbf16>,
    %43 = vector.extract_strided_slice %12 {offsets = [0, 0], sizes = [256, 8], strides = [1, 1]} : vector<256x32xf32> to vector<256x8xf32>
    %44 = arith.truncf %43 : vector<256x8xf32> to vector<256x8xbf16>
    %c0_18 = arith.constant 0 : index
    %c0_19 = arith.constant 0 : index
    %c0_20 = arith.constant 0 : index
    %c0_21 = arith.constant 0 : index
    %45 = vector.load %arg9[%c0_18, %c0_19, %c0_20, %c0_21] : memref<1x4x256x8xbf16, #tpu.memory_space<vmem>>, vector<1x1x256x8xbf16>
    %46 = vector.shape_cast %45 : vector<1x1x256x8xbf16> to vector<256x8xbf16>
    %47 = vector.shape_cast %44 : vector<256x8xbf16> to vector<1x1x256x8xbf16>
    tpu.vector_store %arg9[%c0_18, %c0_19, %c0_20, %c0_21], %47 {strides = array<i32>} : memref<1x4x256x8xbf16, #tpu.memory_space<vmem>>, vector<1x1x256x8xbf16>,
    %48 = vector.extract_strided_slice %17 {offsets = [0, 4], sizes = [256, 4], strides = [1, 1]} : vector<256x16xf32> to vector<256x4xf32>
    %49 = vector.extract_strided_slice %20 {offsets = [0, 4], sizes = [256, 4], strides = [1, 1]} : vector<256x16xf32> to vector<256x4xf32>
    %50 = tpu.concatenate %48, %49 in 1 : vector<256x4xf32>, vector<256x4xf32> -> vector<256x8xf32>
    %51 = arith.truncf %50 : vector<256x8xf32> to vector<256x8xbf16>
    %c0_22 = arith.constant 0 : index
    %c1 = arith.constant 1 : index
    %c0_23 = arith.constant 0 : index
    %c0_24 = arith.constant 0 : index
    %52 = vector.load %arg7[%c0_22, %c1, %c0_23, %c0_24] : memref<1x4x256x8xbf16, #tpu.memory_space<vmem>>, vector<1x1x256x8xbf16>
    %53 = vector.shape_cast %52 : vector<1x1x256x8xbf16> to vector<256x8xbf16>
    %54 = vector.shape_cast %51 : vector<256x8xbf16> to vector<1x1x256x8xbf16>
    tpu.vector_store %arg7[%c0_22, %c1, %c0_23, %c0_24], %54 {strides = array<i32>} : memref<1x4x256x8xbf16, #tpu.memory_space<vmem>>, vector<1x1x256x8xbf16>,
    %55 = vector.extract_strided_slice %25 {offsets = [0, 4], sizes = [256, 4], strides = [1, 1]} : vector<256x16xf32> to vector<256x4xf32>
    %56 = vector.extract_strided_slice %28 {offsets = [0, 4], sizes = [256, 4], strides = [1, 1]} : vector<256x16xf32> to vector<256x4xf32>
    %57 = tpu.concatenate %55, %56 in 1 : vector<256x4xf32>, vector<256x4xf32> -> vector<256x8xf32>
    %58 = arith.truncf %57 : vector<256x8xf32> to vector<256x8xbf16>
    %c0_25 = arith.constant 0 : index
    %c1_26 = arith.constant 1 : index
    %c0_27 = arith.constant 0 : index
    %c0_28 = arith.constant 0 : index
    %59 = vector.load %arg8[%c0_25, %c1_26, %c0_27, %c0_28] : memref<1x4x256x8xbf16, #tpu.memory_space<vmem>>, vector<1x1x256x8xbf16>
    %60 = vector.shape_cast %59 : vector<1x1x256x8xbf16> to vector<256x8xbf16>
    %61 = vector.shape_cast %58 : vector<256x8xbf16> to vector<1x1x256x8xbf16>
    tpu.vector_store %arg8[%c0_25, %c1_26, %c0_27, %c0_28], %61 {strides = array<i32>} : memref<1x4x256x8xbf16, #tpu.memory_space<vmem>>, vector<1x1x256x8xbf16>,
    %62 = vector.extract_strided_slice %12 {offsets = [0, 8], sizes = [256, 8], strides = [1, 1]} : vector<256x32xf32> to vector<256x8xf32>
    %63 = arith.truncf %62 : vector<256x8xf32> to vector<256x8xbf16>
    %c0_29 = arith.constant 0 : index
    %c1_30 = arith.constant 1 : index
    %c0_31 = arith.constant 0 : index
    %c0_32 = arith.constant 0 : index
    %64 = vector.load %arg9[%c0_29, %c1_30, %c0_31, %c0_32] : memref<1x4x256x8xbf16, #tpu.memory_space<vmem>>, vector<1x1x256x8xbf16>
    %65 = vector.shape_cast %64 : vector<1x1x256x8xbf16> to vector<256x8xbf16>
    %66 = vector.shape_cast %63 : vector<256x8xbf16> to vector<1x1x256x8xbf16>
    tpu.vector_store %arg9[%c0_29, %c1_30, %c0_31, %c0_32], %66 {strides = array<i32>} : memref<1x4x256x8xbf16, #tpu.memory_space<vmem>>, vector<1x1x256x8xbf16>,
    %67 = vector.extract_strided_slice %17 {offsets = [0, 8], sizes = [256, 4], strides = [1, 1]} : vector<256x16xf32> to vector<256x4xf32>
    %68 = vector.extract_strided_slice %20 {offsets = [0, 8], sizes = [256, 4], strides = [1, 1]} : vector<256x16xf32> to vector<256x4xf32>
    %69 = tpu.concatenate %67, %68 in 1 : vector<256x4xf32>, vector<256x4xf32> -> vector<256x8xf32>
    %70 = arith.truncf %69 : vector<256x8xf32> to vector<256x8xbf16>
    %c0_33 = arith.constant 0 : index
    %c2 = arith.constant 2 : index
    %c0_34 = arith.constant 0 : index
    %c0_35 = arith.constant 0 : index
    %71 = vector.load %arg7[%c0_33, %c2, %c0_34, %c0_35] : memref<1x4x256x8xbf16, #tpu.memory_space<vmem>>, vector<1x1x256x8xbf16>
    %72 = vector.shape_cast %71 : vector<1x1x256x8xbf16> to vector<256x8xbf16>
    %73 = vector.shape_cast %70 : vector<256x8xbf16> to vector<1x1x256x8xbf16>
    tpu.vector_store %arg7[%c0_33, %c2, %c0_34, %c0_35], %73 {strides = array<i32>} : memref<1x4x256x8xbf16, #tpu.memory_space<vmem>>, vector<1x1x256x8xbf16>,
    %74 = vector.extract_strided_slice %25 {offsets = [0, 8], sizes = [256, 4], strides = [1, 1]} : vector<256x16xf32> to vector<256x4xf32>
    %75 = vector.extract_strided_slice %28 {offsets = [0, 8], sizes = [256, 4], strides = [1, 1]} : vector<256x16xf32> to vector<256x4xf32>
    %76 = tpu.concatenate %74, %75 in 1 : vector<256x4xf32>, vector<256x4xf32> -> vector<256x8xf32>
    %77 = arith.truncf %76 : vector<256x8xf32> to vector<256x8xbf16>
    %c0_36 = arith.constant 0 : index
    %c2_37 = arith.constant 2 : index
    %c0_38 = arith.constant 0 : index
    %c0_39 = arith.constant 0 : index
    %78 = vector.load %arg8[%c0_36, %c2_37, %c0_38, %c0_39] : memref<1x4x256x8xbf16, #tpu.memory_space<vmem>>, vector<1x1x256x8xbf16>
    %79 = vector.shape_cast %78 : vector<1x1x256x8xbf16> to vector<256x8xbf16>
    %80 = vector.shape_cast %77 : vector<256x8xbf16> to vector<1x1x256x8xbf16>
    tpu.vector_store %arg8[%c0_36, %c2_37, %c0_38, %c0_39], %80 {strides = array<i32>} : memref<1x4x256x8xbf16, #tpu.memory_space<vmem>>, vector<1x1x256x8xbf16>,
    %81 = vector.extract_strided_slice %12 {offsets = [0, 16], sizes = [256, 8], strides = [1, 1]} : vector<256x32xf32> to vector<256x8xf32>
    %82 = arith.truncf %81 : vector<256x8xf32> to vector<256x8xbf16>
    %c0_40 = arith.constant 0 : index
    %c2_41 = arith.constant 2 : index
    %c0_42 = arith.constant 0 : index
    %c0_43 = arith.constant 0 : index
    %83 = vector.load %arg9[%c0_40, %c2_41, %c0_42, %c0_43] : memref<1x4x256x8xbf16, #tpu.memory_space<vmem>>, vector<1x1x256x8xbf16>
    %84 = vector.shape_cast %83 : vector<1x1x256x8xbf16> to vector<256x8xbf16>
    %85 = vector.shape_cast %82 : vector<256x8xbf16> to vector<1x1x256x8xbf16>
    tpu.vector_store %arg9[%c0_40, %c2_41, %c0_42, %c0_43], %85 {strides = array<i32>} : memref<1x4x256x8xbf16, #tpu.memory_space<vmem>>, vector<1x1x256x8xbf16>,
    %86 = vector.extract_strided_slice %17 {offsets = [0, 12], sizes = [256, 4], strides = [1, 1]} : vector<256x16xf32> to vector<256x4xf32>
    %87 = vector.extract_strided_slice %20 {offsets = [0, 12], sizes = [256, 4], strides = [1, 1]} : vector<256x16xf32> to vector<256x4xf32>
    %88 = tpu.concatenate %86, %87 in 1 : vector<256x4xf32>, vector<256x4xf32> -> vector<256x8xf32>
    %89 = arith.truncf %88 : vector<256x8xf32> to vector<256x8xbf16>
    %c0_44 = arith.constant 0 : index
    %c3 = arith.constant 3 : index
    %c0_45 = arith.constant 0 : index
    %c0_46 = arith.constant 0 : index
    %90 = vector.load %arg7[%c0_44, %c3, %c0_45, %c0_46] : memref<1x4x256x8xbf16, #tpu.memory_space<vmem>>, vector<1x1x256x8xbf16>
    %91 = vector.shape_cast %90 : vector<1x1x256x8xbf16> to vector<256x8xbf16>
    %92 = vector.shape_cast %89 : vector<256x8xbf16> to vector<1x1x256x8xbf16>
    tpu.vector_store %arg7[%c0_44, %c3, %c0_45, %c0_46], %92 {strides = array<i32>} : memref<1x4x256x8xbf16, #tpu.memory_space<vmem>>, vector<1x1x256x8xbf16>,
    %93 = vector.extract_strided_slice %25 {offsets = [0, 12], sizes = [256, 4], strides = [1, 1]} : vector<256x16xf32> to vector<256x4xf32>
    %94 = vector.extract_strided_slice %28 {offsets = [0, 12], sizes = [256, 4], strides = [1, 1]} : vector<256x16xf32> to vector<256x4xf32>
    %95 = tpu.concatenate %93, %94 in 1 : vector<256x4xf32>, vector<256x4xf32> -> vector<256x8xf32>
    %96 = arith.truncf %95 : vector<256x8xf32> to vector<256x8xbf16>
    %c0_47 = arith.constant 0 : index
    %c3_48 = arith.constant 3 : index
    %c0_49 = arith.constant 0 : index
    %c0_50 = arith.constant 0 : index
    %97 = vector.load %arg8[%c0_47, %c3_48, %c0_49, %c0_50] : memref<1x4x256x8xbf16, #tpu.memory_space<vmem>>, vector<1x1x256x8xbf16>
    %98 = vector.shape_cast %97 : vector<1x1x256x8xbf16> to vector<256x8xbf16>
    %99 = vector.shape_cast %96 : vector<256x8xbf16> to vector<1x1x256x8xbf16>
    tpu.vector_store %arg8[%c0_47, %c3_48, %c0_49, %c0_50], %99 {strides = array<i32>} : memref<1x4x256x8xbf16, #tpu.memory_space<vmem>>, vector<1x1x256x8xbf16>,
    %100 = vector.extract_strided_slice %12 {offsets = [0, 24], sizes = [256, 8], strides = [1, 1]} : vector<256x32xf32> to vector<256x8xf32>
    %101 = arith.truncf %100 : vector<256x8xf32> to vector<256x8xbf16>
    %c0_51 = arith.constant 0 : index
    %c3_52 = arith.constant 3 : index
    %c0_53 = arith.constant 0 : index
    %c0_54 = arith.constant 0 : index
    %102 = vector.load %arg9[%c0_51, %c3_52, %c0_53, %c0_54] : memref<1x4x256x8xbf16, #tpu.memory_space<vmem>>, vector<1x1x256x8xbf16>
    %103 = vector.shape_cast %102 : vector<1x1x256x8xbf16> to vector<256x8xbf16>
    %104 = vector.shape_cast %101 : vector<256x8xbf16> to vector<1x1x256x8xbf16>
    tpu.vector_store %arg9[%c0_51, %c3_52, %c0_53, %c0_54], %104 {strides = array<i32>} : memref<1x4x256x8xbf16, #tpu.memory_space<vmem>>, vector<1x1x256x8xbf16>,
    return
  }
  func.func @transform_0(%arg0: i32, %arg1: i32) -> (i32, i32, i32) {
    %c0_i32 = arith.constant 0 : i32
    %c0_i32_0 = arith.constant 0 : i32
    return %arg0, %arg1, %c0_i32 : i32, i32, i32
  }
  func.func @transform_1(%arg0: i32, %arg1: i32) -> (i32, i32) {
    %c0_i32 = arith.constant 0 : i32
    %c0_i32_0 = arith.constant 0 : i32
    %c0_i32_1 = arith.constant 0 : i32
    return %c0_i32, %c0_i32_0 : i32, i32
  }
  func.func @transform_2(%arg0: i32, %arg1: i32) -> (i32, i32) {
    %c0_i32 = arith.constant 0 : i32
    %c0_i32_0 = arith.constant 0 : i32
    %c0_i32_1 = arith.constant 0 : i32
    return %c0_i32, %c0_i32_0 : i32, i32
  }
  func.func @transform_3(%arg0: i32, %arg1: i32) -> (i32, i32) {
    %c0_i32 = arith.constant 0 : i32
    %c0_i32_0 = arith.constant 0 : i32
    return %arg1, %c0_i32 : i32, i32
  }
  func.func @transform_4(%arg0: i32, %arg1: i32) -> (i32, i32) {
    %c0_i32 = arith.constant 0 : i32
    %c0_i32_0 = arith.constant 0 : i32
    return %arg1, %c0_i32 : i32, i32
  }
  func.func @transform_5(%arg0: i32, %arg1: i32) -> (i32, i32, i32, i32) {
    %c0_i32 = arith.constant 0 : i32
    %c0_i32_0 = arith.constant 0 : i32
    %c0_i32_1 = arith.constant 0 : i32
    return %arg0, %c0_i32, %arg1, %c0_i32_0 : i32, i32, i32, i32
  }
  func.func @transform_6(%arg0: i32, %arg1: i32) -> (i32, i32, i32, i32) {
    %c0_i32 = arith.constant 0 : i32
    %c0_i32_0 = arith.constant 0 : i32
    %c0_i32_1 = arith.constant 0 : i32
    return %arg0, %c0_i32, %arg1, %c0_i32_0 : i32, i32, i32, i32
  }
  func.func @transform_7(%arg0: i32, %arg1: i32) -> (i32, i32, i32, i32) {
    %c0_i32 = arith.constant 0 : i32
    %c0_i32_0 = arith.constant 0 : i32
    %c0_i32_1 = arith.constant 0 : i32
    return %arg0, %c0_i32, %arg1, %c0_i32_0 : i32, i32, i32, i32
  }
}

</mosaic_0001>

<llo_original>
// kernel: tpu_custom_call.1
$region0: #{tpu_custom_call.1}
  #allocation0 [shape = 'u32[]', space=smem, size = 0x4, offset = 0x4, fixed_abs, tag = 'smem constant byte address 0x4 - core index']
  #allocation1 [shape = 'u32[144,128]{1,0:T(1,128)}', space=vmem, size = 0x12000, scoped, tag = 'internal scratch']
  %s0 = inlined_call_operand.vmem [shape: f32[2,256,32], index: 0, kind: input, shape index: {}]
  %s1 = inlined_call_operand.vmem [shape: bf16[32,96], index: 1, kind: input, shape index: {}]
  %s2 = inlined_call_operand.vmem [shape: f32[1,96], index: 2, kind: input, shape index: {}]
  %s3 = inlined_call_operand.vmem [shape: f32[256,16], index: 3, kind: input, shape index: {}]
  %s4 = inlined_call_operand.vmem [shape: f32[256,16], index: 4, kind: input, shape index: {}]
  %s5 = inlined_call_operand.vmem [shape: bf16[2,4,256,8], index: 5, kind: output, shape index: {0}]
  %s6 = inlined_call_operand.vmem [shape: bf16[2,4,256,8], index: 6, kind: output, shape index: {1}]
  %s7 = inlined_call_operand.vmem [shape: bf16[2,4,256,8], index: 7, kind: output, shape index: {2}]
  %8 = xla_tuple %s5, %s6, %s7
  %s9 = sld [smem:[#allocation0]]
  $region69: #{tpu_custom_call.1} parent=0
    _
  %s11 = ssub.s32 1, %s9
  %s12 = scalar_select 0, %s11, %s9
  loop: start=0, step=1, limit=4
  $region2: #{tpu_custom_call.1} parent=0 // loop_pre_header
    _
  $region3: #{tpu_custom_call.1} parent=0 // loop_header
    %s14 = sphi 0, %s18
    %p15 = scmp.ge.s32.totalorder %s14, 4
    %s21 = sphi 0, %s33
    %s22 = sphi 0, %s29
    %s23 = sphi 0, %s21
    %s24 = sphi 0, %s22
    %s25 = sphi 0, %s23
    %s26 = sphi 0, %s24
    %s38 = sphi 0, %s40
    %s41 = sphi 0, %s38
    %s42 = sphi 0, %s41
    %s58 = sphi 0, %s42
    %s62 = sphi 0, %s62
    %s64 = sphi 0, %s62
    %s65 = sphi 0, %s64
    %s79 = sphi 0, %s65
    %s83 = sphi 0, %s83
    %s85 = sphi 0, %s83
    %s86 = sphi 0, %s85
    %s100 = sphi 0, %s86
    %s106 = sphi 0, %s108
    %s109 = sphi 0, %s106
    %s110 = sphi 0, %s109
    %s126 = sphi 0, %s110
    %s132 = sphi 0, %s134
    %s135 = sphi 0, %s132
    %s136 = sphi 0, %s135
    %s152 = sphi 0, %s136
    %s160 = sphi 0, %s162
    %s163 = sphi 0, %s160
    %s164 = sphi 0, %s163
    %s180 = sphi 0, %s164
    %s188 = sphi 0, %s190
    %s191 = sphi 0, %s188
    %s192 = sphi 0, %s191
    %s208 = sphi 0, %s192
    %s216 = sphi 0, %s218
    %s219 = sphi 0, %s216
    %s220 = sphi 0, %s219
    %s236 = sphi 0, %s220
  $region4: #{tpu_custom_call.1} parent=0 // loop_header_branch
    %17 = sbr.rel (%p15) target = $region8
  $region5: #{tpu_custom_call.1} parent=0 // loop_body
    %s19 = ssub.s32 %s14, 1
    %s20 = ssub.s32 %s14, 2
    %s27 = sadd.s32 1, %s22
    %p28 = scmp.ge.s32.totalorder %s27, 1
    %s29 = scalar_select %p28, 0, %s27
    %s30 = sadd.s32 1, %s21
    %s31 = scalar_select %p28, %s30, %s21
    %p32 = scmp.ge.s32.totalorder %s31, 2
    %s33 = scalar_select %p32, 0, %s31
    %s34 = ssub.s32 %s21, %s33
    %s35 = ssub.s32 %s22, %s29
    %s36 = sor.u32 %s34, %s35
    %p37 = scmp.eq.s32.totalorder %s36, 0
    %s39 = sadd.s32 %s38, 1
    %s40 = scalar_select %p37, %s38, %s39
    %p43 = pneg %p37
    %p44 = scmp.eq.s32.totalorder %s14, 1
    %p45 = por %p43, %p44
    %p46 = scmp.ne.s32.totalorder %s38, %s41
    %p47 = scmp.eq.s32.totalorder %s14, 0
    %p48 = por %p46, %p47
    %p49 = scmp.ne.s32.totalorder %s38, %s41
    %p50 = scmp.eq.s32.totalorder %s19, 1
    %p51 = por %p49, %p50
    %p52 = scmp.ne.s32.totalorder %s41, %s42
    %p53 = scmp.eq.s32.totalorder %s19, 0
    %p54 = por %p52, %p53
    %p55 = scmp.ne.s32.totalorder %s41, %s42
    %p56 = scmp.eq.s32.totalorder %s20, 1
    %p57 = por %p55, %p56
    %p59 = scmp.ne.s32.totalorder %s42, %s58
    %p60 = scmp.eq.s32.totalorder %s20, 0
    %p61 = por %p59, %p60
    %s63 = sadd.s32 %s62, 1
    %p66 = scmp.eq.s32.totalorder %s14, 1
    %p67 = scmp.ne.s32.totalorder %s62, %s64
    %p68 = scmp.eq.s32.totalorder %s14, 0
    %p69 = por %p67, %p68
    %p70 = scmp.ne.s32.totalorder %s62, %s64
    %p71 = scmp.eq.s32.totalorder %s19, 1
    %p72 = por %p70, %p71
    %p73 = scmp.ne.s32.totalorder %s64, %s65
    %p74 = scmp.eq.s32.totalorder %s19, 0
    %p75 = por %p73, %p74
    %p76 = scmp.ne.s32.totalorder %s64, %s65
    %p77 = scmp.eq.s32.totalorder %s20, 1
    %p78 = por %p76, %p77
    %p80 = scmp.ne.s32.totalorder %s65, %s79
    %p81 = scmp.eq.s32.totalorder %s20, 0
    %p82 = por %p80, %p81
    %s84 = sadd.s32 %s83, 1
    %p87 = scmp.eq.s32.totalorder %s14, 1
    %p88 = scmp.ne.s32.totalorder %s83, %s85
    %p89 = scmp.eq.s32.totalorder %s14, 0
    %p90 = por %p88, %p89
    %p91 = scmp.ne.s32.totalorder %s83, %s85
    %p92 = scmp.eq.s32.totalorder %s19, 1
    %p93 = por %p91, %p92
    %p94 = scmp.ne.s32.totalorder %s85, %s86
    %p95 = scmp.eq.s32.totalorder %s19, 0
    %p96 = por %p94, %p95
    %p97 = scmp.ne.s32.totalorder %s85, %s86
    %p98 = scmp.eq.s32.totalorder %s20, 1
    %p99 = por %p97, %p98
    %p101 = scmp.ne.s32.totalorder %s86, %s100
    %p102 = scmp.eq.s32.totalorder %s20, 0
    %p103 = por %p101, %p102
    %s104 = ssub.s32 %s22, %s29
    %p105 = scmp.eq.s32.totalorder %s104, 0
    %s107 = sadd.s32 %s106, 1
    %s108 = scalar_select %p105, %s106, %s107
    %p111 = pneg %p105
    %p112 = scmp.eq.s32.totalorder %s14, 1
    %p113 = por %p111, %p112
    %p114 = scmp.ne.s32.totalorder %s106, %s109
    %p115 = scmp.eq.s32.totalorder %s14, 0
    %p116 = por %p114, %p115
    %p117 = scmp.ne.s32.totalorder %s106, %s109
    %p118 = scmp.eq.s32.totalorder %s19, 1
    %p119 = por %p117, %p118
    %p120 = scmp.ne.s32.totalorder %s109, %s110
    %p121 = scmp.eq.s32.totalorder %s19, 0
    %p122 = por %p120, %p121
    %p123 = scmp.ne.s32.totalorder %s109, %s110
    %p124 = scmp.eq.s32.totalorder %s20, 1
    %p125 = por %p123, %p124
    %p127 = scmp.ne.s32.totalorder %s110, %s126
    %p128 = scmp.eq.s32.totalorder %s20, 0
    %p129 = por %p127, %p128
    %s130 = ssub.s32 %s22, %s29
    %p131 = scmp.eq.s32.totalorder %s130, 0
    %s133 = sadd.s32 %s132, 1
    %s134 = scalar_select %p131, %s132, %s133
    %p137 = pneg %p131
    %p138 = scmp.eq.s32.totalorder %s14, 1
    %p139 = por %p137, %p138
    %p140 = scmp.ne.s32.totalorder %s132, %s135
    %p141 = scmp.eq.s32.totalorder %s14, 0
    %p142 = por %p140, %p141
    %p143 = scmp.ne.s32.totalorder %s132, %s135
    %p144 = scmp.eq.s32.totalorder %s19, 1
    %p145 = por %p143, %p144
    %p146 = scmp.ne.s32.totalorder %s135, %s136
    %p147 = scmp.eq.s32.totalorder %s19, 0
    %p148 = por %p146, %p147
    %p149 = scmp.ne.s32.totalorder %s135, %s136
    %p150 = scmp.eq.s32.totalorder %s20, 1
    %p151 = por %p149, %p150
    %p153 = scmp.ne.s32.totalorder %s136, %s152
    %p154 = scmp.eq.s32.totalorder %s20, 0
    %p155 = por %p153, %p154
    %s156 = ssub.s32 %s21, %s33
    %s157 = ssub.s32 %s22, %s29
    %s158 = sor.u32 %s156, %s157
    %p159 = scmp.eq.s32.totalorder %s158, 0
    %s161 = sadd.s32 %s160, 1
    %s162 = scalar_select %p159, %s160, %s161
    %p165 = pneg %p159
    %p166 = scmp.eq.s32.totalorder %s14, 1
    %p167 = por %p165, %p166
    %p168 = scmp.ne.s32.totalorder %s160, %s163
    %p169 = scmp.eq.s32.totalorder %s14, 0
    %p170 = por %p168, %p169
    %p171 = scmp.ne.s32.totalorder %s160, %s163
    %p172 = scmp.eq.s32.totalorder %s19, 1
    %p173 = por %p171, %p172
    %p174 = scmp.ne.s32.totalorder %s163, %s164
    %p175 = scmp.eq.s32.totalorder %s19, 0
    %p176 = por %p174, %p175
    %p177 = scmp.ne.s32.totalorder %s163, %s164
    %p178 = scmp.eq.s32.totalorder %s20, 1
    %p179 = por %p177, %p178
    %p181 = scmp.ne.s32.totalorder %s164, %s180
    %p182 = scmp.eq.s32.totalorder %s20, 0
    %p183 = por %p181, %p182
    %s184 = ssub.s32 %s21, %s33
    %s185 = ssub.s32 %s22, %s29
    %s186 = sor.u32 %s184, %s185
    %p187 = scmp.eq.s32.totalorder %s186, 0
    %s189 = sadd.s32 %s188, 1
    %s190 = scalar_select %p187, %s188, %s189
    %p193 = pneg %p187
    %p194 = scmp.eq.s32.totalorder %s14, 1
    %p195 = por %p193, %p194
    %p196 = scmp.ne.s32.totalorder %s188, %s191
    %p197 = scmp.eq.s32.totalorder %s14, 0
    %p198 = por %p196, %p197
    %p199 = scmp.ne.s32.totalorder %s188, %s191
    %p200 = scmp.eq.s32.totalorder %s19, 1
    %p201 = por %p199, %p200
    %p202 = scmp.ne.s32.totalorder %s191, %s192
    %p203 = scmp.eq.s32.totalorder %s19, 0
    %p204 = por %p202, %p203
    %p205 = scmp.ne.s32.totalorder %s191, %s192
    %p206 = scmp.eq.s32.totalorder %s20, 1
    %p207 = por %p205, %p206
    %p209 = scmp.ne.s32.totalorder %s192, %s208
    %p210 = scmp.eq.s32.totalorder %s20, 0
    %p211 = por %p209, %p210
    %s212 = ssub.s32 %s21, %s33
    %s213 = ssub.s32 %s22, %s29
    %s214 = sor.u32 %s212, %s213
    %p215 = scmp.eq.s32.totalorder %s214, 0
    %s217 = sadd.s32 %s216, 1
    %s218 = scalar_select %p215, %s216, %s217
    %p221 = pneg %p215
    %p222 = scmp.eq.s32.totalorder %s14, 1
    %p223 = por %p221, %p222
    %p224 = scmp.ne.s32.totalorder %s216, %s219
    %p225 = scmp.eq.s32.totalorder %s14, 0
    %p226 = por %p224, %p225
    %p227 = scmp.ne.s32.totalorder %s216, %s219
    %p228 = scmp.eq.s32.totalorder %s19, 1
    %p229 = por %p227, %p228
    %p230 = scmp.ne.s32.totalorder %s219, %s220
    %p231 = scmp.eq.s32.totalorder %s19, 0
    %p232 = por %p230, %p231
    %p233 = scmp.ne.s32.totalorder %s219, %s220
    %p234 = scmp.eq.s32.totalorder %s20, 1
    %p235 = por %p233, %p234
    %p237 = scmp.ne.s32.totalorder %s220, %s236
    %p238 = scmp.eq.s32.totalorder %s20, 0
    %p239 = por %p237, %p238
    %p240 = scmp.le.s32.totalorder 1, %s14
    %p241 = scmp.lt.s32.totalorder %s14, 3
    %p242 = pnand %p240, %p241
    %p243 = pneg %p242
    // Predicated region
    $region9: #{tpu_custom_call.1} parent=5 // pred_check
      _
    $region10: #{tpu_custom_call.1} parent=5 // pred_check_branch
      %245 = sbr.rel (%p242) target = $region12
    $region11: #{tpu_custom_call.1} parent=5 // pred_region
      %s246 = ssub.s32 %s14, 1
      // Predicated region
      $region13: #{tpu_custom_call.1} parent=11 // pred_check
        %p247 = pneg %p75
      $region14: #{tpu_custom_call.1} parent=11 // pred_check_branch
        %249 = sbr.rel (%p247) target = $region16
      $region15: #{tpu_custom_call.1} parent=11 // pred_region
        _
      $region16: #{tpu_custom_call.1} parent=11 // pred_fallthru
        _
      // Predicated region
      $region17: #{tpu_custom_call.1} parent=11 // pred_check
        %p250 = pneg %p96
      $region18: #{tpu_custom_call.1} parent=11 // pred_check_branch
        %252 = sbr.rel (%p250) target = $region20
      $region19: #{tpu_custom_call.1} parent=11 // pred_region
        _
      $region20: #{tpu_custom_call.1} parent=11 // pred_fallthru
        _
      // Predicated region
      $region21: #{tpu_custom_call.1} parent=11 // pred_check
        %p253 = pneg %p122
      $region22: #{tpu_custom_call.1} parent=11 // pred_check_branch
        %255 = sbr.rel (%p253) target = $region24
      $region23: #{tpu_custom_call.1} parent=11 // pred_region
        %s256 = smul.u32 32, %s24
        %p257 = scmp.lt.s32.totalorder %s256, 31
        %s258 = scalar_select %p257, %s256, 31
        %s259 = smul.addr %s258, 8
        %s260 = scalar_lea.vmem %s3, %s259
        %s261 = smul.u32 32, %s24
      $region24: #{tpu_custom_call.1} parent=11 // pred_fallthru
        _
      // Predicated region
      $region25: #{tpu_custom_call.1} parent=11 // pred_check
        %p262 = pneg %p148
      $region26: #{tpu_custom_call.1} parent=11 // pred_check_branch
        %264 = sbr.rel (%p262) target = $region28
      $region27: #{tpu_custom_call.1} parent=11 // pred_region
        %s265 = smul.u32 32, %s24
        %p266 = scmp.lt.s32.totalorder %s265, 31
        %s267 = scalar_select %p266, %s265, 31
        %s268 = smul.addr %s267, 8
        %s269 = scalar_lea.vmem %s4, %s268
        %s270 = smul.u32 32, %s24
      $region28: #{tpu_custom_call.1} parent=11 // pred_fallthru
        _
    $region12: #{tpu_custom_call.1} parent=5 // pred_fallthru
      _
    %p271 = scmp.lt.s32.totalorder %s14, 2
    // Predicated region
    $region29: #{tpu_custom_call.1} parent=5 // pred_check
      %p272 = pneg %p271
    $region30: #{tpu_custom_call.1} parent=5 // pred_check_branch
      %274 = sbr.rel (%p272) target = $region32
    $region31: #{tpu_custom_call.1} parent=5 // pred_region
      // Predicated region
      $region33: #{tpu_custom_call.1} parent=31 // pred_check
        %p275 = pneg %p48
      $region34: #{tpu_custom_call.1} parent=31 // pred_check_branch
        %277 = sbr.rel (%p275) target = $region36
      $region35: #{tpu_custom_call.1} parent=31 // pred_region
        %s278 = smul.u32 32, %s22
        %p279 = scmp.lt.s32.totalorder %s21, 1
        %s280 = scalar_select %p279, %s21, 1
        %p281 = scmp.lt.s32.totalorder %s278, 31
        %s282 = scalar_select %p281, %s278, 31
        %s283 = smul.addr %s280, 32
        %s284 = sadd.s32 %s282, %s283
        %s285 = smul.addr %s284, 8
        %s286 = scalar_lea.vmem %s0, %s285
        %s287 = smul.u32 32, %s22
      $region36: #{tpu_custom_call.1} parent=31 // pred_fallthru
        _
    $region32: #{tpu_custom_call.1} parent=5 // pred_fallthru
      _
    %p288 = scmp.le.s32.totalorder 1, %s14
    %p289 = scmp.lt.s32.totalorder %s14, 3
    %p290 = pnand %p288, %p289
    %p291 = pneg %p290
    // Predicated region
    $region37: #{tpu_custom_call.1} parent=5 // pred_check
      _
    $region38: #{tpu_custom_call.1} parent=5 // pred_check_branch
      %293 = sbr.rel (%p290) target = $region40
    $region39: #{tpu_custom_call.1} parent=5 // pred_region
      %s294 = ssub.s32 %s14, 1
      %s295 = smul.u32 32, %s24
      %p296 = scmp.lt.s32.totalorder %s23, 1
      %s297 = scalar_select %p296, %s23, 1
      %p298 = scmp.lt.s32.totalorder %s295, 31
      %s299 = scalar_select %p298, %s295, 31
      %s300 = smul.addr %s297, 32
      %s301 = sadd.s32 %s299, %s300
      %s302 = smul.addr %s301, 8
      %s303 = scalar_lea.vmem %s0, %s302
      %p304 = pneg %p54
      %p305 = pneg %p51
      %p306 = pneg %p75
      %p307 = pneg %p72
      %p308 = pneg %p96
      %p309 = pneg %p93
      %s310 = smul.u32 32, %s24
      %p311 = scmp.lt.s32.totalorder %s310, 31
      %s312 = scalar_select %p311, %s310, 31
      %s313 = smul.addr %s312, 8
      %s314 = scalar_lea.vmem %s3, %s313
      %p315 = pneg %p122
      %p316 = pneg %p119
      %s317 = smul.u32 32, %s24
      %p318 = scmp.lt.s32.totalorder %s317, 31
      %s319 = scalar_select %p318, %s317, 31
      %s320 = smul.addr %s319, 8
      %s321 = scalar_lea.vmem %s4, %s320
      %p322 = pneg %p148
      %p323 = pneg %p145
      %p324 = pneg %p176
      %p325 = pneg %p173
      %s326 = smul.u32 32, %s24
      %p327 = scmp.lt.s32.totalorder %s23, 1
      %s328 = scalar_select %p327, %s23, 1
      %p329 = scmp.lt.s32.totalorder %s326, 31
      %s330 = scalar_select %p329, %s326, 31
      %s331 = smul.addr %s328, 128
      %s332 = sadd.s32 %s330, %s331
      %s333 = smul.addr %s332, 4
      %s334 = scalar_lea.vmem %s5, %s333
      %p335 = pneg %p204
      %p336 = pneg %p201
      %s337 = smul.u32 32, %s24
      %p338 = scmp.lt.s32.totalorder %s23, 1
      %s339 = scalar_select %p338, %s23, 1
      %p340 = scmp.lt.s32.totalorder %s337, 31
      %s341 = scalar_select %p340, %s337, 31
      %s342 = smul.addr %s339, 128
      %s343 = sadd.s32 %s341, %s342
      %s344 = smul.addr %s343, 4
      %s345 = scalar_lea.vmem %s6, %s344
      %p346 = pneg %p232
      %p347 = pneg %p229
      %s348 = smul.u32 32, %s24
      %p349 = scmp.lt.s32.totalorder %s23, 1
      %s350 = scalar_select %p349, %s23, 1
      %p351 = scmp.lt.s32.totalorder %s348, 31
      %s352 = scalar_select %p351, %s348, 31
      %s353 = smul.addr %s350, 128
      %s354 = sadd.s32 %s352, %s353
      %s355 = smul.addr %s354, 4
      %s356 = scalar_lea.vmem %s7, %s355
      %s357 = smul.u32 32, %s24
      %p358 = scmp.lt.s32.totalorder %s23, 1
      %s359 = scalar_select %p358, %s23, 1
      %p360 = scmp.lt.s32.totalorder %s357, 31
      %s361 = scalar_select %p360, %s357, 31
      %s362 = smul.addr %s359, 32
      %s363 = sadd.s32 %s361, %s362
      %s364 = smul.addr %s363, 8
      %s365 = scalar_lea.vmem %s0, %s364
      %s366 = smul.u32 32, %s24
      %s367 = smul.u32 32, %s24
      %p368 = scmp.lt.s32.totalorder %s367, 31
      %s369 = scalar_select %p368, %s367, 31
      %s370 = smul.addr %s369, 8
      %s371 = scalar_lea.vmem %s3, %s370
      %s372 = smul.u32 32, %s24
      %s373 = smul.u32 32, %s24
      %p374 = scmp.lt.s32.totalorder %s373, 31
      %s375 = scalar_select %p374, %s373, 31
      %s376 = smul.addr %s375, 8
      %s377 = scalar_lea.vmem %s4, %s376
      %s378 = smul.u32 32, %s24
      %s379 = smul.u32 32, %s24
      %p380 = scmp.lt.s32.totalorder %s23, 1
      %s381 = scalar_select %p380, %s23, 1
      %p382 = scmp.lt.s32.totalorder %s379, 31
      %s383 = scalar_select %p382, %s379, 31
      %s384 = smul.addr %s381, 128
      %s385 = sadd.s32 %s383, %s384
      %s386 = smul.addr %s385, 4
      %s387 = scalar_lea.vmem %s5, %s386
      %s388 = smul.u32 32, %s24
      %s389 = smul.u32 32, %s24
      %p390 = scmp.lt.s32.totalorder %s23, 1
      %s391 = scalar_select %p390, %s23, 1
      %p392 = scmp.lt.s32.totalorder %s389, 31
      %s393 = scalar_select %p392, %s389, 31
      %s394 = smul.addr %s391, 128
      %s395 = sadd.s32 %s393, %s394
      %s396 = smul.addr %s395, 4
      %s397 = scalar_lea.vmem %s6, %s396
      %s398 = smul.u32 32, %s24
      %s399 = smul.u32 32, %s24
      %p400 = scmp.lt.s32.totalorder %s23, 1
      %s401 = scalar_select %p400, %s23, 1
      %p402 = scmp.lt.s32.totalorder %s399, 31
      %s403 = scalar_select %p402, %s399, 31
      %s404 = smul.addr %s401, 128
      %s405 = sadd.s32 %s403, %s404
      %s406 = smul.addr %s405, 4
      %s407 = scalar_lea.vmem %s7, %s406
      %s408 = smul.u32 32, %s24
      %v410 = vld [vmem:[%s365] sm:$0xff]
      %v411 = vld [vmem:[%s365 + $0x8] sm:$0xff]
      %v412 = vld [vmem:[%s365 + $0x10] sm:$0xff]
      %v413 = vld [vmem:[%s365 + $0x18] sm:$0xff]
      %v414 = vld [vmem:[%s365 + $0x20] sm:$0xff]
      %v415 = vld [vmem:[%s365 + $0x28] sm:$0xff]
      %v416 = vld [vmem:[%s365 + $0x30] sm:$0xff]
      %v417 = vld [vmem:[%s365 + $0x38] sm:$0xff]
      %v418 = vld [vmem:[%s365 + $0x40] sm:$0xff]
      %v419 = vld [vmem:[%s365 + $0x48] sm:$0xff]
      %v420 = vld [vmem:[%s365 + $0x50] sm:$0xff]
      %v421 = vld [vmem:[%s365 + $0x58] sm:$0xff]
      %v422 = vld [vmem:[%s365 + $0x60] sm:$0xff]
      %v423 = vld [vmem:[%s365 + $0x68] sm:$0xff]
      %v424 = vld [vmem:[%s365 + $0x70] sm:$0xff]
      %v425 = vld [vmem:[%s365 + $0x78] sm:$0xff]
      %v426 = vld [vmem:[%s365 + $0x80] sm:$0xff]
      %v427 = vld [vmem:[%s365 + $0x88] sm:$0xff]
      %v428 = vld [vmem:[%s365 + $0x90] sm:$0xff]
      %v429 = vld [vmem:[%s365 + $0x98] sm:$0xff]
      %v430 = vld [vmem:[%s365 + $0xa0] sm:$0xff]
      %v431 = vld [vmem:[%s365 + $0xa8] sm:$0xff]
      %v432 = vld [vmem:[%s365 + $0xb0] sm:$0xff]
      %v433 = vld [vmem:[%s365 + $0xb8] sm:$0xff]
      %v434 = vld [vmem:[%s365 + $0xc0] sm:$0xff]
      %v435 = vld [vmem:[%s365 + $0xc8] sm:$0xff]
      %v436 = vld [vmem:[%s365 + $0xd0] sm:$0xff]
      %v437 = vld [vmem:[%s365 + $0xd8] sm:$0xff]
      %v438 = vld [vmem:[%s365 + $0xe0] sm:$0xff]
      %v439 = vld [vmem:[%s365 + $0xe8] sm:$0xff]
      %v440 = vld [vmem:[%s365 + $0xf0] sm:$0xff]
      %v441 = vld [vmem:[%s365 + $0xf8] sm:$0xff]
      %v442 = vpack.c.bf16 %v411, %v410
      %v443 = vpack.c.bf16 %v413, %v412
      %v444 = vpack.c.bf16 %v415, %v414
      %v445 = vpack.c.bf16 %v417, %v416
      %v446 = vpack.c.bf16 %v419, %v418
      %v447 = vpack.c.bf16 %v421, %v420
      %v448 = vpack.c.bf16 %v423, %v422
      %v449 = vpack.c.bf16 %v425, %v424
      %v450 = vpack.c.bf16 %v427, %v426
      %v451 = vpack.c.bf16 %v429, %v428
      %v452 = vpack.c.bf16 %v431, %v430
      %v453 = vpack.c.bf16 %v433, %v432
      %v454 = vpack.c.bf16 %v435, %v434
      %v455 = vpack.c.bf16 %v437, %v436
      %v456 = vpack.c.bf16 %v439, %v438
      %v457 = vpack.c.bf16 %v441, %v440
      %v458 = vld [vmem:[%s1] sm:$0xf]
      %v459 = vld [vmem:[%s1 + $0x4] sm:$0xf]
      %v460 = vld [vmem:[%s1 + $0x8] sm:$0xf]
      %v461 = vld [vmem:[%s1 + $0xc] sm:$0xf]
      %v462 = vld [vmem:[%s2] sm:$0x1]
      %v464 = vlaneseq
      %v465 = vshrl.u32 %v464, 7
      %v466 = vsub.s32 0, %v465
      %v467 = vrot.slane %v462, %v466
      %v473 = vunpack.c.l.b16 %v458
      %v474 = vunpack.c.l.b16 %v459
      %v475 = vunpack.c.l.b16 %v460
      %v476 = vunpack.c.l.b16 %v461
      %v477 = vpack.c.b16 %v474, %v473
      %v478 = vpack.c.b16 %v476, %v475
      %vm481 = vcmask 261120
      %v483 = vsel %vm481, %v442, 0
      %v486 = vsel %vm481, %v443, 0
      %v489 = vsel %vm481, %v444, 0
      %v492 = vsel %vm481, %v445, 0
      %v495 = vsel %vm481, %v446, 0
      %v498 = vsel %vm481, %v447, 0
      %v501 = vsel %vm481, %v448, 0
      %v504 = vsel %vm481, %v449, 0
      %v507 = vsel %vm481, %v450, 0
      %v510 = vsel %vm481, %v451, 0
      %v513 = vsel %vm481, %v452, 0
      %v516 = vsel %vm481, %v453, 0
      %v519 = vsel %vm481, %v454, 0
      %v522 = vsel %vm481, %v455, 0
      %v525 = vsel %vm481, %v456, 0
      %v528 = vsel %vm481, %v457, 0
      %530 = vmatprep.subr.bf16.mxu0 0
      %531 = vmatpush1.bf16.msra.mxu0 0
      %532 = vmatprep.subr.bf16.mxu0 0
      %533 = vmatpush1.bf16.msra.mxu0 0
      %534 = vmatprep.subr.bf16.mxu0 0
      %535 = vmatpush1.bf16.msra.mxu0 0
      %536 = vmatprep.subr.bf16.mxu0 0
      %537 = vmatpush1.bf16.msra.mxu0 0
      %538 = vmatprep.subr.bf16.mxu0 0
      %539 = vmatpush1.bf16.msra.mxu0 0
      %540 = vmatprep.subr.bf16.mxu0 0
      %541 = vmatpush1.bf16.msra.mxu0 0
      %542 = vmatprep.subr.bf16.mxu0 0
      %543 = vmatpush1.bf16.msra.mxu0 %v478
      %544 = vmatprep.subr.bf16.mxu0 0
      %545 = vmatpush1.bf16.msra.mxu0 %v477
      %546 = vmatprep.subr.bf16.mxu0 0
      %547 = vmatpush2.bf16.msra.mxu0 0
      %548 = vmatprep.subr.bf16.mxu0 0
      %549 = vmatpush2.bf16.msra.mxu0 0
      %550 = vmatprep.subr.bf16.mxu0 0
      %551 = vmatpush2.bf16.msra.mxu0 0
      %552 = vmatprep.subr.bf16.mxu0 0
      %553 = vmatpush2.bf16.msra.mxu0 0
      %554 = vmatprep.subr.bf16.mxu0 0
      %555 = vmatpush2.bf16.msra.mxu0 0
      %556 = vmatprep.subr.bf16.mxu0 0
      %557 = vmatpush2.bf16.msra.mxu0 0
      %558 = vmatprep.subr.bf16.mxu0 0
      %559 = vmatpush2.bf16.msra.mxu0 0
      %560 = vmatprep.subr.bf16.mxu0 0
      %561 = vmatpush2.bf16.msra.mxu0 0
      %562 = vmatprep.mubr.bf16.mxu0 0
      %563 = vmatmul.mubr.bf16.gmra.mxu0 %v483
      %v564 = vpop.f32.mrf.mxu0
      %v565 = vadd.f32 %v467, %v564
      %v566 = vpop.f32.mrf.mxu0
      %v567 = vpop.f32.mrf.mxu0
      %v568 = vadd.f32 %v467, %v567
      %v569 = vpop.f32.mrf.mxu0
      %570 = vmatprep.mubr.bf16.mxu0 0
      %571 = vmatmul.mubr.bf16.gmra.mxu0 %v486
      %v572 = vpop.f32.mrf.mxu0
      %v573 = vadd.f32 %v467, %v572
      %v574 = vpop.f32.mrf.mxu0
      %v575 = vpop.f32.mrf.mxu0
      %v576 = vadd.f32 %v467, %v575
      %v577 = vpop.f32.mrf.mxu0
      %578 = vmatprep.mubr.bf16.mxu0 0
      %579 = vmatmul.mubr.bf16.gmra.mxu0 %v489
      %v580 = vpop.f32.mrf.mxu0
      %v581 = vadd.f32 %v467, %v580
      %v582 = vpop.f32.mrf.mxu0
      %v583 = vpop.f32.mrf.mxu0
      %v584 = vadd.f32 %v467, %v583
      %v585 = vpop.f32.mrf.mxu0
      %586 = vmatprep.mubr.bf16.mxu0 0
      %587 = vmatmul.mubr.bf16.gmra.mxu0 %v492
      %v588 = vpop.f32.mrf.mxu0
      %v589 = vadd.f32 %v467, %v588
      %v590 = vpop.f32.mrf.mxu0
      %v591 = vpop.f32.mrf.mxu0
      %v592 = vadd.f32 %v467, %v591
      %v593 = vpop.f32.mrf.mxu0
      %594 = vmatprep.mubr.bf16.mxu0 0
      %595 = vmatmul.mubr.bf16.gmra.mxu0 %v495
      %v596 = vpop.f32.mrf.mxu0
      %v597 = vadd.f32 %v467, %v596
      %v598 = vpop.f32.mrf.mxu0
      %v599 = vpop.f32.mrf.mxu0
      %v600 = vadd.f32 %v467, %v599
      %v601 = vpop.f32.mrf.mxu0
      %602 = vmatprep.mubr.bf16.mxu0 0
      %603 = vmatmul.mubr.bf16.gmra.mxu0 %v498
      %v604 = vpop.f32.mrf.mxu0
      %v605 = vadd.f32 %v467, %v604
      %v606 = vpop.f32.mrf.mxu0
      %v607 = vpop.f32.mrf.mxu0
      %v608 = vadd.f32 %v467, %v607
      %v609 = vpop.f32.mrf.mxu0
      %610 = vmatprep.mubr.bf16.mxu0 0
      %611 = vmatmul.mubr.bf16.gmra.mxu0 %v501
      %v612 = vpop.f32.mrf.mxu0
      %v613 = vadd.f32 %v467, %v612
      %v614 = vpop.f32.mrf.mxu0
      %v615 = vpop.f32.mrf.mxu0
      %v616 = vadd.f32 %v467, %v615
      %v617 = vpop.f32.mrf.mxu0
      %618 = vmatprep.mubr.bf16.mxu0 0
      %619 = vmatmul.mubr.bf16.gmra.mxu0 %v504
      %v620 = vpop.f32.mrf.mxu0
      %v621 = vadd.f32 %v467, %v620
      %v622 = vpop.f32.mrf.mxu0
      %v623 = vpop.f32.mrf.mxu0
      %v624 = vadd.f32 %v467, %v623
      %v625 = vpop.f32.mrf.mxu0
      %626 = vmatprep.mubr.bf16.mxu0 0
      %627 = vmatmul.mubr.bf16.gmra.mxu0 %v507
      %v628 = vpop.f32.mrf.mxu0
      %v629 = vadd.f32 %v467, %v628
      %v630 = vpop.f32.mrf.mxu0
      %v631 = vpop.f32.mrf.mxu0
      %v632 = vadd.f32 %v467, %v631
      %v633 = vpop.f32.mrf.mxu0
      %634 = vmatprep.mubr.bf16.mxu0 0
      %635 = vmatmul.mubr.bf16.gmra.mxu0 %v510
      %v636 = vpop.f32.mrf.mxu0
      %v637 = vadd.f32 %v467, %v636
      %v638 = vpop.f32.mrf.mxu0
      %v639 = vpop.f32.mrf.mxu0
      %v640 = vadd.f32 %v467, %v639
      %v641 = vpop.f32.mrf.mxu0
      %642 = vmatprep.mubr.bf16.mxu0 0
      %643 = vmatmul.mubr.bf16.gmra.mxu0 %v513
      %v644 = vpop.f32.mrf.mxu0
      %v645 = vadd.f32 %v467, %v644
      %v646 = vpop.f32.mrf.mxu0
      %v647 = vpop.f32.mrf.mxu0
      %v648 = vadd.f32 %v467, %v647
      %v649 = vpop.f32.mrf.mxu0
      %650 = vmatprep.mubr.bf16.mxu0 0
      %651 = vmatmul.mubr.bf16.gmra.mxu0 %v516
      %v652 = vpop.f32.mrf.mxu0
      %v653 = vadd.f32 %v467, %v652
      %v654 = vpop.f32.mrf.mxu0
      %v655 = vpop.f32.mrf.mxu0
      %v656 = vadd.f32 %v467, %v655
      %v657 = vpop.f32.mrf.mxu0
      %658 = vmatprep.mubr.bf16.mxu0 0
      %659 = vmatmul.mubr.bf16.gmra.mxu0 %v519
      %v660 = vpop.f32.mrf.mxu0
      %v661 = vadd.f32 %v467, %v660
      %v662 = vpop.f32.mrf.mxu0
      %v663 = vpop.f32.mrf.mxu0
      %v664 = vadd.f32 %v467, %v663
      %v665 = vpop.f32.mrf.mxu0
      %666 = vmatprep.mubr.bf16.mxu0 0
      %667 = vmatmul.mubr.bf16.gmra.mxu0 %v522
      %v668 = vpop.f32.mrf.mxu0
      %v669 = vadd.f32 %v467, %v668
      %v670 = vpop.f32.mrf.mxu0
      %v671 = vpop.f32.mrf.mxu0
      %v672 = vadd.f32 %v467, %v671
      %v673 = vpop.f32.mrf.mxu0
      %674 = vmatprep.mubr.bf16.mxu0 0
      %675 = vmatmul.mubr.bf16.gmra.mxu0 %v525
      %v676 = vpop.f32.mrf.mxu0
      %v677 = vadd.f32 %v467, %v676
      %v678 = vpop.f32.mrf.mxu0
      %v679 = vpop.f32.mrf.mxu0
      %v680 = vadd.f32 %v467, %v679
      %v681 = vpop.f32.mrf.mxu0
      %682 = vmatprep.mubr.bf16.mxu0 0
      %683 = vmatmul.mubr.bf16.gmra.mxu0 %v528
      %v684 = vpop.f32.mrf.mxu0
      %v685 = vadd.f32 %v467, %v684
      %v686 = vpop.f32.mrf.mxu0
      %v687 = vpop.f32.mrf.mxu0
      %v688 = vadd.f32 %v467, %v687
      %v689 = vpop.f32.mrf.mxu0
      %690 = vdwg.mxu0
      %v691 = vld [vmem:[%s371] sm:$0xff]
      %v692 = vld [vmem:[%s371 + $0x8] sm:$0xff]
      %v693 = vld [vmem:[%s371 + $0x10] sm:$0xff]
      %v694 = vld [vmem:[%s371 + $0x18] sm:$0xff]
      %v695 = vld [vmem:[%s371 + $0x20] sm:$0xff]
      %v696 = vld [vmem:[%s371 + $0x28] sm:$0xff]
      %v697 = vld [vmem:[%s371 + $0x30] sm:$0xff]
      %v698 = vld [vmem:[%s371 + $0x38] sm:$0xff]
      %v699 = vld [vmem:[%s371 + $0x40] sm:$0xff]
      %v700 = vld [vmem:[%s371 + $0x48] sm:$0xff]
      %v701 = vld [vmem:[%s371 + $0x50] sm:$0xff]
      %v702 = vld [vmem:[%s371 + $0x58] sm:$0xff]
      %v703 = vld [vmem:[%s371 + $0x60] sm:$0xff]
      %v704 = vld [vmem:[%s371 + $0x68] sm:$0xff]
      %v705 = vld [vmem:[%s371 + $0x70] sm:$0xff]
      %v706 = vld [vmem:[%s371 + $0x78] sm:$0xff]
      %v707 = vld [vmem:[%s371 + $0x80] sm:$0xff]
      %v708 = vld [vmem:[%s371 + $0x88] sm:$0xff]
      %v709 = vld [vmem:[%s371 + $0x90] sm:$0xff]
      %v710 = vld [vmem:[%s371 + $0x98] sm:$0xff]
      %v711 = vld [vmem:[%s371 + $0xa0] sm:$0xff]
      %v712 = vld [vmem:[%s371 + $0xa8] sm:$0xff]
      %v713 = vld [vmem:[%s371 + $0xb0] sm:$0xff]
      %v714 = vld [vmem:[%s371 + $0xb8] sm:$0xff]
      %v715 = vld [vmem:[%s371 + $0xc0] sm:$0xff]
      %v716 = vld [vmem:[%s371 + $0xc8] sm:$0xff]
      %v717 = vld [vmem:[%s371 + $0xd0] sm:$0xff]
      %v718 = vld [vmem:[%s371 + $0xd8] sm:$0xff]
      %v719 = vld [vmem:[%s371 + $0xe0] sm:$0xff]
      %v720 = vld [vmem:[%s371 + $0xe8] sm:$0xff]
      %v721 = vld [vmem:[%s371 + $0xf0] sm:$0xff]
      %v722 = vld [vmem:[%s371 + $0xf8] sm:$0xff]
      %v723 = vld [vmem:[%s377] sm:$0xff]
      %v724 = vld [vmem:[%s377 + $0x8] sm:$0xff]
      %v725 = vld [vmem:[%s377 + $0x10] sm:$0xff]
      %v726 = vld [vmem:[%s377 + $0x18] sm:$0xff]
      %v727 = vld [vmem:[%s377 + $0x20] sm:$0xff]
      %v728 = vld [vmem:[%s377 + $0x28] sm:$0xff]
      %v729 = vld [vmem:[%s377 + $0x30] sm:$0xff]
      %v730 = vld [vmem:[%s377 + $0x38] sm:$0xff]
      %v731 = vld [vmem:[%s377 + $0x40] sm:$0xff]
      %v732 = vld [vmem:[%s377 + $0x48] sm:$0xff]
      %v733 = vld [vmem:[%s377 + $0x50] sm:$0xff]
      %v734 = vld [vmem:[%s377 + $0x58] sm:$0xff]
      %v735 = vld [vmem:[%s377 + $0x60] sm:$0xff]
      %v736 = vld [vmem:[%s377 + $0x68] sm:$0xff]
      %v737 = vld [vmem:[%s377 + $0x70] sm:$0xff]
      %v738 = vld [vmem:[%s377 + $0x78] sm:$0xff]
      %v739 = vld [vmem:[%s377 + $0x80] sm:$0xff]
      %v740 = vld [vmem:[%s377 + $0x88] sm:$0xff]
      %v741 = vld [vmem:[%s377 + $0x90] sm:$0xff]
      %v742 = vld [vmem:[%s377 + $0x98] sm:$0xff]
      %v743 = vld [vmem:[%s377 + $0xa0] sm:$0xff]
      %v744 = vld [vmem:[%s377 + $0xa8] sm:$0xff]
      %v745 = vld [vmem:[%s377 + $0xb0] sm:$0xff]
      %v746 = vld [vmem:[%s377 + $0xb8] sm:$0xff]
      %v747 = vld [vmem:[%s377 + $0xc0] sm:$0xff]
      %v748 = vld [vmem:[%s377 + $0xc8] sm:$0xff]
      %v749 = vld [vmem:[%s377 + $0xd0] sm:$0xff]
      %v750 = vld [vmem:[%s377 + $0xd8] sm:$0xff]
      %v751 = vld [vmem:[%s377 + $0xe0] sm:$0xff]
      %v752 = vld [vmem:[%s377 + $0xe8] sm:$0xff]
      %v753 = vld [vmem:[%s377 + $0xf0] sm:$0xff]
      %v754 = vld [vmem:[%s377 + $0xf8] sm:$0xff]
      %v755 = vmul.f32 %v565, %v691
      %v756 = vmul.f32 %v568, %v692
      %v757 = vmul.f32 %v573, %v693
      %v758 = vmul.f32 %v576, %v694
      %v759 = vmul.f32 %v581, %v695
      %v760 = vmul.f32 %v584, %v696
      %v761 = vmul.f32 %v589, %v697
      %v762 = vmul.f32 %v592, %v698
      %v763 = vmul.f32 %v597, %v699
      %v764 = vmul.f32 %v600, %v700
      %v765 = vmul.f32 %v605, %v701
      %v766 = vmul.f32 %v608, %v702
      %v767 = vmul.f32 %v613, %v703
      %v768 = vmul.f32 %v616, %v704
      %v769 = vmul.f32 %v621, %v705
      %v770 = vmul.f32 %v624, %v706
      %v771 = vmul.f32 %v629, %v707
      %v772 = vmul.f32 %v632, %v708
      %v773 = vmul.f32 %v637, %v709
      %v774 = vmul.f32 %v640, %v710
      %v775 = vmul.f32 %v645, %v711
      %v776 = vmul.f32 %v648, %v712
      %v777 = vmul.f32 %v653, %v713
      %v778 = vmul.f32 %v656, %v714
      %v779 = vmul.f32 %v661, %v715
      %v780 = vmul.f32 %v664, %v716
      %v781 = vmul.f32 %v669, %v717
      %v782 = vmul.f32 %v672, %v718
      %v783 = vmul.f32 %v677, %v719
      %v784 = vmul.f32 %v680, %v720
      %v785 = vmul.f32 %v685, %v721
      %v786 = vmul.f32 %v688, %v722
      %819 = vrot.lane.b32.xlu0 %v723, 16
      %v820 = vpop.permute.xlu0 %819
      %821 = vrot.lane.b32.xlu0 %v724, 16
      %v822 = vpop.permute.xlu0 %821
      %823 = vrot.lane.b32.xlu0 %v725, 16
      %v824 = vpop.permute.xlu0 %823
      %825 = vrot.lane.b32.xlu0 %v726, 16
      %v826 = vpop.permute.xlu0 %825
      %827 = vrot.lane.b32.xlu0 %v727, 16
      %v828 = vpop.permute.xlu0 %827
      %829 = vrot.lane.b32.xlu0 %v728, 16
      %v830 = vpop.permute.xlu0 %829
      %831 = vrot.lane.b32.xlu0 %v729, 16
      %v832 = vpop.permute.xlu0 %831
      %833 = vrot.lane.b32.xlu0 %v730, 16
      %v834 = vpop.permute.xlu0 %833
      %835 = vrot.lane.b32.xlu0 %v731, 16
      %v836 = vpop.permute.xlu0 %835
      %837 = vrot.lane.b32.xlu0 %v732, 16
      %v838 = vpop.permute.xlu0 %837
      %839 = vrot.lane.b32.xlu0 %v733, 16
      %v840 = vpop.permute.xlu0 %839
      %841 = vrot.lane.b32.xlu0 %v734, 16
      %v842 = vpop.permute.xlu0 %841
      %843 = vrot.lane.b32.xlu0 %v735, 16
      %v844 = vpop.permute.xlu0 %843
      %845 = vrot.lane.b32.xlu0 %v736, 16
      %v846 = vpop.permute.xlu0 %845
      %847 = vrot.lane.b32.xlu0 %v737, 16
      %v848 = vpop.permute.xlu0 %847
      %849 = vrot.lane.b32.xlu0 %v738, 16
      %v850 = vpop.permute.xlu0 %849
      %851 = vrot.lane.b32.xlu0 %v739, 16
      %v852 = vpop.permute.xlu0 %851
      %853 = vrot.lane.b32.xlu0 %v740, 16
      %v854 = vpop.permute.xlu0 %853
      %855 = vrot.lane.b32.xlu0 %v741, 16
      %v856 = vpop.permute.xlu0 %855
      %857 = vrot.lane.b32.xlu0 %v742, 16
      %v858 = vpop.permute.xlu0 %857
      %859 = vrot.lane.b32.xlu0 %v743, 16
      %v860 = vpop.permute.xlu0 %859
      %861 = vrot.lane.b32.xlu0 %v744, 16
      %v862 = vpop.permute.xlu0 %861
      %863 = vrot.lane.b32.xlu0 %v745, 16
      %v864 = vpop.permute.xlu0 %863
      %865 = vrot.lane.b32.xlu0 %v746, 16
      %v866 = vpop.permute.xlu0 %865
      %867 = vrot.lane.b32.xlu0 %v747, 16
      %v868 = vpop.permute.xlu0 %867
      %869 = vrot.lane.b32.xlu0 %v748, 16
      %v870 = vpop.permute.xlu0 %869
      %871 = vrot.lane.b32.xlu0 %v749, 16
      %v872 = vpop.permute.xlu0 %871
      %873 = vrot.lane.b32.xlu0 %v750, 16
      %v874 = vpop.permute.xlu0 %873
      %875 = vrot.lane.b32.xlu0 %v751, 16
      %v876 = vpop.permute.xlu0 %875
      %877 = vrot.lane.b32.xlu0 %v752, 16
      %v878 = vpop.permute.xlu0 %877
      %879 = vrot.lane.b32.xlu0 %v753, 16
      %v880 = vpop.permute.xlu0 %879
      %881 = vrot.lane.b32.xlu0 %v754, 16
      %v882 = vpop.permute.xlu0 %881
      %v915 = vmul.f32 %v565, %v820
      %v916 = vmul.f32 %v568, %v822
      %v917 = vmul.f32 %v573, %v824
      %v918 = vmul.f32 %v576, %v826
      %v919 = vmul.f32 %v581, %v828
      %v920 = vmul.f32 %v584, %v830
      %v921 = vmul.f32 %v589, %v832
      %v922 = vmul.f32 %v592, %v834
      %v923 = vmul.f32 %v597, %v836
      %v924 = vmul.f32 %v600, %v838
      %v925 = vmul.f32 %v605, %v840
      %v926 = vmul.f32 %v608, %v842
      %v927 = vmul.f32 %v613, %v844
      %v928 = vmul.f32 %v616, %v846
      %v929 = vmul.f32 %v621, %v848
      %v930 = vmul.f32 %v624, %v850
      %v931 = vmul.f32 %v629, %v852
      %v932 = vmul.f32 %v632, %v854
      %v933 = vmul.f32 %v637, %v856
      %v934 = vmul.f32 %v640, %v858
      %v935 = vmul.f32 %v645, %v860
      %v936 = vmul.f32 %v648, %v862
      %v937 = vmul.f32 %v653, %v864
      %v938 = vmul.f32 %v656, %v866
      %v939 = vmul.f32 %v661, %v868
      %v940 = vmul.f32 %v664, %v870
      %v941 = vmul.f32 %v669, %v872
      %v942 = vmul.f32 %v672, %v874
      %v943 = vmul.f32 %v677, %v876
      %v944 = vmul.f32 %v680, %v878
      %v945 = vmul.f32 %v685, %v880
      %v946 = vmul.f32 %v688, %v882
      %979 = vrot.lane.b32.xlu0 %v915, 112
      %v980 = vpop.permute.xlu0 %979
      %981 = vrot.lane.b32.xlu0 %v916, 112
      %v982 = vpop.permute.xlu0 %981
      %983 = vrot.lane.b32.xlu0 %v917, 112
      %v984 = vpop.permute.xlu0 %983
      %985 = vrot.lane.b32.xlu0 %v918, 112
      %v986 = vpop.permute.xlu0 %985
      %987 = vrot.lane.b32.xlu0 %v919, 112
      %v988 = vpop.permute.xlu0 %987
      %989 = vrot.lane.b32.xlu0 %v920, 112
      %v990 = vpop.permute.xlu0 %989
      %991 = vrot.lane.b32.xlu0 %v921, 112
      %v992 = vpop.permute.xlu0 %991
      %993 = vrot.lane.b32.xlu0 %v922, 112
      %v994 = vpop.permute.xlu0 %993
      %995 = vrot.lane.b32.xlu0 %v923, 112
      %v996 = vpop.permute.xlu0 %995
      %997 = vrot.lane.b32.xlu0 %v924, 112
      %v998 = vpop.permute.xlu0 %997
      %999 = vrot.lane.b32.xlu0 %v925, 112
      %v1000 = vpop.permute.xlu0 %999
      %1001 = vrot.lane.b32.xlu0 %v926, 112
      %v1002 = vpop.permute.xlu0 %1001
      %1003 = vrot.lane.b32.xlu0 %v927, 112
      %v1004 = vpop.permute.xlu0 %1003
      %1005 = vrot.lane.b32.xlu0 %v928, 112
      %v1006 = vpop.permute.xlu0 %1005
      %1007 = vrot.lane.b32.xlu0 %v929, 112
      %v1008 = vpop.permute.xlu0 %1007
      %1009 = vrot.lane.b32.xlu0 %v930, 112
      %v1010 = vpop.permute.xlu0 %1009
      %1011 = vrot.lane.b32.xlu0 %v931, 112
      %v1012 = vpop.permute.xlu0 %1011
      %1013 = vrot.lane.b32.xlu0 %v932, 112
      %v1014 = vpop.permute.xlu0 %1013
      %1015 = vrot.lane.b32.xlu0 %v933, 112
      %v1016 = vpop.permute.xlu0 %1015
      %1017 = vrot.lane.b32.xlu0 %v934, 112
      %v1018 = vpop.permute.xlu0 %1017
      %1019 = vrot.lane.b32.xlu0 %v935, 112
      %v1020 = vpop.permute.xlu0 %1019
      %1021 = vrot.lane.b32.xlu0 %v936, 112
      %v1022 = vpop.permute.xlu0 %1021
      %1023 = vrot.lane.b32.xlu0 %v937, 112
      %v1024 = vpop.permute.xlu0 %1023
      %1025 = vrot.lane.b32.xlu0 %v938, 112
      %v1026 = vpop.permute.xlu0 %1025
      %1027 = vrot.lane.b32.xlu0 %v939, 112
      %v1028 = vpop.permute.xlu0 %1027
      %1029 = vrot.lane.b32.xlu0 %v940, 112
      %v1030 = vpop.permute.xlu0 %1029
      %1031 = vrot.lane.b32.xlu0 %v941, 112
      %v1032 = vpop.permute.xlu0 %1031
      %1033 = vrot.lane.b32.xlu0 %v942, 112
      %v1034 = vpop.permute.xlu0 %1033
      %1035 = vrot.lane.b32.xlu0 %v943, 112
      %v1036 = vpop.permute.xlu0 %1035
      %1037 = vrot.lane.b32.xlu0 %v944, 112
      %v1038 = vpop.permute.xlu0 %1037
      %1039 = vrot.lane.b32.xlu0 %v945, 112
      %v1040 = vpop.permute.xlu0 %1039
      %1041 = vrot.lane.b32.xlu0 %v946, 112
      %v1042 = vpop.permute.xlu0 %1041
      %v1075 = vsub.f32 %v755, %v980
      %v1076 = vsub.f32 %v756, %v982
      %v1077 = vsub.f32 %v757, %v984
      %v1078 = vsub.f32 %v758, %v986
      %v1079 = vsub.f32 %v759, %v988
      %v1080 = vsub.f32 %v760, %v990
      %v1081 = vsub.f32 %v761, %v992
      %v1082 = vsub.f32 %v762, %v994
      %v1083 = vsub.f32 %v763, %v996
      %v1084 = vsub.f32 %v764, %v998
      %v1085 = vsub.f32 %v765, %v1000
      %v1086 = vsub.f32 %v766, %v1002
      %v1087 = vsub.f32 %v767, %v1004
      %v1088 = vsub.f32 %v768, %v1006
      %v1089 = vsub.f32 %v769, %v1008
      %v1090 = vsub.f32 %v770, %v1010
      %v1091 = vsub.f32 %v771, %v1012
      %v1092 = vsub.f32 %v772, %v1014
      %v1093 = vsub.f32 %v773, %v1016
      %v1094 = vsub.f32 %v774, %v1018
      %v1095 = vsub.f32 %v775, %v1020
      %v1096 = vsub.f32 %v776, %v1022
      %v1097 = vsub.f32 %v777, %v1024
      %v1098 = vsub.f32 %v778, %v1026
      %v1099 = vsub.f32 %v779, %v1028
      %v1100 = vsub.f32 %v780, %v1030
      %v1101 = vsub.f32 %v781, %v1032
      %v1102 = vsub.f32 %v782, %v1034
      %v1103 = vsub.f32 %v783, %v1036
      %v1104 = vsub.f32 %v784, %v1038
      %v1105 = vsub.f32 %v785, %v1040
      %v1106 = vsub.f32 %v786, %v1042
      %v1107 = vmul.f32 %v565, %v723
      %v1108 = vmul.f32 %v568, %v724
      %v1109 = vmul.f32 %v573, %v725
      %v1110 = vmul.f32 %v576, %v726
      %v1111 = vmul.f32 %v581, %v727
      %v1112 = vmul.f32 %v584, %v728
      %v1113 = vmul.f32 %v589, %v729
      %v1114 = vmul.f32 %v592, %v730
      %v1115 = vmul.f32 %v597, %v731
      %v1116 = vmul.f32 %v600, %v732
      %v1117 = vmul.f32 %v605, %v733
      %v1118 = vmul.f32 %v608, %v734
      %v1119 = vmul.f32 %v613, %v735
      %v1120 = vmul.f32 %v616, %v736
      %v1121 = vmul.f32 %v621, %v737
      %v1122 = vmul.f32 %v624, %v738
      %v1123 = vmul.f32 %v629, %v739
      %v1124 = vmul.f32 %v632, %v740
      %v1125 = vmul.f32 %v637, %v741
      %v1126 = vmul.f32 %v640, %v742
      %v1127 = vmul.f32 %v645, %v743
      %v1128 = vmul.f32 %v648, %v744
      %v1129 = vmul.f32 %v653, %v745
      %v1130 = vmul.f32 %v656, %v746
      %v1131 = vmul.f32 %v661, %v747
      %v1132 = vmul.f32 %v664, %v748
      %v1133 = vmul.f32 %v669, %v749
      %v1134 = vmul.f32 %v672, %v750
      %v1135 = vmul.f32 %v677, %v751
      %v1136 = vmul.f32 %v680, %v752
      %v1137 = vmul.f32 %v685, %v753
      %v1138 = vmul.f32 %v688, %v754
      %1171 = vrot.lane.b32.xlu0 %v691, 16
      %v1172 = vpop.permute.xlu0 %1171
      %1173 = vrot.lane.b32.xlu0 %v692, 16
      %v1174 = vpop.permute.xlu0 %1173
      %1175 = vrot.lane.b32.xlu0 %v693, 16
      %v1176 = vpop.permute.xlu0 %1175
      %1177 = vrot.lane.b32.xlu0 %v694, 16
      %v1178 = vpop.permute.xlu0 %1177
      %1179 = vrot.lane.b32.xlu0 %v695, 16
      %v1180 = vpop.permute.xlu0 %1179
      %1181 = vrot.lane.b32.xlu0 %v696, 16
      %v1182 = vpop.permute.xlu0 %1181
      %1183 = vrot.lane.b32.xlu0 %v697, 16
      %v1184 = vpop.permute.xlu0 %1183
      %1185 = vrot.lane.b32.xlu0 %v698, 16
      %v1186 = vpop.permute.xlu0 %1185
      %1187 = vrot.lane.b32.xlu0 %v699, 16
      %v1188 = vpop.permute.xlu0 %1187
      %1189 = vrot.lane.b32.xlu0 %v700, 16
      %v1190 = vpop.permute.xlu0 %1189
      %1191 = vrot.lane.b32.xlu0 %v701, 16
      %v1192 = vpop.permute.xlu0 %1191
      %1193 = vrot.lane.b32.xlu0 %v702, 16
      %v1194 = vpop.permute.xlu0 %1193
      %1195 = vrot.lane.b32.xlu0 %v703, 16
      %v1196 = vpop.permute.xlu0 %1195
      %1197 = vrot.lane.b32.xlu0 %v704, 16
      %v1198 = vpop.permute.xlu0 %1197
      %1199 = vrot.lane.b32.xlu0 %v705, 16
      %v1200 = vpop.permute.xlu0 %1199
      %1201 = vrot.lane.b32.xlu0 %v706, 16
      %v1202 = vpop.permute.xlu0 %1201
      %1203 = vrot.lane.b32.xlu0 %v707, 16
      %v1204 = vpop.permute.xlu0 %1203
      %1205 = vrot.lane.b32.xlu0 %v708, 16
      %v1206 = vpop.permute.xlu0 %1205
      %1207 = vrot.lane.b32.xlu0 %v709, 16
      %v1208 = vpop.permute.xlu0 %1207
      %1209 = vrot.lane.b32.xlu0 %v710, 16
      %v1210 = vpop.permute.xlu0 %1209
      %1211 = vrot.lane.b32.xlu0 %v711, 16
      %v1212 = vpop.permute.xlu0 %1211
      %1213 = vrot.lane.b32.xlu0 %v712, 16
      %v1214 = vpop.permute.xlu0 %1213
      %1215 = vrot.lane.b32.xlu0 %v713, 16
      %v1216 = vpop.permute.xlu0 %1215
      %1217 = vrot.lane.b32.xlu0 %v714, 16
      %v1218 = vpop.permute.xlu0 %1217
      %1219 = vrot.lane.b32.xlu0 %v715, 16
      %v1220 = vpop.permute.xlu0 %1219
      %1221 = vrot.lane.b32.xlu0 %v716, 16
      %v1222 = vpop.permute.xlu0 %1221
      %1223 = vrot.lane.b32.xlu0 %v717, 16
      %v1224 = vpop.permute.xlu0 %1223
      %1225 = vrot.lane.b32.xlu0 %v718, 16
      %v1226 = vpop.permute.xlu0 %1225
      %1227 = vrot.lane.b32.xlu0 %v719, 16
      %v1228 = vpop.permute.xlu0 %1227
      %1229 = vrot.lane.b32.xlu0 %v720, 16
      %v1230 = vpop.permute.xlu0 %1229
      %1231 = vrot.lane.b32.xlu0 %v721, 16
      %v1232 = vpop.permute.xlu0 %1231
      %1233 = vrot.lane.b32.xlu0 %v722, 16
      %v1234 = vpop.permute.xlu0 %1233
      %v1267 = vmul.f32 %v565, %v1172
      %v1268 = vmul.f32 %v568, %v1174
      %v1269 = vmul.f32 %v573, %v1176
      %v1270 = vmul.f32 %v576, %v1178
      %v1271 = vmul.f32 %v581, %v1180
      %v1272 = vmul.f32 %v584, %v1182
      %v1273 = vmul.f32 %v589, %v1184
      %v1274 = vmul.f32 %v592, %v1186
      %v1275 = vmul.f32 %v597, %v1188
      %v1276 = vmul.f32 %v600, %v1190
      %v1277 = vmul.f32 %v605, %v1192
      %v1278 = vmul.f32 %v608, %v1194
      %v1279 = vmul.f32 %v613, %v1196
      %v1280 = vmul.f32 %v616, %v1198
      %v1281 = vmul.f32 %v621, %v1200
      %v1282 = vmul.f32 %v624, %v1202
      %v1283 = vmul.f32 %v629, %v1204
      %v1284 = vmul.f32 %v632, %v1206
      %v1285 = vmul.f32 %v637, %v1208
      %v1286 = vmul.f32 %v640, %v1210
      %v1287 = vmul.f32 %v645, %v1212
      %v1288 = vmul.f32 %v648, %v1214
      %v1289 = vmul.f32 %v653, %v1216
      %v1290 = vmul.f32 %v656, %v1218
      %v1291 = vmul.f32 %v661, %v1220
      %v1292 = vmul.f32 %v664, %v1222
      %v1293 = vmul.f32 %v669, %v1224
      %v1294 = vmul.f32 %v672, %v1226
      %v1295 = vmul.f32 %v677, %v1228
      %v1296 = vmul.f32 %v680, %v1230
      %v1297 = vmul.f32 %v685, %v1232
      %v1298 = vmul.f32 %v688, %v1234
      %1331 = vrot.lane.b32.xlu0 %v1267, 112
      %v1332 = vpop.permute.xlu0 %1331
      %1333 = vrot.lane.b32.xlu0 %v1268, 112
      %v1334 = vpop.permute.xlu0 %1333
      %1335 = vrot.lane.b32.xlu0 %v1269, 112
      %v1336 = vpop.permute.xlu0 %1335
      %1337 = vrot.lane.b32.xlu0 %v1270, 112
      %v1338 = vpop.permute.xlu0 %1337
      %1339 = vrot.lane.b32.xlu0 %v1271, 112
      %v1340 = vpop.permute.xlu0 %1339
      %1341 = vrot.lane.b32.xlu0 %v1272, 112
      %v1342 = vpop.permute.xlu0 %1341
      %1343 = vrot.lane.b32.xlu0 %v1273, 112
      %v1344 = vpop.permute.xlu0 %1343
      %1345 = vrot.lane.b32.xlu0 %v1274, 112
      %v1346 = vpop.permute.xlu0 %1345
      %1347 = vrot.lane.b32.xlu0 %v1275, 112
      %v1348 = vpop.permute.xlu0 %1347
      %1349 = vrot.lane.b32.xlu0 %v1276, 112
      %v1350 = vpop.permute.xlu0 %1349
      %1351 = vrot.lane.b32.xlu0 %v1277, 112
      %v1352 = vpop.permute.xlu0 %1351
      %1353 = vrot.lane.b32.xlu0 %v1278, 112
      %v1354 = vpop.permute.xlu0 %1353
      %1355 = vrot.lane.b32.xlu0 %v1279, 112
      %v1356 = vpop.permute.xlu0 %1355
      %1357 = vrot.lane.b32.xlu0 %v1280, 112
      %v1358 = vpop.permute.xlu0 %1357
      %1359 = vrot.lane.b32.xlu0 %v1281, 112
      %v1360 = vpop.permute.xlu0 %1359
      %1361 = vrot.lane.b32.xlu0 %v1282, 112
      %v1362 = vpop.permute.xlu0 %1361
      %1363 = vrot.lane.b32.xlu0 %v1283, 112
      %v1364 = vpop.permute.xlu0 %1363
      %1365 = vrot.lane.b32.xlu0 %v1284, 112
      %v1366 = vpop.permute.xlu0 %1365
      %1367 = vrot.lane.b32.xlu0 %v1285, 112
      %v1368 = vpop.permute.xlu0 %1367
      %1369 = vrot.lane.b32.xlu0 %v1286, 112
      %v1370 = vpop.permute.xlu0 %1369
      %1371 = vrot.lane.b32.xlu0 %v1287, 112
      %v1372 = vpop.permute.xlu0 %1371
      %1373 = vrot.lane.b32.xlu0 %v1288, 112
      %v1374 = vpop.permute.xlu0 %1373
      %1375 = vrot.lane.b32.xlu0 %v1289, 112
      %v1376 = vpop.permute.xlu0 %1375
      %1377 = vrot.lane.b32.xlu0 %v1290, 112
      %v1378 = vpop.permute.xlu0 %1377
      %1379 = vrot.lane.b32.xlu0 %v1291, 112
      %v1380 = vpop.permute.xlu0 %1379
      %1381 = vrot.lane.b32.xlu0 %v1292, 112
      %v1382 = vpop.permute.xlu0 %1381
      %1383 = vrot.lane.b32.xlu0 %v1293, 112
      %v1384 = vpop.permute.xlu0 %1383
      %1385 = vrot.lane.b32.xlu0 %v1294, 112
      %v1386 = vpop.permute.xlu0 %1385
      %1387 = vrot.lane.b32.xlu0 %v1295, 112
      %v1388 = vpop.permute.xlu0 %1387
      %1389 = vrot.lane.b32.xlu0 %v1296, 112
      %v1390 = vpop.permute.xlu0 %1389
      %1391 = vrot.lane.b32.xlu0 %v1297, 112
      %v1392 = vpop.permute.xlu0 %1391
      %1393 = vrot.lane.b32.xlu0 %v1298, 112
      %v1394 = vpop.permute.xlu0 %1393
      %v1427 = vadd.f32 %v1107, %v1332
      %v1428 = vadd.f32 %v1108, %v1334
      %v1429 = vadd.f32 %v1109, %v1336
      %v1430 = vadd.f32 %v1110, %v1338
      %v1431 = vadd.f32 %v1111, %v1340
      %v1432 = vadd.f32 %v1112, %v1342
      %v1433 = vadd.f32 %v1113, %v1344
      %v1434 = vadd.f32 %v1114, %v1346
      %v1435 = vadd.f32 %v1115, %v1348
      %v1436 = vadd.f32 %v1116, %v1350
      %v1437 = vadd.f32 %v1117, %v1352
      %v1438 = vadd.f32 %v1118, %v1354
      %v1439 = vadd.f32 %v1119, %v1356
      %v1440 = vadd.f32 %v1120, %v1358
      %v1441 = vadd.f32 %v1121, %v1360
      %v1442 = vadd.f32 %v1122, %v1362
      %v1443 = vadd.f32 %v1123, %v1364
      %v1444 = vadd.f32 %v1124, %v1366
      %v1445 = vadd.f32 %v1125, %v1368
      %v1446 = vadd.f32 %v1126, %v1370
      %v1447 = vadd.f32 %v1127, %v1372
      %v1448 = vadd.f32 %v1128, %v1374
      %v1449 = vadd.f32 %v1129, %v1376
      %v1450 = vadd.f32 %v1130, %v1378
      %v1451 = vadd.f32 %v1131, %v1380
      %v1452 = vadd.f32 %v1132, %v1382
      %v1453 = vadd.f32 %v1133, %v1384
      %v1454 = vadd.f32 %v1134, %v1386
      %v1455 = vadd.f32 %v1135, %v1388
      %v1456 = vadd.f32 %v1136, %v1390
      %v1457 = vadd.f32 %v1137, %v1392
      %v1458 = vadd.f32 %v1138, %v1394
      %1459 = vrot.lane.b32.xlu0 %v691, 32
      %v1460 = vpop.permute.xlu0 %1459
      %1461 = vrot.lane.b32.xlu0 %v692, 32
      %v1462 = vpop.permute.xlu0 %1461
      %1463 = vrot.lane.b32.xlu0 %v693, 32
      %v1464 = vpop.permute.xlu0 %1463
      %1465 = vrot.lane.b32.xlu0 %v694, 32
      %v1466 = vpop.permute.xlu0 %1465
      %1467 = vrot.lane.b32.xlu0 %v695, 32
      %v1468 = vpop.permute.xlu0 %1467
      %1469 = vrot.lane.b32.xlu0 %v696, 32
      %v1470 = vpop.permute.xlu0 %1469
      %1471 = vrot.lane.b32.xlu0 %v697, 32
      %v1472 = vpop.permute.xlu0 %1471
      %1473 = vrot.lane.b32.xlu0 %v698, 32
      %v1474 = vpop.permute.xlu0 %1473
      %1475 = vrot.lane.b32.xlu0 %v699, 32
      %v1476 = vpop.permute.xlu0 %1475
      %1477 = vrot.lane.b32.xlu0 %v700, 32
      %v1478 = vpop.permute.xlu0 %1477
      %1479 = vrot.lane.b32.xlu0 %v701, 32
      %v1480 = vpop.permute.xlu0 %1479
      %1481 = vrot.lane.b32.xlu0 %v702, 32
      %v1482 = vpop.permute.xlu0 %1481
      %1483 = vrot.lane.b32.xlu0 %v703, 32
      %v1484 = vpop.permute.xlu0 %1483
      %1485 = vrot.lane.b32.xlu0 %v704, 32
      %v1486 = vpop.permute.xlu0 %1485
      %1487 = vrot.lane.b32.xlu0 %v705, 32
      %v1488 = vpop.permute.xlu0 %1487
      %1489 = vrot.lane.b32.xlu0 %v706, 32
      %v1490 = vpop.permute.xlu0 %1489
      %1491 = vrot.lane.b32.xlu0 %v707, 32
      %v1492 = vpop.permute.xlu0 %1491
      %1493 = vrot.lane.b32.xlu0 %v708, 32
      %v1494 = vpop.permute.xlu0 %1493
      %1495 = vrot.lane.b32.xlu0 %v709, 32
      %v1496 = vpop.permute.xlu0 %1495
      %1497 = vrot.lane.b32.xlu0 %v710, 32
      %v1498 = vpop.permute.xlu0 %1497
      %1499 = vrot.lane.b32.xlu0 %v711, 32
      %v1500 = vpop.permute.xlu0 %1499
      %1501 = vrot.lane.b32.xlu0 %v712, 32
      %v1502 = vpop.permute.xlu0 %1501
      %1503 = vrot.lane.b32.xlu0 %v713, 32
      %v1504 = vpop.permute.xlu0 %1503
      %1505 = vrot.lane.b32.xlu0 %v714, 32
      %v1506 = vpop.permute.xlu0 %1505
      %1507 = vrot.lane.b32.xlu0 %v715, 32
      %v1508 = vpop.permute.xlu0 %1507
      %1509 = vrot.lane.b32.xlu0 %v716, 32
      %v1510 = vpop.permute.xlu0 %1509
      %1511 = vrot.lane.b32.xlu0 %v717, 32
      %v1512 = vpop.permute.xlu0 %1511
      %1513 = vrot.lane.b32.xlu0 %v718, 32
      %v1514 = vpop.permute.xlu0 %1513
      %1515 = vrot.lane.b32.xlu0 %v719, 32
      %v1516 = vpop.permute.xlu0 %1515
      %1517 = vrot.lane.b32.xlu0 %v720, 32
      %v1518 = vpop.permute.xlu0 %1517
      %1519 = vrot.lane.b32.xlu0 %v721, 32
      %v1520 = vpop.permute.xlu0 %1519
      %1521 = vrot.lane.b32.xlu0 %v722, 32
      %v1522 = vpop.permute.xlu0 %1521
      %v1555 = vmul.f32 %v565, %v1460
      %v1556 = vmul.f32 %v568, %v1462
      %v1557 = vmul.f32 %v573, %v1464
      %v1558 = vmul.f32 %v576, %v1466
      %v1559 = vmul.f32 %v581, %v1468
      %v1560 = vmul.f32 %v584, %v1470
      %v1561 = vmul.f32 %v589, %v1472
      %v1562 = vmul.f32 %v592, %v1474
      %v1563 = vmul.f32 %v597, %v1476
      %v1564 = vmul.f32 %v600, %v1478
      %v1565 = vmul.f32 %v605, %v1480
      %v1566 = vmul.f32 %v608, %v1482
      %v1567 = vmul.f32 %v613, %v1484
      %v1568 = vmul.f32 %v616, %v1486
      %v1569 = vmul.f32 %v621, %v1488
      %v1570 = vmul.f32 %v624, %v1490
      %v1571 = vmul.f32 %v629, %v1492
      %v1572 = vmul.f32 %v632, %v1494
      %v1573 = vmul.f32 %v637, %v1496
      %v1574 = vmul.f32 %v640, %v1498
      %v1575 = vmul.f32 %v645, %v1500
      %v1576 = vmul.f32 %v648, %v1502
      %v1577 = vmul.f32 %v653, %v1504
      %v1578 = vmul.f32 %v656, %v1506
      %v1579 = vmul.f32 %v661, %v1508
      %v1580 = vmul.f32 %v664, %v1510
      %v1581 = vmul.f32 %v669, %v1512
      %v1582 = vmul.f32 %v672, %v1514
      %v1583 = vmul.f32 %v677, %v1516
      %v1584 = vmul.f32 %v680, %v1518
      %v1585 = vmul.f32 %v685, %v1520
      %v1586 = vmul.f32 %v688, %v1522
      %1587 = vrot.lane.b32.xlu0 %v723, 48
      %v1588 = vpop.permute.xlu0 %1587
      %1589 = vrot.lane.b32.xlu0 %v724, 48
      %v1590 = vpop.permute.xlu0 %1589
      %1591 = vrot.lane.b32.xlu0 %v725, 48
      %v1592 = vpop.permute.xlu0 %1591
      %1593 = vrot.lane.b32.xlu0 %v726, 48
      %v1594 = vpop.permute.xlu0 %1593
      %1595 = vrot.lane.b32.xlu0 %v727, 48
      %v1596 = vpop.permute.xlu0 %1595
      %1597 = vrot.lane.b32.xlu0 %v728, 48
      %v1598 = vpop.permute.xlu0 %1597
      %1599 = vrot.lane.b32.xlu0 %v729, 48
      %v1600 = vpop.permute.xlu0 %1599
      %1601 = vrot.lane.b32.xlu0 %v730, 48
      %v1602 = vpop.permute.xlu0 %1601
      %1603 = vrot.lane.b32.xlu0 %v731, 48
      %v1604 = vpop.permute.xlu0 %1603
      %1605 = vrot.lane.b32.xlu0 %v732, 48
      %v1606 = vpop.permute.xlu0 %1605
      %1607 = vrot.lane.b32.xlu0 %v733, 48
      %v1608 = vpop.permute.xlu0 %1607
      %1609 = vrot.lane.b32.xlu0 %v734, 48
      %v1610 = vpop.permute.xlu0 %1609
      %1611 = vrot.lane.b32.xlu0 %v735, 48
      %v1612 = vpop.permute.xlu0 %1611
      %1613 = vrot.lane.b32.xlu0 %v736, 48
      %v1614 = vpop.permute.xlu0 %1613
      %1615 = vrot.lane.b32.xlu0 %v737, 48
      %v1616 = vpop.permute.xlu0 %1615
      %1617 = vrot.lane.b32.xlu0 %v738, 48
      %v1618 = vpop.permute.xlu0 %1617
      %1619 = vrot.lane.b32.xlu0 %v739, 48
      %v1620 = vpop.permute.xlu0 %1619
      %1621 = vrot.lane.b32.xlu0 %v740, 48
      %v1622 = vpop.permute.xlu0 %1621
      %1623 = vrot.lane.b32.xlu0 %v741, 48
      %v1624 = vpop.permute.xlu0 %1623
      %1625 = vrot.lane.b32.xlu0 %v742, 48
      %v1626 = vpop.permute.xlu0 %1625
      %1627 = vrot.lane.b32.xlu0 %v743, 48
      %v1628 = vpop.permute.xlu0 %1627
      %1629 = vrot.lane.b32.xlu0 %v744, 48
      %v1630 = vpop.permute.xlu0 %1629
      %1631 = vrot.lane.b32.xlu0 %v745, 48
      %v1632 = vpop.permute.xlu0 %1631
      %1633 = vrot.lane.b32.xlu0 %v746, 48
      %v1634 = vpop.permute.xlu0 %1633
      %1635 = vrot.lane.b32.xlu0 %v747, 48
      %v1636 = vpop.permute.xlu0 %1635
      %1637 = vrot.lane.b32.xlu0 %v748, 48
      %v1638 = vpop.permute.xlu0 %1637
      %1639 = vrot.lane.b32.xlu0 %v749, 48
      %v1640 = vpop.permute.xlu0 %1639
      %1641 = vrot.lane.b32.xlu0 %v750, 48
      %v1642 = vpop.permute.xlu0 %1641
      %1643 = vrot.lane.b32.xlu0 %v751, 48
      %v1644 = vpop.permute.xlu0 %1643
      %1645 = vrot.lane.b32.xlu0 %v752, 48
      %v1646 = vpop.permute.xlu0 %1645
      %1647 = vrot.lane.b32.xlu0 %v753, 48
      %v1648 = vpop.permute.xlu0 %1647
      %1649 = vrot.lane.b32.xlu0 %v754, 48
      %v1650 = vpop.permute.xlu0 %1649
      %v1683 = vmul.f32 %v565, %v1588
      %v1684 = vmul.f32 %v568, %v1590
      %v1685 = vmul.f32 %v573, %v1592
      %v1686 = vmul.f32 %v576, %v1594
      %v1687 = vmul.f32 %v581, %v1596
      %v1688 = vmul.f32 %v584, %v1598
      %v1689 = vmul.f32 %v589, %v1600
      %v1690 = vmul.f32 %v592, %v1602
      %v1691 = vmul.f32 %v597, %v1604
      %v1692 = vmul.f32 %v600, %v1606
      %v1693 = vmul.f32 %v605, %v1608
      %v1694 = vmul.f32 %v608, %v1610
      %v1695 = vmul.f32 %v613, %v1612
      %v1696 = vmul.f32 %v616, %v1614
      %v1697 = vmul.f32 %v621, %v1616
      %v1698 = vmul.f32 %v624, %v1618
      %v1699 = vmul.f32 %v629, %v1620
      %v1700 = vmul.f32 %v632, %v1622
      %v1701 = vmul.f32 %v637, %v1624
      %v1702 = vmul.f32 %v640, %v1626
      %v1703 = vmul.f32 %v645, %v1628
      %v1704 = vmul.f32 %v648, %v1630
      %v1705 = vmul.f32 %v653, %v1632
      %v1706 = vmul.f32 %v656, %v1634
      %v1707 = vmul.f32 %v661, %v1636
      %v1708 = vmul.f32 %v664, %v1638
      %v1709 = vmul.f32 %v669, %v1640
      %v1710 = vmul.f32 %v672, %v1642
      %v1711 = vmul.f32 %v677, %v1644
      %v1712 = vmul.f32 %v680, %v1646
      %v1713 = vmul.f32 %v685, %v1648
      %v1714 = vmul.f32 %v688, %v1650
      %1747 = vrot.lane.b32.xlu0 %v1683, 112
      %v1748 = vpop.permute.xlu0 %1747
      %1749 = vrot.lane.b32.xlu0 %v1684, 112
      %v1750 = vpop.permute.xlu0 %1749
      %1751 = vrot.lane.b32.xlu0 %v1685, 112
      %v1752 = vpop.permute.xlu0 %1751
      %1753 = vrot.lane.b32.xlu0 %v1686, 112
      %v1754 = vpop.permute.xlu0 %1753
      %1755 = vrot.lane.b32.xlu0 %v1687, 112
      %v1756 = vpop.permute.xlu0 %1755
      %1757 = vrot.lane.b32.xlu0 %v1688, 112
      %v1758 = vpop.permute.xlu0 %1757
      %1759 = vrot.lane.b32.xlu0 %v1689, 112
      %v1760 = vpop.permute.xlu0 %1759
      %1761 = vrot.lane.b32.xlu0 %v1690, 112
      %v1762 = vpop.permute.xlu0 %1761
      %1763 = vrot.lane.b32.xlu0 %v1691, 112
      %v1764 = vpop.permute.xlu0 %1763
      %1765 = vrot.lane.b32.xlu0 %v1692, 112
      %v1766 = vpop.permute.xlu0 %1765
      %1767 = vrot.lane.b32.xlu0 %v1693, 112
      %v1768 = vpop.permute.xlu0 %1767
      %1769 = vrot.lane.b32.xlu0 %v1694, 112
      %v1770 = vpop.permute.xlu0 %1769
      %1771 = vrot.lane.b32.xlu0 %v1695, 112
      %v1772 = vpop.permute.xlu0 %1771
      %1773 = vrot.lane.b32.xlu0 %v1696, 112
      %v1774 = vpop.permute.xlu0 %1773
      %1775 = vrot.lane.b32.xlu0 %v1697, 112
      %v1776 = vpop.permute.xlu0 %1775
      %1777 = vrot.lane.b32.xlu0 %v1698, 112
      %v1778 = vpop.permute.xlu0 %1777
      %1779 = vrot.lane.b32.xlu0 %v1699, 112
      %v1780 = vpop.permute.xlu0 %1779
      %1781 = vrot.lane.b32.xlu0 %v1700, 112
      %v1782 = vpop.permute.xlu0 %1781
      %1783 = vrot.lane.b32.xlu0 %v1701, 112
      %v1784 = vpop.permute.xlu0 %1783
      %1785 = vrot.lane.b32.xlu0 %v1702, 112
      %v1786 = vpop.permute.xlu0 %1785
      %1787 = vrot.lane.b32.xlu0 %v1703, 112
      %v1788 = vpop.permute.xlu0 %1787
      %1789 = vrot.lane.b32.xlu0 %v1704, 112
      %v1790 = vpop.permute.xlu0 %1789
      %1791 = vrot.lane.b32.xlu0 %v1705, 112
      %v1792 = vpop.permute.xlu0 %1791
      %1793 = vrot.lane.b32.xlu0 %v1706, 112
      %v1794 = vpop.permute.xlu0 %1793
      %1795 = vrot.lane.b32.xlu0 %v1707, 112
      %v1796 = vpop.permute.xlu0 %1795
      %1797 = vrot.lane.b32.xlu0 %v1708, 112
      %v1798 = vpop.permute.xlu0 %1797
      %1799 = vrot.lane.b32.xlu0 %v1709, 112
      %v1800 = vpop.permute.xlu0 %1799
      %1801 = vrot.lane.b32.xlu0 %v1710, 112
      %v1802 = vpop.permute.xlu0 %1801
      %1803 = vrot.lane.b32.xlu0 %v1711, 112
      %v1804 = vpop.permute.xlu0 %1803
      %1805 = vrot.lane.b32.xlu0 %v1712, 112
      %v1806 = vpop.permute.xlu0 %1805
      %1807 = vrot.lane.b32.xlu0 %v1713, 112
      %v1808 = vpop.permute.xlu0 %1807
      %1809 = vrot.lane.b32.xlu0 %v1714, 112
      %v1810 = vpop.permute.xlu0 %1809
      %v1843 = vsub.f32 %v1555, %v1748
      %v1844 = vsub.f32 %v1556, %v1750
      %v1845 = vsub.f32 %v1557, %v1752
      %v1846 = vsub.f32 %v1558, %v1754
      %v1847 = vsub.f32 %v1559, %v1756
      %v1848 = vsub.f32 %v1560, %v1758
      %v1849 = vsub.f32 %v1561, %v1760
      %v1850 = vsub.f32 %v1562, %v1762
      %v1851 = vsub.f32 %v1563, %v1764
      %v1852 = vsub.f32 %v1564, %v1766
      %v1853 = vsub.f32 %v1565, %v1768
      %v1854 = vsub.f32 %v1566, %v1770
      %v1855 = vsub.f32 %v1567, %v1772
      %v1856 = vsub.f32 %v1568, %v1774
      %v1857 = vsub.f32 %v1569, %v1776
      %v1858 = vsub.f32 %v1570, %v1778
      %v1859 = vsub.f32 %v1571, %v1780
      %v1860 = vsub.f32 %v1572, %v1782
      %v1861 = vsub.f32 %v1573, %v1784
      %v1862 = vsub.f32 %v1574, %v1786
      %v1863 = vsub.f32 %v1575, %v1788
      %v1864 = vsub.f32 %v1576, %v1790
      %v1865 = vsub.f32 %v1577, %v1792
      %v1866 = vsub.f32 %v1578, %v1794
      %v1867 = vsub.f32 %v1579, %v1796
      %v1868 = vsub.f32 %v1580, %v1798
      %v1869 = vsub.f32 %v1581, %v1800
      %v1870 = vsub.f32 %v1582, %v1802
      %v1871 = vsub.f32 %v1583, %v1804
      %v1872 = vsub.f32 %v1584, %v1806
      %v1873 = vsub.f32 %v1585, %v1808
      %v1874 = vsub.f32 %v1586, %v1810
      %1875 = vrot.lane.b32.xlu0 %v723, 32
      %v1876 = vpop.permute.xlu0 %1875
      %1877 = vrot.lane.b32.xlu0 %v724, 32
      %v1878 = vpop.permute.xlu0 %1877
      %1879 = vrot.lane.b32.xlu0 %v725, 32
      %v1880 = vpop.permute.xlu0 %1879
      %1881 = vrot.lane.b32.xlu0 %v726, 32
      %v1882 = vpop.permute.xlu0 %1881
      %1883 = vrot.lane.b32.xlu0 %v727, 32
      %v1884 = vpop.permute.xlu0 %1883
      %1885 = vrot.lane.b32.xlu0 %v728, 32
      %v1886 = vpop.permute.xlu0 %1885
      %1887 = vrot.lane.b32.xlu0 %v729, 32
      %v1888 = vpop.permute.xlu0 %1887
      %1889 = vrot.lane.b32.xlu0 %v730, 32
      %v1890 = vpop.permute.xlu0 %1889
      %1891 = vrot.lane.b32.xlu0 %v731, 32
      %v1892 = vpop.permute.xlu0 %1891
      %1893 = vrot.lane.b32.xlu0 %v732, 32
      %v1894 = vpop.permute.xlu0 %1893
      %1895 = vrot.lane.b32.xlu0 %v733, 32
      %v1896 = vpop.permute.xlu0 %1895
      %1897 = vrot.lane.b32.xlu0 %v734, 32
      %v1898 = vpop.permute.xlu0 %1897
      %1899 = vrot.lane.b32.xlu0 %v735, 32
      %v1900 = vpop.permute.xlu0 %1899
      %1901 = vrot.lane.b32.xlu0 %v736, 32
      %v1902 = vpop.permute.xlu0 %1901
      %1903 = vrot.lane.b32.xlu0 %v737, 32
      %v1904 = vpop.permute.xlu0 %1903
      %1905 = vrot.lane.b32.xlu0 %v738, 32
      %v1906 = vpop.permute.xlu0 %1905
      %1907 = vrot.lane.b32.xlu0 %v739, 32
      %v1908 = vpop.permute.xlu0 %1907
      %1909 = vrot.lane.b32.xlu0 %v740, 32
      %v1910 = vpop.permute.xlu0 %1909
      %1911 = vrot.lane.b32.xlu0 %v741, 32
      %v1912 = vpop.permute.xlu0 %1911
      %1913 = vrot.lane.b32.xlu0 %v742, 32
      %v1914 = vpop.permute.xlu0 %1913
      %1915 = vrot.lane.b32.xlu0 %v743, 32
      %v1916 = vpop.permute.xlu0 %1915
      %1917 = vrot.lane.b32.xlu0 %v744, 32
      %v1918 = vpop.permute.xlu0 %1917
      %1919 = vrot.lane.b32.xlu0 %v745, 32
      %v1920 = vpop.permute.xlu0 %1919
      %1921 = vrot.lane.b32.xlu0 %v746, 32
      %v1922 = vpop.permute.xlu0 %1921
      %1923 = vrot.lane.b32.xlu0 %v747, 32
      %v1924 = vpop.permute.xlu0 %1923
      %1925 = vrot.lane.b32.xlu0 %v748, 32
      %v1926 = vpop.permute.xlu0 %1925
      %1927 = vrot.lane.b32.xlu0 %v749, 32
      %v1928 = vpop.permute.xlu0 %1927
      %1929 = vrot.lane.b32.xlu0 %v750, 32
      %v1930 = vpop.permute.xlu0 %1929
      %1931 = vrot.lane.b32.xlu0 %v751, 32
      %v1932 = vpop.permute.xlu0 %1931
      %1933 = vrot.lane.b32.xlu0 %v752, 32
      %v1934 = vpop.permute.xlu0 %1933
      %1935 = vrot.lane.b32.xlu0 %v753, 32
      %v1936 = vpop.permute.xlu0 %1935
      %1937 = vrot.lane.b32.xlu0 %v754, 32
      %v1938 = vpop.permute.xlu0 %1937
      %v1971 = vmul.f32 %v565, %v1876
      %v1972 = vmul.f32 %v568, %v1878
      %v1973 = vmul.f32 %v573, %v1880
      %v1974 = vmul.f32 %v576, %v1882
      %v1975 = vmul.f32 %v581, %v1884
      %v1976 = vmul.f32 %v584, %v1886
      %v1977 = vmul.f32 %v589, %v1888
      %v1978 = vmul.f32 %v592, %v1890
      %v1979 = vmul.f32 %v597, %v1892
      %v1980 = vmul.f32 %v600, %v1894
      %v1981 = vmul.f32 %v605, %v1896
      %v1982 = vmul.f32 %v608, %v1898
      %v1983 = vmul.f32 %v613, %v1900
      %v1984 = vmul.f32 %v616, %v1902
      %v1985 = vmul.f32 %v621, %v1904
      %v1986 = vmul.f32 %v624, %v1906
      %v1987 = vmul.f32 %v629, %v1908
      %v1988 = vmul.f32 %v632, %v1910
      %v1989 = vmul.f32 %v637, %v1912
      %v1990 = vmul.f32 %v640, %v1914
      %v1991 = vmul.f32 %v645, %v1916
      %v1992 = vmul.f32 %v648, %v1918
      %v1993 = vmul.f32 %v653, %v1920
      %v1994 = vmul.f32 %v656, %v1922
      %v1995 = vmul.f32 %v661, %v1924
      %v1996 = vmul.f32 %v664, %v1926
      %v1997 = vmul.f32 %v669, %v1928
      %v1998 = vmul.f32 %v672, %v1930
      %v1999 = vmul.f32 %v677, %v1932
      %v2000 = vmul.f32 %v680, %v1934
      %v2001 = vmul.f32 %v685, %v1936
      %v2002 = vmul.f32 %v688, %v1938
      %2003 = vrot.lane.b32.xlu0 %v691, 48
      %v2004 = vpop.permute.xlu0 %2003
      %2005 = vrot.lane.b32.xlu0 %v692, 48
      %v2006 = vpop.permute.xlu0 %2005
      %2007 = vrot.lane.b32.xlu0 %v693, 48
      %v2008 = vpop.permute.xlu0 %2007
      %2009 = vrot.lane.b32.xlu0 %v694, 48
      %v2010 = vpop.permute.xlu0 %2009
      %2011 = vrot.lane.b32.xlu0 %v695, 48
      %v2012 = vpop.permute.xlu0 %2011
      %2013 = vrot.lane.b32.xlu0 %v696, 48
      %v2014 = vpop.permute.xlu0 %2013
      %2015 = vrot.lane.b32.xlu0 %v697, 48
      %v2016 = vpop.permute.xlu0 %2015
      %2017 = vrot.lane.b32.xlu0 %v698, 48
      %v2018 = vpop.permute.xlu0 %2017
      %2019 = vrot.lane.b32.xlu0 %v699, 48
      %v2020 = vpop.permute.xlu0 %2019
      %2021 = vrot.lane.b32.xlu0 %v700, 48
      %v2022 = vpop.permute.xlu0 %2021
      %2023 = vrot.lane.b32.xlu0 %v701, 48
      %v2024 = vpop.permute.xlu0 %2023
      %2025 = vrot.lane.b32.xlu0 %v702, 48
      %v2026 = vpop.permute.xlu0 %2025
      %2027 = vrot.lane.b32.xlu0 %v703, 48
      %v2028 = vpop.permute.xlu0 %2027
      %2029 = vrot.lane.b32.xlu0 %v704, 48
      %v2030 = vpop.permute.xlu0 %2029
      %2031 = vrot.lane.b32.xlu0 %v705, 48
      %v2032 = vpop.permute.xlu0 %2031
      %2033 = vrot.lane.b32.xlu0 %v706, 48
      %v2034 = vpop.permute.xlu0 %2033
      %2035 = vrot.lane.b32.xlu0 %v707, 48
      %v2036 = vpop.permute.xlu0 %2035
      %2037 = vrot.lane.b32.xlu0 %v708, 48
      %v2038 = vpop.permute.xlu0 %2037
      %2039 = vrot.lane.b32.xlu0 %v709, 48
      %v2040 = vpop.permute.xlu0 %2039
      %2041 = vrot.lane.b32.xlu0 %v710, 48
      %v2042 = vpop.permute.xlu0 %2041
      %2043 = vrot.lane.b32.xlu0 %v711, 48
      %v2044 = vpop.permute.xlu0 %2043
      %2045 = vrot.lane.b32.xlu0 %v712, 48
      %v2046 = vpop.permute.xlu0 %2045
      %2047 = vrot.lane.b32.xlu0 %v713, 48
      %v2048 = vpop.permute.xlu0 %2047
      %2049 = vrot.lane.b32.xlu0 %v714, 48
      %v2050 = vpop.permute.xlu0 %2049
      %2051 = vrot.lane.b32.xlu0 %v715, 48
      %v2052 = vpop.permute.xlu0 %2051
      %2053 = vrot.lane.b32.xlu0 %v716, 48
      %v2054 = vpop.permute.xlu0 %2053
      %2055 = vrot.lane.b32.xlu0 %v717, 48
      %v2056 = vpop.permute.xlu0 %2055
      %2057 = vrot.lane.b32.xlu0 %v718, 48
      %v2058 = vpop.permute.xlu0 %2057
      %2059 = vrot.lane.b32.xlu0 %v719, 48
      %v2060 = vpop.permute.xlu0 %2059
      %2061 = vrot.lane.b32.xlu0 %v720, 48
      %v2062 = vpop.permute.xlu0 %2061
      %2063 = vrot.lane.b32.xlu0 %v721, 48
      %v2064 = vpop.permute.xlu0 %2063
      %2065 = vrot.lane.b32.xlu0 %v722, 48
      %v2066 = vpop.permute.xlu0 %2065
      %v2099 = vmul.f32 %v565, %v2004
      %v2100 = vmul.f32 %v568, %v2006
      %v2101 = vmul.f32 %v573, %v2008
      %v2102 = vmul.f32 %v576, %v2010
      %v2103 = vmul.f32 %v581, %v2012
      %v2104 = vmul.f32 %v584, %v2014
      %v2105 = vmul.f32 %v589, %v2016
      %v2106 = vmul.f32 %v592, %v2018
      %v2107 = vmul.f32 %v597, %v2020
      %v2108 = vmul.f32 %v600, %v2022
      %v2109 = vmul.f32 %v605, %v2024
      %v2110 = vmul.f32 %v608, %v2026
      %v2111 = vmul.f32 %v613, %v2028
      %v2112 = vmul.f32 %v616, %v2030
      %v2113 = vmul.f32 %v621, %v2032
      %v2114 = vmul.f32 %v624, %v2034
      %v2115 = vmul.f32 %v629, %v2036
      %v2116 = vmul.f32 %v632, %v2038
      %v2117 = vmul.f32 %v637, %v2040
      %v2118 = vmul.f32 %v640, %v2042
      %v2119 = vmul.f32 %v645, %v2044
      %v2120 = vmul.f32 %v648, %v2046
      %v2121 = vmul.f32 %v653, %v2048
      %v2122 = vmul.f32 %v656, %v2050
      %v2123 = vmul.f32 %v661, %v2052
      %v2124 = vmul.f32 %v664, %v2054
      %v2125 = vmul.f32 %v669, %v2056
      %v2126 = vmul.f32 %v672, %v2058
      %v2127 = vmul.f32 %v677, %v2060
      %v2128 = vmul.f32 %v680, %v2062
      %v2129 = vmul.f32 %v685, %v2064
      %v2130 = vmul.f32 %v688, %v2066
      %2163 = vrot.lane.b32.xlu0 %v2099, 112
      %v2164 = vpop.permute.xlu0 %2163
      %2165 = vrot.lane.b32.xlu0 %v2100, 112
      %v2166 = vpop.permute.xlu0 %2165
      %2167 = vrot.lane.b32.xlu0 %v2101, 112
      %v2168 = vpop.permute.xlu0 %2167
      %2169 = vrot.lane.b32.xlu0 %v2102, 112
      %v2170 = vpop.permute.xlu0 %2169
      %2171 = vrot.lane.b32.xlu0 %v2103, 112
      %v2172 = vpop.permute.xlu0 %2171
      %2173 = vrot.lane.b32.xlu0 %v2104, 112
      %v2174 = vpop.permute.xlu0 %2173
      %2175 = vrot.lane.b32.xlu0 %v2105, 112
      %v2176 = vpop.permute.xlu0 %2175
      %2177 = vrot.lane.b32.xlu0 %v2106, 112
      %v2178 = vpop.permute.xlu0 %2177
      %2179 = vrot.lane.b32.xlu0 %v2107, 112
      %v2180 = vpop.permute.xlu0 %2179
      %2181 = vrot.lane.b32.xlu0 %v2108, 112
      %v2182 = vpop.permute.xlu0 %2181
      %2183 = vrot.lane.b32.xlu0 %v2109, 112
      %v2184 = vpop.permute.xlu0 %2183
      %2185 = vrot.lane.b32.xlu0 %v2110, 112
      %v2186 = vpop.permute.xlu0 %2185
      %2187 = vrot.lane.b32.xlu0 %v2111, 112
      %v2188 = vpop.permute.xlu0 %2187
      %2189 = vrot.lane.b32.xlu0 %v2112, 112
      %v2190 = vpop.permute.xlu0 %2189
      %2191 = vrot.lane.b32.xlu0 %v2113, 112
      %v2192 = vpop.permute.xlu0 %2191
      %2193 = vrot.lane.b32.xlu0 %v2114, 112
      %v2194 = vpop.permute.xlu0 %2193
      %2195 = vrot.lane.b32.xlu0 %v2115, 112
      %v2196 = vpop.permute.xlu0 %2195
      %2197 = vrot.lane.b32.xlu0 %v2116, 112
      %v2198 = vpop.permute.xlu0 %2197
      %2199 = vrot.lane.b32.xlu0 %v2117, 112
      %v2200 = vpop.permute.xlu0 %2199
      %2201 = vrot.lane.b32.xlu0 %v2118, 112
      %v2202 = vpop.permute.xlu0 %2201
      %2203 = vrot.lane.b32.xlu0 %v2119, 112
      %v2204 = vpop.permute.xlu0 %2203
      %2205 = vrot.lane.b32.xlu0 %v2120, 112
      %v2206 = vpop.permute.xlu0 %2205
      %2207 = vrot.lane.b32.xlu0 %v2121, 112
      %v2208 = vpop.permute.xlu0 %2207
      %2209 = vrot.lane.b32.xlu0 %v2122, 112
      %v2210 = vpop.permute.xlu0 %2209
      %2211 = vrot.lane.b32.xlu0 %v2123, 112
      %v2212 = vpop.permute.xlu0 %2211
      %2213 = vrot.lane.b32.xlu0 %v2124, 112
      %v2214 = vpop.permute.xlu0 %2213
      %2215 = vrot.lane.b32.xlu0 %v2125, 112
      %v2216 = vpop.permute.xlu0 %2215
      %2217 = vrot.lane.b32.xlu0 %v2126, 112
      %v2218 = vpop.permute.xlu0 %2217
      %2219 = vrot.lane.b32.xlu0 %v2127, 112
      %v2220 = vpop.permute.xlu0 %2219
      %2221 = vrot.lane.b32.xlu0 %v2128, 112
      %v2222 = vpop.permute.xlu0 %2221
      %2223 = vrot.lane.b32.xlu0 %v2129, 112
      %v2224 = vpop.permute.xlu0 %2223
      %2225 = vrot.lane.b32.xlu0 %v2130, 112
      %v2226 = vpop.permute.xlu0 %2225
      %v2259 = vadd.f32 %v1971, %v2164
      %v2260 = vadd.f32 %v1972, %v2166
      %v2261 = vadd.f32 %v1973, %v2168
      %v2262 = vadd.f32 %v1974, %v2170
      %v2263 = vadd.f32 %v1975, %v2172
      %v2264 = vadd.f32 %v1976, %v2174
      %v2265 = vadd.f32 %v1977, %v2176
      %v2266 = vadd.f32 %v1978, %v2178
      %v2267 = vadd.f32 %v1979, %v2180
      %v2268 = vadd.f32 %v1980, %v2182
      %v2269 = vadd.f32 %v1981, %v2184
      %v2270 = vadd.f32 %v1982, %v2186
      %v2271 = vadd.f32 %v1983, %v2188
      %v2272 = vadd.f32 %v1984, %v2190
      %v2273 = vadd.f32 %v1985, %v2192
      %v2274 = vadd.f32 %v1986, %v2194
      %v2275 = vadd.f32 %v1987, %v2196
      %v2276 = vadd.f32 %v1988, %v2198
      %v2277 = vadd.f32 %v1989, %v2200
      %v2278 = vadd.f32 %v1990, %v2202
      %v2279 = vadd.f32 %v1991, %v2204
      %v2280 = vadd.f32 %v1992, %v2206
      %v2281 = vadd.f32 %v1993, %v2208
      %v2282 = vadd.f32 %v1994, %v2210
      %v2283 = vadd.f32 %v1995, %v2212
      %v2284 = vadd.f32 %v1996, %v2214
      %v2285 = vadd.f32 %v1997, %v2216
      %v2286 = vadd.f32 %v1998, %v2218
      %v2287 = vadd.f32 %v1999, %v2220
      %v2288 = vadd.f32 %v2000, %v2222
      %v2289 = vadd.f32 %v2001, %v2224
      %v2290 = vadd.f32 %v2002, %v2226
      %2323 = vrot.lane.b32.xlu0 %v1427, 4
      %v2324 = vpop.permute.xlu0 %2323
      %2325 = vrot.lane.b32.xlu0 %v1428, 4
      %v2326 = vpop.permute.xlu0 %2325
      %2327 = vrot.lane.b32.xlu0 %v1429, 4
      %v2328 = vpop.permute.xlu0 %2327
      %2329 = vrot.lane.b32.xlu0 %v1430, 4
      %v2330 = vpop.permute.xlu0 %2329
      %2331 = vrot.lane.b32.xlu0 %v1431, 4
      %v2332 = vpop.permute.xlu0 %2331
      %2333 = vrot.lane.b32.xlu0 %v1432, 4
      %v2334 = vpop.permute.xlu0 %2333
      %2335 = vrot.lane.b32.xlu0 %v1433, 4
      %v2336 = vpop.permute.xlu0 %2335
      %2337 = vrot.lane.b32.xlu0 %v1434, 4
      %v2338 = vpop.permute.xlu0 %2337
      %2339 = vrot.lane.b32.xlu0 %v1435, 4
      %v2340 = vpop.permute.xlu0 %2339
      %2341 = vrot.lane.b32.xlu0 %v1436, 4
      %v2342 = vpop.permute.xlu0 %2341
      %2343 = vrot.lane.b32.xlu0 %v1437, 4
      %v2344 = vpop.permute.xlu0 %2343
      %2345 = vrot.lane.b32.xlu0 %v1438, 4
      %v2346 = vpop.permute.xlu0 %2345
      %2347 = vrot.lane.b32.xlu0 %v1439, 4
      %v2348 = vpop.permute.xlu0 %2347
      %2349 = vrot.lane.b32.xlu0 %v1440, 4
      %v2350 = vpop.permute.xlu0 %2349
      %2351 = vrot.lane.b32.xlu0 %v1441, 4
      %v2352 = vpop.permute.xlu0 %2351
      %2353 = vrot.lane.b32.xlu0 %v1442, 4
      %v2354 = vpop.permute.xlu0 %2353
      %2355 = vrot.lane.b32.xlu0 %v1443, 4
      %v2356 = vpop.permute.xlu0 %2355
      %2357 = vrot.lane.b32.xlu0 %v1444, 4
      %v2358 = vpop.permute.xlu0 %2357
      %2359 = vrot.lane.b32.xlu0 %v1445, 4
      %v2360 = vpop.permute.xlu0 %2359
      %2361 = vrot.lane.b32.xlu0 %v1446, 4
      %v2362 = vpop.permute.xlu0 %2361
      %2363 = vrot.lane.b32.xlu0 %v1447, 4
      %v2364 = vpop.permute.xlu0 %2363
      %2365 = vrot.lane.b32.xlu0 %v1448, 4
      %v2366 = vpop.permute.xlu0 %2365
      %2367 = vrot.lane.b32.xlu0 %v1449, 4
      %v2368 = vpop.permute.xlu0 %2367
      %2369 = vrot.lane.b32.xlu0 %v1450, 4
      %v2370 = vpop.permute.xlu0 %2369
      %2371 = vrot.lane.b32.xlu0 %v1451, 4
      %v2372 = vpop.permute.xlu0 %2371
      %2373 = vrot.lane.b32.xlu0 %v1452, 4
      %v2374 = vpop.permute.xlu0 %2373
      %2375 = vrot.lane.b32.xlu0 %v1453, 4
      %v2376 = vpop.permute.xlu0 %2375
      %2377 = vrot.lane.b32.xlu0 %v1454, 4
      %v2378 = vpop.permute.xlu0 %2377
      %2379 = vrot.lane.b32.xlu0 %v1455, 4
      %v2380 = vpop.permute.xlu0 %2379
      %2381 = vrot.lane.b32.xlu0 %v1456, 4
      %v2382 = vpop.permute.xlu0 %2381
      %2383 = vrot.lane.b32.xlu0 %v1457, 4
      %v2384 = vpop.permute.xlu0 %2383
      %2385 = vrot.lane.b32.xlu0 %v1458, 4
      %v2386 = vpop.permute.xlu0 %2385
      %vm2419 = vcmask 31744
      %v2420 = vsel %vm2419, %v1075, %v2324
      %v2421 = vsel %vm2419, %v1076, %v2326
      %v2422 = vsel %vm2419, %v1077, %v2328
      %v2423 = vsel %vm2419, %v1078, %v2330
      %v2424 = vsel %vm2419, %v1079, %v2332
      %v2425 = vsel %vm2419, %v1080, %v2334
      %v2426 = vsel %vm2419, %v1081, %v2336
      %v2427 = vsel %vm2419, %v1082, %v2338
      %v2428 = vsel %vm2419, %v1083, %v2340
      %v2429 = vsel %vm2419, %v1084, %v2342
      %v2430 = vsel %vm2419, %v1085, %v2344
      %v2431 = vsel %vm2419, %v1086, %v2346
      %v2432 = vsel %vm2419, %v1087, %v2348
      %v2433 = vsel %vm2419, %v1088, %v2350
      %v2434 = vsel %vm2419, %v1089, %v2352
      %v2435 = vsel %vm2419, %v1090, %v2354
      %v2436 = vsel %vm2419, %v1091, %v2356
      %v2437 = vsel %vm2419, %v1092, %v2358
      %v2438 = vsel %vm2419, %v1093, %v2360
      %v2439 = vsel %vm2419, %v1094, %v2362
      %v2440 = vsel %vm2419, %v1095, %v2364
      %v2441 = vsel %vm2419, %v1096, %v2366
      %v2442 = vsel %vm2419, %v1097, %v2368
      %v2443 = vsel %vm2419, %v1098, %v2370
      %v2444 = vsel %vm2419, %v1099, %v2372
      %v2445 = vsel %vm2419, %v1100, %v2374
      %v2446 = vsel %vm2419, %v1101, %v2376
      %v2447 = vsel %vm2419, %v1102, %v2378
      %v2448 = vsel %vm2419, %v1103, %v2380
      %v2449 = vsel %vm2419, %v1104, %v2382
      %v2450 = vsel %vm2419, %v1105, %v2384
      %v2451 = vsel %vm2419, %v1106, %v2386
      %v2452 = vpack.c.bf16 %v2421, %v2420
      %v2453 = vpack.c.bf16 %v2423, %v2422
      %v2454 = vpack.c.bf16 %v2425, %v2424
      %v2455 = vpack.c.bf16 %v2427, %v2426
      %v2456 = vpack.c.bf16 %v2429, %v2428
      %v2457 = vpack.c.bf16 %v2431, %v2430
      %v2458 = vpack.c.bf16 %v2433, %v2432
      %v2459 = vpack.c.bf16 %v2435, %v2434
      %v2460 = vpack.c.bf16 %v2437, %v2436
      %v2461 = vpack.c.bf16 %v2439, %v2438
      %v2462 = vpack.c.bf16 %v2441, %v2440
      %v2463 = vpack.c.bf16 %v2443, %v2442
      %v2464 = vpack.c.bf16 %v2445, %v2444
      %v2465 = vpack.c.bf16 %v2447, %v2446
      %v2466 = vpack.c.bf16 %v2449, %v2448
      %v2467 = vpack.c.bf16 %v2451, %v2450
      %v2484 = vunpack.c.l.b16 %v2452
      %v2485 = vunpack.c.h.b16 %v2452
      %v2486 = vunpack.c.l.b16 %v2453
      %v2487 = vunpack.c.h.b16 %v2453
      %v2488 = vunpack.c.l.b16 %v2454
      %v2489 = vunpack.c.h.b16 %v2454
      %v2490 = vunpack.c.l.b16 %v2455
      %v2491 = vunpack.c.h.b16 %v2455
      %v2492 = vunpack.c.l.b16 %v2456
      %v2493 = vunpack.c.h.b16 %v2456
      %v2494 = vunpack.c.l.b16 %v2457
      %v2495 = vunpack.c.h.b16 %v2457
      %v2496 = vunpack.c.l.b16 %v2458
      %v2497 = vunpack.c.h.b16 %v2458
      %v2498 = vunpack.c.l.b16 %v2459
      %v2499 = vunpack.c.h.b16 %v2459
      %v2500 = vunpack.c.l.b16 %v2460
      %v2501 = vunpack.c.h.b16 %v2460
      %v2502 = vunpack.c.l.b16 %v2461
      %v2503 = vunpack.c.h.b16 %v2461
      %v2504 = vunpack.c.l.b16 %v2462
      %v2505 = vunpack.c.h.b16 %v2462
      %v2506 = vunpack.c.l.b16 %v2463
      %v2507 = vunpack.c.h.b16 %v2463
      %v2508 = vunpack.c.l.b16 %v2464
      %v2509 = vunpack.c.h.b16 %v2464
      %v2510 = vunpack.c.l.b16 %v2465
      %v2511 = vunpack.c.h.b16 %v2465
      %v2512 = vunpack.c.l.b16 %v2466
      %v2513 = vunpack.c.h.b16 %v2466
      %v2514 = vunpack.c.l.b16 %v2467
      %v2515 = vunpack.c.h.b16 %v2467
      %v2516 = vpack.c.b16 %v2484, %v2484
      %v2517 = vpack.c.b16 %v2485, %v2485
      %v2518 = vpack.c.b16 %v2486, %v2486
      %v2519 = vpack.c.b16 %v2487, %v2487
      %v2520 = vpack.c.b16 %v2488, %v2488
      %v2521 = vpack.c.b16 %v2489, %v2489
      %v2522 = vpack.c.b16 %v2490, %v2490
      %v2523 = vpack.c.b16 %v2491, %v2491
      %v2524 = vpack.c.b16 %v2492, %v2492
      %v2525 = vpack.c.b16 %v2493, %v2493
      %v2526 = vpack.c.b16 %v2494, %v2494
      %v2527 = vpack.c.b16 %v2495, %v2495
      %v2528 = vpack.c.b16 %v2496, %v2496
      %v2529 = vpack.c.b16 %v2497, %v2497
      %v2530 = vpack.c.b16 %v2498, %v2498
      %v2531 = vpack.c.b16 %v2499, %v2499
      %v2532 = vpack.c.b16 %v2500, %v2500
      %v2533 = vpack.c.b16 %v2501, %v2501
      %v2534 = vpack.c.b16 %v2502, %v2502
      %v2535 = vpack.c.b16 %v2503, %v2503
      %v2536 = vpack.c.b16 %v2504, %v2504
      %v2537 = vpack.c.b16 %v2505, %v2505
      %v2538 = vpack.c.b16 %v2506, %v2506
      %v2539 = vpack.c.b16 %v2507, %v2507
      %v2540 = vpack.c.b16 %v2508, %v2508
      %v2541 = vpack.c.b16 %v2509, %v2509
      %v2542 = vpack.c.b16 %v2510, %v2510
      %v2543 = vpack.c.b16 %v2511, %v2511
      %v2544 = vpack.c.b16 %v2512, %v2512
      %v2545 = vpack.c.b16 %v2513, %v2513
      %v2546 = vpack.c.b16 %v2514, %v2514
      %v2547 = vpack.c.b16 %v2515, %v2515
      %vm2580 = vcmask 60416
      %2581 = vst.msk [vmem:[%s387] sm:$0xf] %vm2580, %v2516
      %2582 = vst.msk [vmem:[%s387 + $0x4] sm:$0xf] %vm2580, %v2517
      %2583 = vst.msk [vmem:[%s387 + $0x8] sm:$0xf] %vm2580, %v2518
      %2584 = vst.msk [vmem:[%s387 + $0xc] sm:$0xf] %vm2580, %v2519
      %2585 = vst.msk [vmem:[%s387 + $0x10] sm:$0xf] %vm2580, %v2520
      %2586 = vst.msk [vmem:[%s387 + $0x14] sm:$0xf] %vm2580, %v2521
      %2587 = vst.msk [vmem:[%s387 + $0x18] sm:$0xf] %vm2580, %v2522
      %2588 = vst.msk [vmem:[%s387 + $0x1c] sm:$0xf] %vm2580, %v2523
      %2589 = vst.msk [vmem:[%s387 + $0x20] sm:$0xf] %vm2580, %v2524
      %2590 = vst.msk [vmem:[%s387 + $0x24] sm:$0xf] %vm2580, %v2525
      %2591 = vst.msk [vmem:[%s387 + $0x28] sm:$0xf] %vm2580, %v2526
      %2592 = vst.msk [vmem:[%s387 + $0x2c] sm:$0xf] %vm2580, %v2527
      %2593 = vst.msk [vmem:[%s387 + $0x30] sm:$0xf] %vm2580, %v2528
      %2594 = vst.msk [vmem:[%s387 + $0x34] sm:$0xf] %vm2580, %v2529
      %2595 = vst.msk [vmem:[%s387 + $0x38] sm:$0xf] %vm2580, %v2530
      %2596 = vst.msk [vmem:[%s387 + $0x3c] sm:$0xf] %vm2580, %v2531
      %2597 = vst.msk [vmem:[%s387 + $0x40] sm:$0xf] %vm2580, %v2532
      %2598 = vst.msk [vmem:[%s387 + $0x44] sm:$0xf] %vm2580, %v2533
      %2599 = vst.msk [vmem:[%s387 + $0x48] sm:$0xf] %vm2580, %v2534
      %2600 = vst.msk [vmem:[%s387 + $0x4c] sm:$0xf] %vm2580, %v2535
      %2601 = vst.msk [vmem:[%s387 + $0x50] sm:$0xf] %vm2580, %v2536
      %2602 = vst.msk [vmem:[%s387 + $0x54] sm:$0xf] %vm2580, %v2537
      %2603 = vst.msk [vmem:[%s387 + $0x58] sm:$0xf] %vm2580, %v2538
      %2604 = vst.msk [vmem:[%s387 + $0x5c] sm:$0xf] %vm2580, %v2539
      %2605 = vst.msk [vmem:[%s387 + $0x60] sm:$0xf] %vm2580, %v2540
      %2606 = vst.msk [vmem:[%s387 + $0x64] sm:$0xf] %vm2580, %v2541
      %2607 = vst.msk [vmem:[%s387 + $0x68] sm:$0xf] %vm2580, %v2542
      %2608 = vst.msk [vmem:[%s387 + $0x6c] sm:$0xf] %vm2580, %v2543
      %2609 = vst.msk [vmem:[%s387 + $0x70] sm:$0xf] %vm2580, %v2544
      %2610 = vst.msk [vmem:[%s387 + $0x74] sm:$0xf] %vm2580, %v2545
      %2611 = vst.msk [vmem:[%s387 + $0x78] sm:$0xf] %vm2580, %v2546
      %2612 = vst.msk [vmem:[%s387 + $0x7c] sm:$0xf] %vm2580, %v2547
      %2645 = vrot.lane.b32.xlu0 %v1843, 96
      %v2646 = vpop.permute.xlu0 %2645
      %2647 = vrot.lane.b32.xlu0 %v1844, 96
      %v2648 = vpop.permute.xlu0 %2647
      %2649 = vrot.lane.b32.xlu0 %v1845, 96
      %v2650 = vpop.permute.xlu0 %2649
      %2651 = vrot.lane.b32.xlu0 %v1846, 96
      %v2652 = vpop.permute.xlu0 %2651
      %2653 = vrot.lane.b32.xlu0 %v1847, 96
      %v2654 = vpop.permute.xlu0 %2653
      %2655 = vrot.lane.b32.xlu0 %v1848, 96
      %v2656 = vpop.permute.xlu0 %2655
      %2657 = vrot.lane.b32.xlu0 %v1849, 96
      %v2658 = vpop.permute.xlu0 %2657
      %2659 = vrot.lane.b32.xlu0 %v1850, 96
      %v2660 = vpop.permute.xlu0 %2659
      %2661 = vrot.lane.b32.xlu0 %v1851, 96
      %v2662 = vpop.permute.xlu0 %2661
      %2663 = vrot.lane.b32.xlu0 %v1852, 96
      %v2664 = vpop.permute.xlu0 %2663
      %2665 = vrot.lane.b32.xlu0 %v1853, 96
      %v2666 = vpop.permute.xlu0 %2665
      %2667 = vrot.lane.b32.xlu0 %v1854, 96
      %v2668 = vpop.permute.xlu0 %2667
      %2669 = vrot.lane.b32.xlu0 %v1855, 96
      %v2670 = vpop.permute.xlu0 %2669
      %2671 = vrot.lane.b32.xlu0 %v1856, 96
      %v2672 = vpop.permute.xlu0 %2671
      %2673 = vrot.lane.b32.xlu0 %v1857, 96
      %v2674 = vpop.permute.xlu0 %2673
      %2675 = vrot.lane.b32.xlu0 %v1858, 96
      %v2676 = vpop.permute.xlu0 %2675
      %2677 = vrot.lane.b32.xlu0 %v1859, 96
      %v2678 = vpop.permute.xlu0 %2677
      %2679 = vrot.lane.b32.xlu0 %v1860, 96
      %v2680 = vpop.permute.xlu0 %2679
      %2681 = vrot.lane.b32.xlu0 %v1861, 96
      %v2682 = vpop.permute.xlu0 %2681
      %2683 = vrot.lane.b32.xlu0 %v1862, 96
      %v2684 = vpop.permute.xlu0 %2683
      %2685 = vrot.lane.b32.xlu0 %v1863, 96
      %v2686 = vpop.permute.xlu0 %2685
      %2687 = vrot.lane.b32.xlu0 %v1864, 96
      %v2688 = vpop.permute.xlu0 %2687
      %2689 = vrot.lane.b32.xlu0 %v1865, 96
      %v2690 = vpop.permute.xlu0 %2689
      %2691 = vrot.lane.b32.xlu0 %v1866, 96
      %v2692 = vpop.permute.xlu0 %2691
      %2693 = vrot.lane.b32.xlu0 %v1867, 96
      %v2694 = vpop.permute.xlu0 %2693
      %2695 = vrot.lane.b32.xlu0 %v1868, 96
      %v2696 = vpop.permute.xlu0 %2695
      %2697 = vrot.lane.b32.xlu0 %v1869, 96
      %v2698 = vpop.permute.xlu0 %2697
      %2699 = vrot.lane.b32.xlu0 %v1870, 96
      %v2700 = vpop.permute.xlu0 %2699
      %2701 = vrot.lane.b32.xlu0 %v1871, 96
      %v2702 = vpop.permute.xlu0 %2701
      %2703 = vrot.lane.b32.xlu0 %v1872, 96
      %v2704 = vpop.permute.xlu0 %2703
      %2705 = vrot.lane.b32.xlu0 %v1873, 96
      %v2706 = vpop.permute.xlu0 %2705
      %2707 = vrot.lane.b32.xlu0 %v1874, 96
      %v2708 = vpop.permute.xlu0 %2707
      %2773 = vrot.lane.b32.xlu0 %v2259, 100
      %v2774 = vpop.permute.xlu0 %2773
      %2775 = vrot.lane.b32.xlu0 %v2260, 100
      %v2776 = vpop.permute.xlu0 %2775
      %2777 = vrot.lane.b32.xlu0 %v2261, 100
      %v2778 = vpop.permute.xlu0 %2777
      %2779 = vrot.lane.b32.xlu0 %v2262, 100
      %v2780 = vpop.permute.xlu0 %2779
      %2781 = vrot.lane.b32.xlu0 %v2263, 100
      %v2782 = vpop.permute.xlu0 %2781
      %2783 = vrot.lane.b32.xlu0 %v2264, 100
      %v2784 = vpop.permute.xlu0 %2783
      %2785 = vrot.lane.b32.xlu0 %v2265, 100
      %v2786 = vpop.permute.xlu0 %2785
      %2787 = vrot.lane.b32.xlu0 %v2266, 100
      %v2788 = vpop.permute.xlu0 %2787
      %2789 = vrot.lane.b32.xlu0 %v2267, 100
      %v2790 = vpop.permute.xlu0 %2789
      %2791 = vrot.lane.b32.xlu0 %v2268, 100
      %v2792 = vpop.permute.xlu0 %2791
      %2793 = vrot.lane.b32.xlu0 %v2269, 100
      %v2794 = vpop.permute.xlu0 %2793
      %2795 = vrot.lane.b32.xlu0 %v2270, 100
      %v2796 = vpop.permute.xlu0 %2795
      %2797 = vrot.lane.b32.xlu0 %v2271, 100
      %v2798 = vpop.permute.xlu0 %2797
      %2799 = vrot.lane.b32.xlu0 %v2272, 100
      %v2800 = vpop.permute.xlu0 %2799
      %2801 = vrot.lane.b32.xlu0 %v2273, 100
      %v2802 = vpop.permute.xlu0 %2801
      %2803 = vrot.lane.b32.xlu0 %v2274, 100
      %v2804 = vpop.permute.xlu0 %2803
      %2805 = vrot.lane.b32.xlu0 %v2275, 100
      %v2806 = vpop.permute.xlu0 %2805
      %2807 = vrot.lane.b32.xlu0 %v2276, 100
      %v2808 = vpop.permute.xlu0 %2807
      %2809 = vrot.lane.b32.xlu0 %v2277, 100
      %v2810 = vpop.permute.xlu0 %2809
      %2811 = vrot.lane.b32.xlu0 %v2278, 100
      %v2812 = vpop.permute.xlu0 %2811
      %2813 = vrot.lane.b32.xlu0 %v2279, 100
      %v2814 = vpop.permute.xlu0 %2813
      %2815 = vrot.lane.b32.xlu0 %v2280, 100
      %v2816 = vpop.permute.xlu0 %2815
      %2817 = vrot.lane.b32.xlu0 %v2281, 100
      %v2818 = vpop.permute.xlu0 %2817
      %2819 = vrot.lane.b32.xlu0 %v2282, 100
      %v2820 = vpop.permute.xlu0 %2819
      %2821 = vrot.lane.b32.xlu0 %v2283, 100
      %v2822 = vpop.permute.xlu0 %2821
      %2823 = vrot.lane.b32.xlu0 %v2284, 100
      %v2824 = vpop.permute.xlu0 %2823
      %2825 = vrot.lane.b32.xlu0 %v2285, 100
      %v2826 = vpop.permute.xlu0 %2825
      %2827 = vrot.lane.b32.xlu0 %v2286, 100
      %v2828 = vpop.permute.xlu0 %2827
      %2829 = vrot.lane.b32.xlu0 %v2287, 100
      %v2830 = vpop.permute.xlu0 %2829
      %2831 = vrot.lane.b32.xlu0 %v2288, 100
      %v2832 = vpop.permute.xlu0 %2831
      %2833 = vrot.lane.b32.xlu0 %v2289, 100
      %v2834 = vpop.permute.xlu0 %2833
      %2835 = vrot.lane.b32.xlu0 %v2290, 100
      %v2836 = vpop.permute.xlu0 %2835
      %v2869 = vsel %vm2419, %v2646, %v2774
      %v2870 = vsel %vm2419, %v2648, %v2776
      %v2871 = vsel %vm2419, %v2650, %v2778
      %v2872 = vsel %vm2419, %v2652, %v2780
      %v2873 = vsel %vm2419, %v2654, %v2782
      %v2874 = vsel %vm2419, %v2656, %v2784
      %v2875 = vsel %vm2419, %v2658, %v2786
      %v2876 = vsel %vm2419, %v2660, %v2788
      %v2877 = vsel %vm2419, %v2662, %v2790
      %v2878 = vsel %vm2419, %v2664, %v2792
      %v2879 = vsel %vm2419, %v2666, %v2794
      %v2880 = vsel %vm2419, %v2668, %v2796
      %v2881 = vsel %vm2419, %v2670, %v2798
      %v2882 = vsel %vm2419, %v2672, %v2800
      %v2883 = vsel %vm2419, %v2674, %v2802
      %v2884 = vsel %vm2419, %v2676, %v2804
      %v2885 = vsel %vm2419, %v2678, %v2806
      %v2886 = vsel %vm2419, %v2680, %v2808
      %v2887 = vsel %vm2419, %v2682, %v2810
      %v2888 = vsel %vm2419, %v2684, %v2812
      %v2889 = vsel %vm2419, %v2686, %v2814
      %v2890 = vsel %vm2419, %v2688, %v2816
      %v2891 = vsel %vm2419, %v2690, %v2818
      %v2892 = vsel %vm2419, %v2692, %v2820
      %v2893 = vsel %vm2419, %v2694, %v2822
      %v2894 = vsel %vm2419, %v2696, %v2824
      %v2895 = vsel %vm2419, %v2698, %v2826
      %v2896 = vsel %vm2419, %v2700, %v2828
      %v2897 = vsel %vm2419, %v2702, %v2830
      %v2898 = vsel %vm2419, %v2704, %v2832
      %v2899 = vsel %vm2419, %v2706, %v2834
      %v2900 = vsel %vm2419, %v2708, %v2836
      %v2901 = vpack.c.bf16 %v2870, %v2869
      %v2902 = vpack.c.bf16 %v2872, %v2871
      %v2903 = vpack.c.bf16 %v2874, %v2873
      %v2904 = vpack.c.bf16 %v2876, %v2875
      %v2905 = vpack.c.bf16 %v2878, %v2877
      %v2906 = vpack.c.bf16 %v2880, %v2879
      %v2907 = vpack.c.bf16 %v2882, %v2881
      %v2908 = vpack.c.bf16 %v2884, %v2883
      %v2909 = vpack.c.bf16 %v2886, %v2885
      %v2910 = vpack.c.bf16 %v2888, %v2887
      %v2911 = vpack.c.bf16 %v2890, %v2889
      %v2912 = vpack.c.bf16 %v2892, %v2891
      %v2913 = vpack.c.bf16 %v2894, %v2893
      %v2914 = vpack.c.bf16 %v2896, %v2895
      %v2915 = vpack.c.bf16 %v2898, %v2897
      %v2916 = vpack.c.bf16 %v2900, %v2899
      %v2933 = vunpack.c.l.b16 %v2901
      %v2934 = vunpack.c.h.b16 %v2901
      %v2935 = vunpack.c.l.b16 %v2902
      %v2936 = vunpack.c.h.b16 %v2902
      %v2937 = vunpack.c.l.b16 %v2903
      %v2938 = vunpack.c.h.b16 %v2903
      %v2939 = vunpack.c.l.b16 %v2904
      %v2940 = vunpack.c.h.b16 %v2904
      %v2941 = vunpack.c.l.b16 %v2905
      %v2942 = vunpack.c.h.b16 %v2905
      %v2943 = vunpack.c.l.b16 %v2906
      %v2944 = vunpack.c.h.b16 %v2906
      %v2945 = vunpack.c.l.b16 %v2907
      %v2946 = vunpack.c.h.b16 %v2907
      %v2947 = vunpack.c.l.b16 %v2908
      %v2948 = vunpack.c.h.b16 %v2908
      %v2949 = vunpack.c.l.b16 %v2909
      %v2950 = vunpack.c.h.b16 %v2909
      %v2951 = vunpack.c.l.b16 %v2910
      %v2952 = vunpack.c.h.b16 %v2910
      %v2953 = vunpack.c.l.b16 %v2911
      %v2954 = vunpack.c.h.b16 %v2911
      %v2955 = vunpack.c.l.b16 %v2912
      %v2956 = vunpack.c.h.b16 %v2912
      %v2957 = vunpack.c.l.b16 %v2913
      %v2958 = vunpack.c.h.b16 %v2913
      %v2959 = vunpack.c.l.b16 %v2914
      %v2960 = vunpack.c.h.b16 %v2914
      %v2961 = vunpack.c.l.b16 %v2915
      %v2962 = vunpack.c.h.b16 %v2915
      %v2963 = vunpack.c.l.b16 %v2916
      %v2964 = vunpack.c.h.b16 %v2916
      %v2965 = vpack.c.b16 %v2933, %v2933
      %v2966 = vpack.c.b16 %v2934, %v2934
      %v2967 = vpack.c.b16 %v2935, %v2935
      %v2968 = vpack.c.b16 %v2936, %v2936
      %v2969 = vpack.c.b16 %v2937, %v2937
      %v2970 = vpack.c.b16 %v2938, %v2938
      %v2971 = vpack.c.b16 %v2939, %v2939
      %v2972 = vpack.c.b16 %v2940, %v2940
      %v2973 = vpack.c.b16 %v2941, %v2941
      %v2974 = vpack.c.b16 %v2942, %v2942
      %v2975 = vpack.c.b16 %v2943, %v2943
      %v2976 = vpack.c.b16 %v2944, %v2944
      %v2977 = vpack.c.b16 %v2945, %v2945
      %v2978 = vpack.c.b16 %v2946, %v2946
      %v2979 = vpack.c.b16 %v2947, %v2947
      %v2980 = vpack.c.b16 %v2948, %v2948
      %v2981 = vpack.c.b16 %v2949, %v2949
      %v2982 = vpack.c.b16 %v2950, %v2950
      %v2983 = vpack.c.b16 %v2951, %v2951
      %v2984 = vpack.c.b16 %v2952, %v2952
      %v2985 = vpack.c.b16 %v2953, %v2953
      %v2986 = vpack.c.b16 %v2954, %v2954
      %v2987 = vpack.c.b16 %v2955, %v2955
      %v2988 = vpack.c.b16 %v2956, %v2956
      %v2989 = vpack.c.b16 %v2957, %v2957
      %v2990 = vpack.c.b16 %v2958, %v2958
      %v2991 = vpack.c.b16 %v2959, %v2959
      %v2992 = vpack.c.b16 %v2960, %v2960
      %v2993 = vpack.c.b16 %v2961, %v2961
      %v2994 = vpack.c.b16 %v2962, %v2962
      %v2995 = vpack.c.b16 %v2963, %v2963
      %v2996 = vpack.c.b16 %v2964, %v2964
      %3029 = vst.msk [vmem:[%s397] sm:$0xf] %vm2580, %v2965
      %3030 = vst.msk [vmem:[%s397 + $0x4] sm:$0xf] %vm2580, %v2966
      %3031 = vst.msk [vmem:[%s397 + $0x8] sm:$0xf] %vm2580, %v2967
      %3032 = vst.msk [vmem:[%s397 + $0xc] sm:$0xf] %vm2580, %v2968
      %3033 = vst.msk [vmem:[%s397 + $0x10] sm:$0xf] %vm2580, %v2969
      %3034 = vst.msk [vmem:[%s397 + $0x14] sm:$0xf] %vm2580, %v2970
      %3035 = vst.msk [vmem:[%s397 + $0x18] sm:$0xf] %vm2580, %v2971
      %3036 = vst.msk [vmem:[%s397 + $0x1c] sm:$0xf] %vm2580, %v2972
      %3037 = vst.msk [vmem:[%s397 + $0x20] sm:$0xf] %vm2580, %v2973
      %3038 = vst.msk [vmem:[%s397 + $0x24] sm:$0xf] %vm2580, %v2974
      %3039 = vst.msk [vmem:[%s397 + $0x28] sm:$0xf] %vm2580, %v2975
      %3040 = vst.msk [vmem:[%s397 + $0x2c] sm:$0xf] %vm2580, %v2976
      %3041 = vst.msk [vmem:[%s397 + $0x30] sm:$0xf] %vm2580, %v2977
      %3042 = vst.msk [vmem:[%s397 + $0x34] sm:$0xf] %vm2580, %v2978
      %3043 = vst.msk [vmem:[%s397 + $0x38] sm:$0xf] %vm2580, %v2979
      %3044 = vst.msk [vmem:[%s397 + $0x3c] sm:$0xf] %vm2580, %v2980
      %3045 = vst.msk [vmem:[%s397 + $0x40] sm:$0xf] %vm2580, %v2981
      %3046 = vst.msk [vmem:[%s397 + $0x44] sm:$0xf] %vm2580, %v2982
      %3047 = vst.msk [vmem:[%s397 + $0x48] sm:$0xf] %vm2580, %v2983
      %3048 = vst.msk [vmem:[%s397 + $0x4c] sm:$0xf] %vm2580, %v2984
      %3049 = vst.msk [vmem:[%s397 + $0x50] sm:$0xf] %vm2580, %v2985
      %3050 = vst.msk [vmem:[%s397 + $0x54] sm:$0xf] %vm2580, %v2986
      %3051 = vst.msk [vmem:[%s397 + $0x58] sm:$0xf] %vm2580, %v2987
      %3052 = vst.msk [vmem:[%s397 + $0x5c] sm:$0xf] %vm2580, %v2988
      %3053 = vst.msk [vmem:[%s397 + $0x60] sm:$0xf] %vm2580, %v2989
      %3054 = vst.msk [vmem:[%s397 + $0x64] sm:$0xf] %vm2580, %v2990
      %3055 = vst.msk [vmem:[%s397 + $0x68] sm:$0xf] %vm2580, %v2991
      %3056 = vst.msk [vmem:[%s397 + $0x6c] sm:$0xf] %vm2580, %v2992
      %3057 = vst.msk [vmem:[%s397 + $0x70] sm:$0xf] %vm2580, %v2993
      %3058 = vst.msk [vmem:[%s397 + $0x74] sm:$0xf] %vm2580, %v2994
      %3059 = vst.msk [vmem:[%s397 + $0x78] sm:$0xf] %vm2580, %v2995
      %3060 = vst.msk [vmem:[%s397 + $0x7c] sm:$0xf] %vm2580, %v2996
      %v3061 = vpack.c.bf16 %v568, %v565
      %v3062 = vpack.c.bf16 %v576, %v573
      %v3063 = vpack.c.bf16 %v584, %v581
      %v3064 = vpack.c.bf16 %v592, %v589
      %v3065 = vpack.c.bf16 %v600, %v597
      %v3066 = vpack.c.bf16 %v608, %v605
      %v3067 = vpack.c.bf16 %v616, %v613
      %v3068 = vpack.c.bf16 %v624, %v621
      %v3069 = vpack.c.bf16 %v632, %v629
      %v3070 = vpack.c.bf16 %v640, %v637
      %v3071 = vpack.c.bf16 %v648, %v645
      %v3072 = vpack.c.bf16 %v656, %v653
      %v3073 = vpack.c.bf16 %v664, %v661
      %v3074 = vpack.c.bf16 %v672, %v669
      %v3075 = vpack.c.bf16 %v680, %v677
      %v3076 = vpack.c.bf16 %v688, %v685
      %v3093 = vunpack.c.l.b16 %v3061
      %v3094 = vunpack.c.h.b16 %v3061
      %v3095 = vunpack.c.l.b16 %v3062
      %v3096 = vunpack.c.h.b16 %v3062
      %v3097 = vunpack.c.l.b16 %v3063
      %v3098 = vunpack.c.h.b16 %v3063
      %v3099 = vunpack.c.l.b16 %v3064
      %v3100 = vunpack.c.h.b16 %v3064
      %v3101 = vunpack.c.l.b16 %v3065
      %v3102 = vunpack.c.h.b16 %v3065
      %v3103 = vunpack.c.l.b16 %v3066
      %v3104 = vunpack.c.h.b16 %v3066
      %v3105 = vunpack.c.l.b16 %v3067
      %v3106 = vunpack.c.h.b16 %v3067
      %v3107 = vunpack.c.l.b16 %v3068
      %v3108 = vunpack.c.h.b16 %v3068
      %v3109 = vunpack.c.l.b16 %v3069
      %v3110 = vunpack.c.h.b16 %v3069
      %v3111 = vunpack.c.l.b16 %v3070
      %v3112 = vunpack.c.h.b16 %v3070
      %v3113 = vunpack.c.l.b16 %v3071
      %v3114 = vunpack.c.h.b16 %v3071
      %v3115 = vunpack.c.l.b16 %v3072
      %v3116 = vunpack.c.h.b16 %v3072
      %v3117 = vunpack.c.l.b16 %v3073
      %v3118 = vunpack.c.h.b16 %v3073
      %v3119 = vunpack.c.l.b16 %v3074
      %v3120 = vunpack.c.h.b16 %v3074
      %v3121 = vunpack.c.l.b16 %v3075
      %v3122 = vunpack.c.h.b16 %v3075
      %v3123 = vunpack.c.l.b16 %v3076
      %v3124 = vunpack.c.h.b16 %v3076
      %v3125 = vpack.c.b16 %v3093, %v3093
      %v3126 = vpack.c.b16 %v3094, %v3094
      %v3127 = vpack.c.b16 %v3095, %v3095
      %v3128 = vpack.c.b16 %v3096, %v3096
      %v3129 = vpack.c.b16 %v3097, %v3097
      %v3130 = vpack.c.b16 %v3098, %v3098
      %v3131 = vpack.c.b16 %v3099, %v3099
      %v3132 = vpack.c.b16 %v3100, %v3100
      %v3133 = vpack.c.b16 %v3101, %v3101
      %v3134 = vpack.c.b16 %v3102, %v3102
      %v3135 = vpack.c.b16 %v3103, %v3103
      %v3136 = vpack.c.b16 %v3104, %v3104
      %v3137 = vpack.c.b16 %v3105, %v3105
      %v3138 = vpack.c.b16 %v3106, %v3106
      %v3139 = vpack.c.b16 %v3107, %v3107
      %v3140 = vpack.c.b16 %v3108, %v3108
      %v3141 = vpack.c.b16 %v3109, %v3109
      %v3142 = vpack.c.b16 %v3110, %v3110
      %v3143 = vpack.c.b16 %v3111, %v3111
      %v3144 = vpack.c.b16 %v3112, %v3112
      %v3145 = vpack.c.b16 %v3113, %v3113
      %v3146 = vpack.c.b16 %v3114, %v3114
      %v3147 = vpack.c.b16 %v3115, %v3115
      %v3148 = vpack.c.b16 %v3116, %v3116
      %v3149 = vpack.c.b16 %v3117, %v3117
      %v3150 = vpack.c.b16 %v3118, %v3118
      %v3151 = vpack.c.b16 %v3119, %v3119
      %v3152 = vpack.c.b16 %v3120, %v3120
      %v3153 = vpack.c.b16 %v3121, %v3121
      %v3154 = vpack.c.b16 %v3122, %v3122
      %v3155 = vpack.c.b16 %v3123, %v3123
      %v3156 = vpack.c.b16 %v3124, %v3124
      %3157 = vrot.lane.b32.xlu0 %v3125, 64
      %v3158 = vpop.permute.xlu0 %3157
      %3159 = vrot.lane.b32.xlu0 %v3126, 64
      %v3160 = vpop.permute.xlu0 %3159
      %3161 = vrot.lane.b32.xlu0 %v3127, 64
      %v3162 = vpop.permute.xlu0 %3161
      %3163 = vrot.lane.b32.xlu0 %v3128, 64
      %v3164 = vpop.permute.xlu0 %3163
      %3165 = vrot.lane.b32.xlu0 %v3129, 64
      %v3166 = vpop.permute.xlu0 %3165
      %3167 = vrot.lane.b32.xlu0 %v3130, 64
      %v3168 = vpop.permute.xlu0 %3167
      %3169 = vrot.lane.b32.xlu0 %v3131, 64
      %v3170 = vpop.permute.xlu0 %3169
      %3171 = vrot.lane.b32.xlu0 %v3132, 64
      %v3172 = vpop.permute.xlu0 %3171
      %3173 = vrot.lane.b32.xlu0 %v3133, 64
      %v3174 = vpop.permute.xlu0 %3173
      %3175 = vrot.lane.b32.xlu0 %v3134, 64
      %v3176 = vpop.permute.xlu0 %3175
      %3177 = vrot.lane.b32.xlu0 %v3135, 64
      %v3178 = vpop.permute.xlu0 %3177
      %3179 = vrot.lane.b32.xlu0 %v3136, 64
      %v3180 = vpop.permute.xlu0 %3179
      %3181 = vrot.lane.b32.xlu0 %v3137, 64
      %v3182 = vpop.permute.xlu0 %3181
      %3183 = vrot.lane.b32.xlu0 %v3138, 64
      %v3184 = vpop.permute.xlu0 %3183
      %3185 = vrot.lane.b32.xlu0 %v3139, 64
      %v3186 = vpop.permute.xlu0 %3185
      %3187 = vrot.lane.b32.xlu0 %v3140, 64
      %v3188 = vpop.permute.xlu0 %3187
      %3189 = vrot.lane.b32.xlu0 %v3141, 64
      %v3190 = vpop.permute.xlu0 %3189
      %3191 = vrot.lane.b32.xlu0 %v3142, 64
      %v3192 = vpop.permute.xlu0 %3191
      %3193 = vrot.lane.b32.xlu0 %v3143, 64
      %v3194 = vpop.permute.xlu0 %3193
      %3195 = vrot.lane.b32.xlu0 %v3144, 64
      %v3196 = vpop.permute.xlu0 %3195
      %3197 = vrot.lane.b32.xlu0 %v3145, 64
      %v3198 = vpop.permute.xlu0 %3197
      %3199 = vrot.lane.b32.xlu0 %v3146, 64
      %v3200 = vpop.permute.xlu0 %3199
      %3201 = vrot.lane.b32.xlu0 %v3147, 64
      %v3202 = vpop.permute.xlu0 %3201
      %3203 = vrot.lane.b32.xlu0 %v3148, 64
      %v3204 = vpop.permute.xlu0 %3203
      %3205 = vrot.lane.b32.xlu0 %v3149, 64
      %v3206 = vpop.permute.xlu0 %3205
      %3207 = vrot.lane.b32.xlu0 %v3150, 64
      %v3208 = vpop.permute.xlu0 %3207
      %3209 = vrot.lane.b32.xlu0 %v3151, 64
      %v3210 = vpop.permute.xlu0 %3209
      %3211 = vrot.lane.b32.xlu0 %v3152, 64
      %v3212 = vpop.permute.xlu0 %3211
      %3213 = vrot.lane.b32.xlu0 %v3153, 64
      %v3214 = vpop.permute.xlu0 %3213
      %3215 = vrot.lane.b32.xlu0 %v3154, 64
      %v3216 = vpop.permute.xlu0 %3215
      %3217 = vrot.lane.b32.xlu0 %v3155, 64
      %v3218 = vpop.permute.xlu0 %3217
      %3219 = vrot.lane.b32.xlu0 %v3156, 64
      %v3220 = vpop.permute.xlu0 %3219
      %3253 = vst.msk [vmem:[%s407] sm:$0xf] %vm2580, %v3158
      %3254 = vst.msk [vmem:[%s407 + $0x4] sm:$0xf] %vm2580, %v3160
      %3255 = vst.msk [vmem:[%s407 + $0x8] sm:$0xf] %vm2580, %v3162
      %3256 = vst.msk [vmem:[%s407 + $0xc] sm:$0xf] %vm2580, %v3164
      %3257 = vst.msk [vmem:[%s407 + $0x10] sm:$0xf] %vm2580, %v3166
      %3258 = vst.msk [vmem:[%s407 + $0x14] sm:$0xf] %vm2580, %v3168
      %3259 = vst.msk [vmem:[%s407 + $0x18] sm:$0xf] %vm2580, %v3170
      %3260 = vst.msk [vmem:[%s407 + $0x1c] sm:$0xf] %vm2580, %v3172
      %3261 = vst.msk [vmem:[%s407 + $0x20] sm:$0xf] %vm2580, %v3174
      %3262 = vst.msk [vmem:[%s407 + $0x24] sm:$0xf] %vm2580, %v3176
      %3263 = vst.msk [vmem:[%s407 + $0x28] sm:$0xf] %vm2580, %v3178
      %3264 = vst.msk [vmem:[%s407 + $0x2c] sm:$0xf] %vm2580, %v3180
      %3265 = vst.msk [vmem:[%s407 + $0x30] sm:$0xf] %vm2580, %v3182
      %3266 = vst.msk [vmem:[%s407 + $0x34] sm:$0xf] %vm2580, %v3184
      %3267 = vst.msk [vmem:[%s407 + $0x38] sm:$0xf] %vm2580, %v3186
      %3268 = vst.msk [vmem:[%s407 + $0x3c] sm:$0xf] %vm2580, %v3188
      %3269 = vst.msk [vmem:[%s407 + $0x40] sm:$0xf] %vm2580, %v3190
      %3270 = vst.msk [vmem:[%s407 + $0x44] sm:$0xf] %vm2580, %v3192
      %3271 = vst.msk [vmem:[%s407 + $0x48] sm:$0xf] %vm2580, %v3194
      %3272 = vst.msk [vmem:[%s407 + $0x4c] sm:$0xf] %vm2580, %v3196
      %3273 = vst.msk [vmem:[%s407 + $0x50] sm:$0xf] %vm2580, %v3198
      %3274 = vst.msk [vmem:[%s407 + $0x54] sm:$0xf] %vm2580, %v3200
      %3275 = vst.msk [vmem:[%s407 + $0x58] sm:$0xf] %vm2580, %v3202
      %3276 = vst.msk [vmem:[%s407 + $0x5c] sm:$0xf] %vm2580, %v3204
      %3277 = vst.msk [vmem:[%s407 + $0x60] sm:$0xf] %vm2580, %v3206
      %3278 = vst.msk [vmem:[%s407 + $0x64] sm:$0xf] %vm2580, %v3208
      %3279 = vst.msk [vmem:[%s407 + $0x68] sm:$0xf] %vm2580, %v3210
      %3280 = vst.msk [vmem:[%s407 + $0x6c] sm:$0xf] %vm2580, %v3212
      %3281 = vst.msk [vmem:[%s407 + $0x70] sm:$0xf] %vm2580, %v3214
      %3282 = vst.msk [vmem:[%s407 + $0x74] sm:$0xf] %vm2580, %v3216
      %3283 = vst.msk [vmem:[%s407 + $0x78] sm:$0xf] %vm2580, %v3218
      %3284 = vst.msk [vmem:[%s407 + $0x7c] sm:$0xf] %vm2580, %v3220
      %3317 = vrot.lane.b32.xlu0 %v1075, 124
      %v3318 = vpop.permute.xlu0 %3317
      %3319 = vrot.lane.b32.xlu0 %v1076, 124
      %v3320 = vpop.permute.xlu0 %3319
      %3321 = vrot.lane.b32.xlu0 %v1077, 124
      %v3322 = vpop.permute.xlu0 %3321
      %3323 = vrot.lane.b32.xlu0 %v1078, 124
      %v3324 = vpop.permute.xlu0 %3323
      %3325 = vrot.lane.b32.xlu0 %v1079, 124
      %v3326 = vpop.permute.xlu0 %3325
      %3327 = vrot.lane.b32.xlu0 %v1080, 124
      %v3328 = vpop.permute.xlu0 %3327
      %3329 = vrot.lane.b32.xlu0 %v1081, 124
      %v3330 = vpop.permute.xlu0 %3329
      %3331 = vrot.lane.b32.xlu0 %v1082, 124
      %v3332 = vpop.permute.xlu0 %3331
      %3333 = vrot.lane.b32.xlu0 %v1083, 124
      %v3334 = vpop.permute.xlu0 %3333
      %3335 = vrot.lane.b32.xlu0 %v1084, 124
      %v3336 = vpop.permute.xlu0 %3335
      %3337 = vrot.lane.b32.xlu0 %v1085, 124
      %v3338 = vpop.permute.xlu0 %3337
      %3339 = vrot.lane.b32.xlu0 %v1086, 124
      %v3340 = vpop.permute.xlu0 %3339
      %3341 = vrot.lane.b32.xlu0 %v1087, 124
      %v3342 = vpop.permute.xlu0 %3341
      %3343 = vrot.lane.b32.xlu0 %v1088, 124
      %v3344 = vpop.permute.xlu0 %3343
      %3345 = vrot.lane.b32.xlu0 %v1089, 124
      %v3346 = vpop.permute.xlu0 %3345
      %3347 = vrot.lane.b32.xlu0 %v1090, 124
      %v3348 = vpop.permute.xlu0 %3347
      %3349 = vrot.lane.b32.xlu0 %v1091, 124
      %v3350 = vpop.permute.xlu0 %3349
      %3351 = vrot.lane.b32.xlu0 %v1092, 124
      %v3352 = vpop.permute.xlu0 %3351
      %3353 = vrot.lane.b32.xlu0 %v1093, 124
      %v3354 = vpop.permute.xlu0 %3353
      %3355 = vrot.lane.b32.xlu0 %v1094, 124
      %v3356 = vpop.permute.xlu0 %3355
      %3357 = vrot.lane.b32.xlu0 %v1095, 124
      %v3358 = vpop.permute.xlu0 %3357
      %3359 = vrot.lane.b32.xlu0 %v1096, 124
      %v3360 = vpop.permute.xlu0 %3359
      %3361 = vrot.lane.b32.xlu0 %v1097, 124
      %v3362 = vpop.permute.xlu0 %3361
      %3363 = vrot.lane.b32.xlu0 %v1098, 124
      %v3364 = vpop.permute.xlu0 %3363
      %3365 = vrot.lane.b32.xlu0 %v1099, 124
      %v3366 = vpop.permute.xlu0 %3365
      %3367 = vrot.lane.b32.xlu0 %v1100, 124
      %v3368 = vpop.permute.xlu0 %3367
      %3369 = vrot.lane.b32.xlu0 %v1101, 124
      %v3370 = vpop.permute.xlu0 %3369
      %3371 = vrot.lane.b32.xlu0 %v1102, 124
      %v3372 = vpop.permute.xlu0 %3371
      %3373 = vrot.lane.b32.xlu0 %v1103, 124
      %v3374 = vpop.permute.xlu0 %3373
      %3375 = vrot.lane.b32.xlu0 %v1104, 124
      %v3376 = vpop.permute.xlu0 %3375
      %3377 = vrot.lane.b32.xlu0 %v1105, 124
      %v3378 = vpop.permute.xlu0 %3377
      %3379 = vrot.lane.b32.xlu0 %v1106, 124
      %v3380 = vpop.permute.xlu0 %3379
      %v3413 = vsel %vm2419, %v3318, %v1427
      %v3414 = vsel %vm2419, %v3320, %v1428
      %v3415 = vsel %vm2419, %v3322, %v1429
      %v3416 = vsel %vm2419, %v3324, %v1430
      %v3417 = vsel %vm2419, %v3326, %v1431
      %v3418 = vsel %vm2419, %v3328, %v1432
      %v3419 = vsel %vm2419, %v3330, %v1433
      %v3420 = vsel %vm2419, %v3332, %v1434
      %v3421 = vsel %vm2419, %v3334, %v1435
      %v3422 = vsel %vm2419, %v3336, %v1436
      %v3423 = vsel %vm2419, %v3338, %v1437
      %v3424 = vsel %vm2419, %v3340, %v1438
      %v3425 = vsel %vm2419, %v3342, %v1439
      %v3426 = vsel %vm2419, %v3344, %v1440
      %v3427 = vsel %vm2419, %v3346, %v1441
      %v3428 = vsel %vm2419, %v3348, %v1442
      %v3429 = vsel %vm2419, %v3350, %v1443
      %v3430 = vsel %vm2419, %v3352, %v1444
      %v3431 = vsel %vm2419, %v3354, %v1445
      %v3432 = vsel %vm2419, %v3356, %v1446
      %v3433 = vsel %vm2419, %v3358, %v1447
      %v3434 = vsel %vm2419, %v3360, %v1448
      %v3435 = vsel %vm2419, %v3362, %v1449
      %v3436 = vsel %vm2419, %v3364, %v1450
      %v3437 = vsel %vm2419, %v3366, %v1451
      %v3438 = vsel %vm2419, %v3368, %v1452
      %v3439 = vsel %vm2419, %v3370, %v1453
      %v3440 = vsel %vm2419, %v3372, %v1454
      %v3441 = vsel %vm2419, %v3374, %v1455
      %v3442 = vsel %vm2419, %v3376, %v1456
      %v3443 = vsel %vm2419, %v3378, %v1457
      %v3444 = vsel %vm2419, %v3380, %v1458
      %v3445 = vpack.c.bf16 %v3414, %v3413
      %v3446 = vpack.c.bf16 %v3416, %v3415
      %v3447 = vpack.c.bf16 %v3418, %v3417
      %v3448 = vpack.c.bf16 %v3420, %v3419
      %v3449 = vpack.c.bf16 %v3422, %v3421
      %v3450 = vpack.c.bf16 %v3424, %v3423
      %v3451 = vpack.c.bf16 %v3426, %v3425
      %v3452 = vpack.c.bf16 %v3428, %v3427
      %v3453 = vpack.c.bf16 %v3430, %v3429
      %v3454 = vpack.c.bf16 %v3432, %v3431
      %v3455 = vpack.c.bf16 %v3434, %v3433
      %v3456 = vpack.c.bf16 %v3436, %v3435
      %v3457 = vpack.c.bf16 %v3438, %v3437
      %v3458 = vpack.c.bf16 %v3440, %v3439
      %v3459 = vpack.c.bf16 %v3442, %v3441
      %v3460 = vpack.c.bf16 %v3444, %v3443
      %v3477 = vunpack.c.l.b16 %v3445
      %v3478 = vunpack.c.h.b16 %v3445
      %v3479 = vunpack.c.l.b16 %v3446
      %v3480 = vunpack.c.h.b16 %v3446
      %v3481 = vunpack.c.l.b16 %v3447
      %v3482 = vunpack.c.h.b16 %v3447
      %v3483 = vunpack.c.l.b16 %v3448
      %v3484 = vunpack.c.h.b16 %v3448
      %v3485 = vunpack.c.l.b16 %v3449
      %v3486 = vunpack.c.h.b16 %v3449
      %v3487 = vunpack.c.l.b16 %v3450
      %v3488 = vunpack.c.h.b16 %v3450
      %v3489 = vunpack.c.l.b16 %v3451
      %v3490 = vunpack.c.h.b16 %v3451
      %v3491 = vunpack.c.l.b16 %v3452
      %v3492 = vunpack.c.h.b16 %v3452
      %v3493 = vunpack.c.l.b16 %v3453
      %v3494 = vunpack.c.h.b16 %v3453
      %v3495 = vunpack.c.l.b16 %v3454
      %v3496 = vunpack.c.h.b16 %v3454
      %v3497 = vunpack.c.l.b16 %v3455
      %v3498 = vunpack.c.h.b16 %v3455
      %v3499 = vunpack.c.l.b16 %v3456
      %v3500 = vunpack.c.h.b16 %v3456
      %v3501 = vunpack.c.l.b16 %v3457
      %v3502 = vunpack.c.h.b16 %v3457
      %v3503 = vunpack.c.l.b16 %v3458
      %v3504 = vunpack.c.h.b16 %v3458
      %v3505 = vunpack.c.l.b16 %v3459
      %v3506 = vunpack.c.h.b16 %v3459
      %v3507 = vunpack.c.l.b16 %v3460
      %v3508 = vunpack.c.h.b16 %v3460
      %v3509 = vpack.c.b16 %v3477, %v3477
      %v3510 = vpack.c.b16 %v3478, %v3478
      %v3511 = vpack.c.b16 %v3479, %v3479
      %v3512 = vpack.c.b16 %v3480, %v3480
      %v3513 = vpack.c.b16 %v3481, %v3481
      %v3514 = vpack.c.b16 %v3482, %v3482
      %v3515 = vpack.c.b16 %v3483, %v3483
      %v3516 = vpack.c.b16 %v3484, %v3484
      %v3517 = vpack.c.b16 %v3485, %v3485
      %v3518 = vpack.c.b16 %v3486, %v3486
      %v3519 = vpack.c.b16 %v3487, %v3487
      %v3520 = vpack.c.b16 %v3488, %v3488
      %v3521 = vpack.c.b16 %v3489, %v3489
      %v3522 = vpack.c.b16 %v3490, %v3490
      %v3523 = vpack.c.b16 %v3491, %v3491
      %v3524 = vpack.c.b16 %v3492, %v3492
      %v3525 = vpack.c.b16 %v3493, %v3493
      %v3526 = vpack.c.b16 %v3494, %v3494
      %v3527 = vpack.c.b16 %v3495, %v3495
      %v3528 = vpack.c.b16 %v3496, %v3496
      %v3529 = vpack.c.b16 %v3497, %v3497
      %v3530 = vpack.c.b16 %v3498, %v3498
      %v3531 = vpack.c.b16 %v3499, %v3499
      %v3532 = vpack.c.b16 %v3500, %v3500
      %v3533 = vpack.c.b16 %v3501, %v3501
      %v3534 = vpack.c.b16 %v3502, %v3502
      %v3535 = vpack.c.b16 %v3503, %v3503
      %v3536 = vpack.c.b16 %v3504, %v3504
      %v3537 = vpack.c.b16 %v3505, %v3505
      %v3538 = vpack.c.b16 %v3506, %v3506
      %v3539 = vpack.c.b16 %v3507, %v3507
      %v3540 = vpack.c.b16 %v3508, %v3508
      %s3573 = scalar_lea.vmem %s387, 128
      %3574 = vst.msk [vmem:[%s3573] sm:$0xf] %vm2580, %v3509
      %3575 = vst.msk [vmem:[%s3573 + $0x4] sm:$0xf] %vm2580, %v3510
      %3576 = vst.msk [vmem:[%s3573 + $0x8] sm:$0xf] %vm2580, %v3511
      %3577 = vst.msk [vmem:[%s3573 + $0xc] sm:$0xf] %vm2580, %v3512
      %3578 = vst.msk [vmem:[%s3573 + $0x10] sm:$0xf] %vm2580, %v3513
      %3579 = vst.msk [vmem:[%s3573 + $0x14] sm:$0xf] %vm2580, %v3514
      %3580 = vst.msk [vmem:[%s3573 + $0x18] sm:$0xf] %vm2580, %v3515
      %3581 = vst.msk [vmem:[%s3573 + $0x1c] sm:$0xf] %vm2580, %v3516
      %3582 = vst.msk [vmem:[%s3573 + $0x20] sm:$0xf] %vm2580, %v3517
      %3583 = vst.msk [vmem:[%s3573 + $0x24] sm:$0xf] %vm2580, %v3518
      %3584 = vst.msk [vmem:[%s3573 + $0x28] sm:$0xf] %vm2580, %v3519
      %3585 = vst.msk [vmem:[%s3573 + $0x2c] sm:$0xf] %vm2580, %v3520
      %3586 = vst.msk [vmem:[%s3573 + $0x30] sm:$0xf] %vm2580, %v3521
      %3587 = vst.msk [vmem:[%s3573 + $0x34] sm:$0xf] %vm2580, %v3522
      %3588 = vst.msk [vmem:[%s3573 + $0x38] sm:$0xf] %vm2580, %v3523
      %3589 = vst.msk [vmem:[%s3573 + $0x3c] sm:$0xf] %vm2580, %v3524
      %3590 = vst.msk [vmem:[%s3573 + $0x40] sm:$0xf] %vm2580, %v3525
      %3591 = vst.msk [vmem:[%s3573 + $0x44] sm:$0xf] %vm2580, %v3526
      %3592 = vst.msk [vmem:[%s3573 + $0x48] sm:$0xf] %vm2580, %v3527
      %3593 = vst.msk [vmem:[%s3573 + $0x4c] sm:$0xf] %vm2580, %v3528
      %3594 = vst.msk [vmem:[%s3573 + $0x50] sm:$0xf] %vm2580, %v3529
      %3595 = vst.msk [vmem:[%s3573 + $0x54] sm:$0xf] %vm2580, %v3530
      %3596 = vst.msk [vmem:[%s3573 + $0x58] sm:$0xf] %vm2580, %v3531
      %3597 = vst.msk [vmem:[%s3573 + $0x5c] sm:$0xf] %vm2580, %v3532
      %3598 = vst.msk [vmem:[%s3573 + $0x60] sm:$0xf] %vm2580, %v3533
      %3599 = vst.msk [vmem:[%s3573 + $0x64] sm:$0xf] %vm2580, %v3534
      %3600 = vst.msk [vmem:[%s3573 + $0x68] sm:$0xf] %vm2580, %v3535
      %3601 = vst.msk [vmem:[%s3573 + $0x6c] sm:$0xf] %vm2580, %v3536
      %3602 = vst.msk [vmem:[%s3573 + $0x70] sm:$0xf] %vm2580, %v3537
      %3603 = vst.msk [vmem:[%s3573 + $0x74] sm:$0xf] %vm2580, %v3538
      %3604 = vst.msk [vmem:[%s3573 + $0x78] sm:$0xf] %vm2580, %v3539
      %3605 = vst.msk [vmem:[%s3573 + $0x7c] sm:$0xf] %vm2580, %v3540
      %3606 = vrot.lane.b32.xlu0 %v1843, 92
      %v3607 = vpop.permute.xlu0 %3606
      %3608 = vrot.lane.b32.xlu0 %v1844, 92
      %v3609 = vpop.permute.xlu0 %3608
      %3610 = vrot.lane.b32.xlu0 %v1845, 92
      %v3611 = vpop.permute.xlu0 %3610
      %3612 = vrot.lane.b32.xlu0 %v1846, 92
      %v3613 = vpop.permute.xlu0 %3612
      %3614 = vrot.lane.b32.xlu0 %v1847, 92
      %v3615 = vpop.permute.xlu0 %3614
      %3616 = vrot.lane.b32.xlu0 %v1848, 92
      %v3617 = vpop.permute.xlu0 %3616
      %3618 = vrot.lane.b32.xlu0 %v1849, 92
      %v3619 = vpop.permute.xlu0 %3618
      %3620 = vrot.lane.b32.xlu0 %v1850, 92
      %v3621 = vpop.permute.xlu0 %3620
      %3622 = vrot.lane.b32.xlu0 %v1851, 92
      %v3623 = vpop.permute.xlu0 %3622
      %3624 = vrot.lane.b32.xlu0 %v1852, 92
      %v3625 = vpop.permute.xlu0 %3624
      %3626 = vrot.lane.b32.xlu0 %v1853, 92
      %v3627 = vpop.permute.xlu0 %3626
      %3628 = vrot.lane.b32.xlu0 %v1854, 92
      %v3629 = vpop.permute.xlu0 %3628
      %3630 = vrot.lane.b32.xlu0 %v1855, 92
      %v3631 = vpop.permute.xlu0 %3630
      %3632 = vrot.lane.b32.xlu0 %v1856, 92
      %v3633 = vpop.permute.xlu0 %3632
      %3634 = vrot.lane.b32.xlu0 %v1857, 92
      %v3635 = vpop.permute.xlu0 %3634
      %3636 = vrot.lane.b32.xlu0 %v1858, 92
      %v3637 = vpop.permute.xlu0 %3636
      %3638 = vrot.lane.b32.xlu0 %v1859, 92
      %v3639 = vpop.permute.xlu0 %3638
      %3640 = vrot.lane.b32.xlu0 %v1860, 92
      %v3641 = vpop.permute.xlu0 %3640
      %3642 = vrot.lane.b32.xlu0 %v1861, 92
      %v3643 = vpop.permute.xlu0 %3642
      %3644 = vrot.lane.b32.xlu0 %v1862, 92
      %v3645 = vpop.permute.xlu0 %3644
      %3646 = vrot.lane.b32.xlu0 %v1863, 92
      %v3647 = vpop.permute.xlu0 %3646
      %3648 = vrot.lane.b32.xlu0 %v1864, 92
      %v3649 = vpop.permute.xlu0 %3648
      %3650 = vrot.lane.b32.xlu0 %v1865, 92
      %v3651 = vpop.permute.xlu0 %3650
      %3652 = vrot.lane.b32.xlu0 %v1866, 92
      %v3653 = vpop.permute.xlu0 %3652
      %3654 = vrot.lane.b32.xlu0 %v1867, 92
      %v3655 = vpop.permute.xlu0 %3654
      %3656 = vrot.lane.b32.xlu0 %v1868, 92
      %v3657 = vpop.permute.xlu0 %3656
      %3658 = vrot.lane.b32.xlu0 %v1869, 92
      %v3659 = vpop.permute.xlu0 %3658
      %3660 = vrot.lane.b32.xlu0 %v1870, 92
      %v3661 = vpop.permute.xlu0 %3660
      %3662 = vrot.lane.b32.xlu0 %v1871, 92
      %v3663 = vpop.permute.xlu0 %3662
      %3664 = vrot.lane.b32.xlu0 %v1872, 92
      %v3665 = vpop.permute.xlu0 %3664
      %3666 = vrot.lane.b32.xlu0 %v1873, 92
      %v3667 = vpop.permute.xlu0 %3666
      %3668 = vrot.lane.b32.xlu0 %v1874, 92
      %v3669 = vpop.permute.xlu0 %3668
      %3702 = vrot.lane.b32.xlu0 %v2259, 96
      %v3703 = vpop.permute.xlu0 %3702
      %3704 = vrot.lane.b32.xlu0 %v2260, 96
      %v3705 = vpop.permute.xlu0 %3704
      %3706 = vrot.lane.b32.xlu0 %v2261, 96
      %v3707 = vpop.permute.xlu0 %3706
      %3708 = vrot.lane.b32.xlu0 %v2262, 96
      %v3709 = vpop.permute.xlu0 %3708
      %3710 = vrot.lane.b32.xlu0 %v2263, 96
      %v3711 = vpop.permute.xlu0 %3710
      %3712 = vrot.lane.b32.xlu0 %v2264, 96
      %v3713 = vpop.permute.xlu0 %3712
      %3714 = vrot.lane.b32.xlu0 %v2265, 96
      %v3715 = vpop.permute.xlu0 %3714
      %3716 = vrot.lane.b32.xlu0 %v2266, 96
      %v3717 = vpop.permute.xlu0 %3716
      %3718 = vrot.lane.b32.xlu0 %v2267, 96
      %v3719 = vpop.permute.xlu0 %3718
      %3720 = vrot.lane.b32.xlu0 %v2268, 96
      %v3721 = vpop.permute.xlu0 %3720
      %3722 = vrot.lane.b32.xlu0 %v2269, 96
      %v3723 = vpop.permute.xlu0 %3722
      %3724 = vrot.lane.b32.xlu0 %v2270, 96
      %v3725 = vpop.permute.xlu0 %3724
      %3726 = vrot.lane.b32.xlu0 %v2271, 96
      %v3727 = vpop.permute.xlu0 %3726
      %3728 = vrot.lane.b32.xlu0 %v2272, 96
      %v3729 = vpop.permute.xlu0 %3728
      %3730 = vrot.lane.b32.xlu0 %v2273, 96
      %v3731 = vpop.permute.xlu0 %3730
      %3732 = vrot.lane.b32.xlu0 %v2274, 96
      %v3733 = vpop.permute.xlu0 %3732
      %3734 = vrot.lane.b32.xlu0 %v2275, 96
      %v3735 = vpop.permute.xlu0 %3734
      %3736 = vrot.lane.b32.xlu0 %v2276, 96
      %v3737 = vpop.permute.xlu0 %3736
      %3738 = vrot.lane.b32.xlu0 %v2277, 96
      %v3739 = vpop.permute.xlu0 %3738
      %3740 = vrot.lane.b32.xlu0 %v2278, 96
      %v3741 = vpop.permute.xlu0 %3740
      %3742 = vrot.lane.b32.xlu0 %v2279, 96
      %v3743 = vpop.permute.xlu0 %3742
      %3744 = vrot.lane.b32.xlu0 %v2280, 96
      %v3745 = vpop.permute.xlu0 %3744
      %3746 = vrot.lane.b32.xlu0 %v2281, 96
      %v3747 = vpop.permute.xlu0 %3746
      %3748 = vrot.lane.b32.xlu0 %v2282, 96
      %v3749 = vpop.permute.xlu0 %3748
      %3750 = vrot.lane.b32.xlu0 %v2283, 96
      %v3751 = vpop.permute.xlu0 %3750
      %3752 = vrot.lane.b32.xlu0 %v2284, 96
      %v3753 = vpop.permute.xlu0 %3752
      %3754 = vrot.lane.b32.xlu0 %v2285, 96
      %v3755 = vpop.permute.xlu0 %3754
      %3756 = vrot.lane.b32.xlu0 %v2286, 96
      %v3757 = vpop.permute.xlu0 %3756
      %3758 = vrot.lane.b32.xlu0 %v2287, 96
      %v3759 = vpop.permute.xlu0 %3758
      %3760 = vrot.lane.b32.xlu0 %v2288, 96
      %v3761 = vpop.permute.xlu0 %3760
      %3762 = vrot.lane.b32.xlu0 %v2289, 96
      %v3763 = vpop.permute.xlu0 %3762
      %3764 = vrot.lane.b32.xlu0 %v2290, 96
      %v3765 = vpop.permute.xlu0 %3764
      %v3798 = vsel %vm2419, %v3607, %v3703
      %v3799 = vsel %vm2419, %v3609, %v3705
      %v3800 = vsel %vm2419, %v3611, %v3707
      %v3801 = vsel %vm2419, %v3613, %v3709
      %v3802 = vsel %vm2419, %v3615, %v3711
      %v3803 = vsel %vm2419, %v3617, %v3713
      %v3804 = vsel %vm2419, %v3619, %v3715
      %v3805 = vsel %vm2419, %v3621, %v3717
      %v3806 = vsel %vm2419, %v3623, %v3719
      %v3807 = vsel %vm2419, %v3625, %v3721
      %v3808 = vsel %vm2419, %v3627, %v3723
      %v3809 = vsel %vm2419, %v3629, %v3725
      %v3810 = vsel %vm2419, %v3631, %v3727
      %v3811 = vsel %vm2419, %v3633, %v3729
      %v3812 = vsel %vm2419, %v3635, %v3731
      %v3813 = vsel %vm2419, %v3637, %v3733
      %v3814 = vsel %vm2419, %v3639, %v3735
      %v3815 = vsel %vm2419, %v3641, %v3737
      %v3816 = vsel %vm2419, %v3643, %v3739
      %v3817 = vsel %vm2419, %v3645, %v3741
      %v3818 = vsel %vm2419, %v3647, %v3743
      %v3819 = vsel %vm2419, %v3649, %v3745
      %v3820 = vsel %vm2419, %v3651, %v3747
      %v3821 = vsel %vm2419, %v3653, %v3749
      %v3822 = vsel %vm2419, %v3655, %v3751
      %v3823 = vsel %vm2419, %v3657, %v3753
      %v3824 = vsel %vm2419, %v3659, %v3755
      %v3825 = vsel %vm2419, %v3661, %v3757
      %v3826 = vsel %vm2419, %v3663, %v3759
      %v3827 = vsel %vm2419, %v3665, %v3761
      %v3828 = vsel %vm2419, %v3667, %v3763
      %v3829 = vsel %vm2419, %v3669, %v3765
      %v3830 = vpack.c.bf16 %v3799, %v3798
      %v3831 = vpack.c.bf16 %v3801, %v3800
      %v3832 = vpack.c.bf16 %v3803, %v3802
      %v3833 = vpack.c.bf16 %v3805, %v3804
      %v3834 = vpack.c.bf16 %v3807, %v3806
      %v3835 = vpack.c.bf16 %v3809, %v3808
      %v3836 = vpack.c.bf16 %v3811, %v3810
      %v3837 = vpack.c.bf16 %v3813, %v3812
      %v3838 = vpack.c.bf16 %v3815, %v3814
      %v3839 = vpack.c.bf16 %v3817, %v3816
      %v3840 = vpack.c.bf16 %v3819, %v3818
      %v3841 = vpack.c.bf16 %v3821, %v3820
      %v3842 = vpack.c.bf16 %v3823, %v3822
      %v3843 = vpack.c.bf16 %v3825, %v3824
      %v3844 = vpack.c.bf16 %v3827, %v3826
      %v3845 = vpack.c.bf16 %v3829, %v3828
      %v3862 = vunpack.c.l.b16 %v3830
      %v3863 = vunpack.c.h.b16 %v3830
      %v3864 = vunpack.c.l.b16 %v3831
      %v3865 = vunpack.c.h.b16 %v3831
      %v3866 = vunpack.c.l.b16 %v3832
      %v3867 = vunpack.c.h.b16 %v3832
      %v3868 = vunpack.c.l.b16 %v3833
      %v3869 = vunpack.c.h.b16 %v3833
      %v3870 = vunpack.c.l.b16 %v3834
      %v3871 = vunpack.c.h.b16 %v3834
      %v3872 = vunpack.c.l.b16 %v3835
      %v3873 = vunpack.c.h.b16 %v3835
      %v3874 = vunpack.c.l.b16 %v3836
      %v3875 = vunpack.c.h.b16 %v3836
      %v3876 = vunpack.c.l.b16 %v3837
      %v3877 = vunpack.c.h.b16 %v3837
      %v3878 = vunpack.c.l.b16 %v3838
      %v3879 = vunpack.c.h.b16 %v3838
      %v3880 = vunpack.c.l.b16 %v3839
      %v3881 = vunpack.c.h.b16 %v3839
      %v3882 = vunpack.c.l.b16 %v3840
      %v3883 = vunpack.c.h.b16 %v3840
      %v3884 = vunpack.c.l.b16 %v3841
      %v3885 = vunpack.c.h.b16 %v3841
      %v3886 = vunpack.c.l.b16 %v3842
      %v3887 = vunpack.c.h.b16 %v3842
      %v3888 = vunpack.c.l.b16 %v3843
      %v3889 = vunpack.c.h.b16 %v3843
      %v3890 = vunpack.c.l.b16 %v3844
      %v3891 = vunpack.c.h.b16 %v3844
      %v3892 = vunpack.c.l.b16 %v3845
      %v3893 = vunpack.c.h.b16 %v3845
      %v3894 = vpack.c.b16 %v3862, %v3862
      %v3895 = vpack.c.b16 %v3863, %v3863
      %v3896 = vpack.c.b16 %v3864, %v3864
      %v3897 = vpack.c.b16 %v3865, %v3865
      %v3898 = vpack.c.b16 %v3866, %v3866
      %v3899 = vpack.c.b16 %v3867, %v3867
      %v3900 = vpack.c.b16 %v3868, %v3868
      %v3901 = vpack.c.b16 %v3869, %v3869
      %v3902 = vpack.c.b16 %v3870, %v3870
      %v3903 = vpack.c.b16 %v3871, %v3871
      %v3904 = vpack.c.b16 %v3872, %v3872
      %v3905 = vpack.c.b16 %v3873, %v3873
      %v3906 = vpack.c.b16 %v3874, %v3874
      %v3907 = vpack.c.b16 %v3875, %v3875
      %v3908 = vpack.c.b16 %v3876, %v3876
      %v3909 = vpack.c.b16 %v3877, %v3877
      %v3910 = vpack.c.b16 %v3878, %v3878
      %v3911 = vpack.c.b16 %v3879, %v3879
      %v3912 = vpack.c.b16 %v3880, %v3880
      %v3913 = vpack.c.b16 %v3881, %v3881
      %v3914 = vpack.c.b16 %v3882, %v3882
      %v3915 = vpack.c.b16 %v3883, %v3883
      %v3916 = vpack.c.b16 %v3884, %v3884
      %v3917 = vpack.c.b16 %v3885, %v3885
      %v3918 = vpack.c.b16 %v3886, %v3886
      %v3919 = vpack.c.b16 %v3887, %v3887
      %v3920 = vpack.c.b16 %v3888, %v3888
      %v3921 = vpack.c.b16 %v3889, %v3889
      %v3922 = vpack.c.b16 %v3890, %v3890
      %v3923 = vpack.c.b16 %v3891, %v3891
      %v3924 = vpack.c.b16 %v3892, %v3892
      %v3925 = vpack.c.b16 %v3893, %v3893
      %s3958 = scalar_lea.vmem %s397, 128
      %3959 = vst.msk [vmem:[%s3958] sm:$0xf] %vm2580, %v3894
      %3960 = vst.msk [vmem:[%s3958 + $0x4] sm:$0xf] %vm2580, %v3895
      %3961 = vst.msk [vmem:[%s3958 + $0x8] sm:$0xf] %vm2580, %v3896
      %3962 = vst.msk [vmem:[%s3958 + $0xc] sm:$0xf] %vm2580, %v3897
      %3963 = vst.msk [vmem:[%s3958 + $0x10] sm:$0xf] %vm2580, %v3898
      %3964 = vst.msk [vmem:[%s3958 + $0x14] sm:$0xf] %vm2580, %v3899
      %3965 = vst.msk [vmem:[%s3958 + $0x18] sm:$0xf] %vm2580, %v3900
      %3966 = vst.msk [vmem:[%s3958 + $0x1c] sm:$0xf] %vm2580, %v3901
      %3967 = vst.msk [vmem:[%s3958 + $0x20] sm:$0xf] %vm2580, %v3902
      %3968 = vst.msk [vmem:[%s3958 + $0x24] sm:$0xf] %vm2580, %v3903
      %3969 = vst.msk [vmem:[%s3958 + $0x28] sm:$0xf] %vm2580, %v3904
      %3970 = vst.msk [vmem:[%s3958 + $0x2c] sm:$0xf] %vm2580, %v3905
      %3971 = vst.msk [vmem:[%s3958 + $0x30] sm:$0xf] %vm2580, %v3906
      %3972 = vst.msk [vmem:[%s3958 + $0x34] sm:$0xf] %vm2580, %v3907
      %3973 = vst.msk [vmem:[%s3958 + $0x38] sm:$0xf] %vm2580, %v3908
      %3974 = vst.msk [vmem:[%s3958 + $0x3c] sm:$0xf] %vm2580, %v3909
      %3975 = vst.msk [vmem:[%s3958 + $0x40] sm:$0xf] %vm2580, %v3910
      %3976 = vst.msk [vmem:[%s3958 + $0x44] sm:$0xf] %vm2580, %v3911
      %3977 = vst.msk [vmem:[%s3958 + $0x48] sm:$0xf] %vm2580, %v3912
      %3978 = vst.msk [vmem:[%s3958 + $0x4c] sm:$0xf] %vm2580, %v3913
      %3979 = vst.msk [vmem:[%s3958 + $0x50] sm:$0xf] %vm2580, %v3914
      %3980 = vst.msk [vmem:[%s3958 + $0x54] sm:$0xf] %vm2580, %v3915
      %3981 = vst.msk [vmem:[%s3958 + $0x58] sm:$0xf] %vm2580, %v3916
      %3982 = vst.msk [vmem:[%s3958 + $0x5c] sm:$0xf] %vm2580, %v3917
      %3983 = vst.msk [vmem:[%s3958 + $0x60] sm:$0xf] %vm2580, %v3918
      %3984 = vst.msk [vmem:[%s3958 + $0x64] sm:$0xf] %vm2580, %v3919
      %3985 = vst.msk [vmem:[%s3958 + $0x68] sm:$0xf] %vm2580, %v3920
      %3986 = vst.msk [vmem:[%s3958 + $0x6c] sm:$0xf] %vm2580, %v3921
      %3987 = vst.msk [vmem:[%s3958 + $0x70] sm:$0xf] %vm2580, %v3922
      %3988 = vst.msk [vmem:[%s3958 + $0x74] sm:$0xf] %vm2580, %v3923
      %3989 = vst.msk [vmem:[%s3958 + $0x78] sm:$0xf] %vm2580, %v3924
      %3990 = vst.msk [vmem:[%s3958 + $0x7c] sm:$0xf] %vm2580, %v3925
      %3991 = vrot.lane.b32.xlu0 %v3125, 56
      %v3992 = vpop.permute.xlu0 %3991
      %3993 = vrot.lane.b32.xlu0 %v3126, 56
      %v3994 = vpop.permute.xlu0 %3993
      %3995 = vrot.lane.b32.xlu0 %v3127, 56
      %v3996 = vpop.permute.xlu0 %3995
      %3997 = vrot.lane.b32.xlu0 %v3128, 56
      %v3998 = vpop.permute.xlu0 %3997
      %3999 = vrot.lane.b32.xlu0 %v3129, 56
      %v4000 = vpop.permute.xlu0 %3999
      %4001 = vrot.lane.b32.xlu0 %v3130, 56
      %v4002 = vpop.permute.xlu0 %4001
      %4003 = vrot.lane.b32.xlu0 %v3131, 56
      %v4004 = vpop.permute.xlu0 %4003
      %4005 = vrot.lane.b32.xlu0 %v3132, 56
      %v4006 = vpop.permute.xlu0 %4005
      %4007 = vrot.lane.b32.xlu0 %v3133, 56
      %v4008 = vpop.permute.xlu0 %4007
      %4009 = vrot.lane.b32.xlu0 %v3134, 56
      %v4010 = vpop.permute.xlu0 %4009
      %4011 = vrot.lane.b32.xlu0 %v3135, 56
      %v4012 = vpop.permute.xlu0 %4011
      %4013 = vrot.lane.b32.xlu0 %v3136, 56
      %v4014 = vpop.permute.xlu0 %4013
      %4015 = vrot.lane.b32.xlu0 %v3137, 56
      %v4016 = vpop.permute.xlu0 %4015
      %4017 = vrot.lane.b32.xlu0 %v3138, 56
      %v4018 = vpop.permute.xlu0 %4017
      %4019 = vrot.lane.b32.xlu0 %v3139, 56
      %v4020 = vpop.permute.xlu0 %4019
      %4021 = vrot.lane.b32.xlu0 %v3140, 56
      %v4022 = vpop.permute.xlu0 %4021
      %4023 = vrot.lane.b32.xlu0 %v3141, 56
      %v4024 = vpop.permute.xlu0 %4023
      %4025 = vrot.lane.b32.xlu0 %v3142, 56
      %v4026 = vpop.permute.xlu0 %4025
      %4027 = vrot.lane.b32.xlu0 %v3143, 56
      %v4028 = vpop.permute.xlu0 %4027
      %4029 = vrot.lane.b32.xlu0 %v3144, 56
      %v4030 = vpop.permute.xlu0 %4029
      %4031 = vrot.lane.b32.xlu0 %v3145, 56
      %v4032 = vpop.permute.xlu0 %4031
      %4033 = vrot.lane.b32.xlu0 %v3146, 56
      %v4034 = vpop.permute.xlu0 %4033
      %4035 = vrot.lane.b32.xlu0 %v3147, 56
      %v4036 = vpop.permute.xlu0 %4035
      %4037 = vrot.lane.b32.xlu0 %v3148, 56
      %v4038 = vpop.permute.xlu0 %4037
      %4039 = vrot.lane.b32.xlu0 %v3149, 56
      %v4040 = vpop.permute.xlu0 %4039
      %4041 = vrot.lane.b32.xlu0 %v3150, 56
      %v4042 = vpop.permute.xlu0 %4041
      %4043 = vrot.lane.b32.xlu0 %v3151, 56
      %v4044 = vpop.permute.xlu0 %4043
      %4045 = vrot.lane.b32.xlu0 %v3152, 56
      %v4046 = vpop.permute.xlu0 %4045
      %4047 = vrot.lane.b32.xlu0 %v3153, 56
      %v4048 = vpop.permute.xlu0 %4047
      %4049 = vrot.lane.b32.xlu0 %v3154, 56
      %v4050 = vpop.permute.xlu0 %4049
      %4051 = vrot.lane.b32.xlu0 %v3155, 56
      %v4052 = vpop.permute.xlu0 %4051
      %4053 = vrot.lane.b32.xlu0 %v3156, 56
      %v4054 = vpop.permute.xlu0 %4053
      %s4087 = scalar_lea.vmem %s407, 128
      %4088 = vst.msk [vmem:[%s4087] sm:$0xf] %vm2580, %v3992
      %4089 = vst.msk [vmem:[%s4087 + $0x4] sm:$0xf] %vm2580, %v3994
      %4090 = vst.msk [vmem:[%s4087 + $0x8] sm:$0xf] %vm2580, %v3996
      %4091 = vst.msk [vmem:[%s4087 + $0xc] sm:$0xf] %vm2580, %v3998
      %4092 = vst.msk [vmem:[%s4087 + $0x10] sm:$0xf] %vm2580, %v4000
      %4093 = vst.msk [vmem:[%s4087 + $0x14] sm:$0xf] %vm2580, %v4002
      %4094 = vst.msk [vmem:[%s4087 + $0x18] sm:$0xf] %vm2580, %v4004
      %4095 = vst.msk [vmem:[%s4087 + $0x1c] sm:$0xf] %vm2580, %v4006
      %4096 = vst.msk [vmem:[%s4087 + $0x20] sm:$0xf] %vm2580, %v4008
      %4097 = vst.msk [vmem:[%s4087 + $0x24] sm:$0xf] %vm2580, %v4010
      %4098 = vst.msk [vmem:[%s4087 + $0x28] sm:$0xf] %vm2580, %v4012
      %4099 = vst.msk [vmem:[%s4087 + $0x2c] sm:$0xf] %vm2580, %v4014
      %4100 = vst.msk [vmem:[%s4087 + $0x30] sm:$0xf] %vm2580, %v4016
      %4101 = vst.msk [vmem:[%s4087 + $0x34] sm:$0xf] %vm2580, %v4018
      %4102 = vst.msk [vmem:[%s4087 + $0x38] sm:$0xf] %vm2580, %v4020
      %4103 = vst.msk [vmem:[%s4087 + $0x3c] sm:$0xf] %vm2580, %v4022
      %4104 = vst.msk [vmem:[%s4087 + $0x40] sm:$0xf] %vm2580, %v4024
      %4105 = vst.msk [vmem:[%s4087 + $0x44] sm:$0xf] %vm2580, %v4026
      %4106 = vst.msk [vmem:[%s4087 + $0x48] sm:$0xf] %vm2580, %v4028
      %4107 = vst.msk [vmem:[%s4087 + $0x4c] sm:$0xf] %vm2580, %v4030
      %4108 = vst.msk [vmem:[%s4087 + $0x50] sm:$0xf] %vm2580, %v4032
      %4109 = vst.msk [vmem:[%s4087 + $0x54] sm:$0xf] %vm2580, %v4034
      %4110 = vst.msk [vmem:[%s4087 + $0x58] sm:$0xf] %vm2580, %v4036
      %4111 = vst.msk [vmem:[%s4087 + $0x5c] sm:$0xf] %vm2580, %v4038
      %4112 = vst.msk [vmem:[%s4087 + $0x60] sm:$0xf] %vm2580, %v4040
      %4113 = vst.msk [vmem:[%s4087 + $0x64] sm:$0xf] %vm2580, %v4042
      %4114 = vst.msk [vmem:[%s4087 + $0x68] sm:$0xf] %vm2580, %v4044
      %4115 = vst.msk [vmem:[%s4087 + $0x6c] sm:$0xf] %vm2580, %v4046
      %4116 = vst.msk [vmem:[%s4087 + $0x70] sm:$0xf] %vm2580, %v4048
      %4117 = vst.msk [vmem:[%s4087 + $0x74] sm:$0xf] %vm2580, %v4050
      %4118 = vst.msk [vmem:[%s4087 + $0x78] sm:$0xf] %vm2580, %v4052
      %4119 = vst.msk [vmem:[%s4087 + $0x7c] sm:$0xf] %vm2580, %v4054
      %4120 = vrot.lane.b32.xlu0 %v1075, 120
      %v4121 = vpop.permute.xlu0 %4120
      %4122 = vrot.lane.b32.xlu0 %v1076, 120
      %v4123 = vpop.permute.xlu0 %4122
      %4124 = vrot.lane.b32.xlu0 %v1077, 120
      %v4125 = vpop.permute.xlu0 %4124
      %4126 = vrot.lane.b32.xlu0 %v1078, 120
      %v4127 = vpop.permute.xlu0 %4126
      %4128 = vrot.lane.b32.xlu0 %v1079, 120
      %v4129 = vpop.permute.xlu0 %4128
      %4130 = vrot.lane.b32.xlu0 %v1080, 120
      %v4131 = vpop.permute.xlu0 %4130
      %4132 = vrot.lane.b32.xlu0 %v1081, 120
      %v4133 = vpop.permute.xlu0 %4132
      %4134 = vrot.lane.b32.xlu0 %v1082, 120
      %v4135 = vpop.permute.xlu0 %4134
      %4136 = vrot.lane.b32.xlu0 %v1083, 120
      %v4137 = vpop.permute.xlu0 %4136
      %4138 = vrot.lane.b32.xlu0 %v1084, 120
      %v4139 = vpop.permute.xlu0 %4138
      %4140 = vrot.lane.b32.xlu0 %v1085, 120
      %v4141 = vpop.permute.xlu0 %4140
      %4142 = vrot.lane.b32.xlu0 %v1086, 120
      %v4143 = vpop.permute.xlu0 %4142
      %4144 = vrot.lane.b32.xlu0 %v1087, 120
      %v4145 = vpop.permute.xlu0 %4144
      %4146 = vrot.lane.b32.xlu0 %v1088, 120
      %v4147 = vpop.permute.xlu0 %4146
      %4148 = vrot.lane.b32.xlu0 %v1089, 120
      %v4149 = vpop.permute.xlu0 %4148
      %4150 = vrot.lane.b32.xlu0 %v1090, 120
      %v4151 = vpop.permute.xlu0 %4150
      %4152 = vrot.lane.b32.xlu0 %v1091, 120
      %v4153 = vpop.permute.xlu0 %4152
      %4154 = vrot.lane.b32.xlu0 %v1092, 120
      %v4155 = vpop.permute.xlu0 %4154
      %4156 = vrot.lane.b32.xlu0 %v1093, 120
      %v4157 = vpop.permute.xlu0 %4156
      %4158 = vrot.lane.b32.xlu0 %v1094, 120
      %v4159 = vpop.permute.xlu0 %4158
      %4160 = vrot.lane.b32.xlu0 %v1095, 120
      %v4161 = vpop.permute.xlu0 %4160
      %4162 = vrot.lane.b32.xlu0 %v1096, 120
      %v4163 = vpop.permute.xlu0 %4162
      %4164 = vrot.lane.b32.xlu0 %v1097, 120
      %v4165 = vpop.permute.xlu0 %4164
      %4166 = vrot.lane.b32.xlu0 %v1098, 120
      %v4167 = vpop.permute.xlu0 %4166
      %4168 = vrot.lane.b32.xlu0 %v1099, 120
      %v4169 = vpop.permute.xlu0 %4168
      %4170 = vrot.lane.b32.xlu0 %v1100, 120
      %v4171 = vpop.permute.xlu0 %4170
      %4172 = vrot.lane.b32.xlu0 %v1101, 120
      %v4173 = vpop.permute.xlu0 %4172
      %4174 = vrot.lane.b32.xlu0 %v1102, 120
      %v4175 = vpop.permute.xlu0 %4174
      %4176 = vrot.lane.b32.xlu0 %v1103, 120
      %v4177 = vpop.permute.xlu0 %4176
      %4178 = vrot.lane.b32.xlu0 %v1104, 120
      %v4179 = vpop.permute.xlu0 %4178
      %4180 = vrot.lane.b32.xlu0 %v1105, 120
      %v4181 = vpop.permute.xlu0 %4180
      %4182 = vrot.lane.b32.xlu0 %v1106, 120
      %v4183 = vpop.permute.xlu0 %4182
      %4216 = vrot.lane.b32.xlu0 %v1427, 124
      %v4217 = vpop.permute.xlu0 %4216
      %4218 = vrot.lane.b32.xlu0 %v1428, 124
      %v4219 = vpop.permute.xlu0 %4218
      %4220 = vrot.lane.b32.xlu0 %v1429, 124
      %v4221 = vpop.permute.xlu0 %4220
      %4222 = vrot.lane.b32.xlu0 %v1430, 124
      %v4223 = vpop.permute.xlu0 %4222
      %4224 = vrot.lane.b32.xlu0 %v1431, 124
      %v4225 = vpop.permute.xlu0 %4224
      %4226 = vrot.lane.b32.xlu0 %v1432, 124
      %v4227 = vpop.permute.xlu0 %4226
      %4228 = vrot.lane.b32.xlu0 %v1433, 124
      %v4229 = vpop.permute.xlu0 %4228
      %4230 = vrot.lane.b32.xlu0 %v1434, 124
      %v4231 = vpop.permute.xlu0 %4230
      %4232 = vrot.lane.b32.xlu0 %v1435, 124
      %v4233 = vpop.permute.xlu0 %4232
      %4234 = vrot.lane.b32.xlu0 %v1436, 124
      %v4235 = vpop.permute.xlu0 %4234
      %4236 = vrot.lane.b32.xlu0 %v1437, 124
      %v4237 = vpop.permute.xlu0 %4236
      %4238 = vrot.lane.b32.xlu0 %v1438, 124
      %v4239 = vpop.permute.xlu0 %4238
      %4240 = vrot.lane.b32.xlu0 %v1439, 124
      %v4241 = vpop.permute.xlu0 %4240
      %4242 = vrot.lane.b32.xlu0 %v1440, 124
      %v4243 = vpop.permute.xlu0 %4242
      %4244 = vrot.lane.b32.xlu0 %v1441, 124
      %v4245 = vpop.permute.xlu0 %4244
      %4246 = vrot.lane.b32.xlu0 %v1442, 124
      %v4247 = vpop.permute.xlu0 %4246
      %4248 = vrot.lane.b32.xlu0 %v1443, 124
      %v4249 = vpop.permute.xlu0 %4248
      %4250 = vrot.lane.b32.xlu0 %v1444, 124
      %v4251 = vpop.permute.xlu0 %4250
      %4252 = vrot.lane.b32.xlu0 %v1445, 124
      %v4253 = vpop.permute.xlu0 %4252
      %4254 = vrot.lane.b32.xlu0 %v1446, 124
      %v4255 = vpop.permute.xlu0 %4254
      %4256 = vrot.lane.b32.xlu0 %v1447, 124
      %v4257 = vpop.permute.xlu0 %4256
      %4258 = vrot.lane.b32.xlu0 %v1448, 124
      %v4259 = vpop.permute.xlu0 %4258
      %4260 = vrot.lane.b32.xlu0 %v1449, 124
      %v4261 = vpop.permute.xlu0 %4260
      %4262 = vrot.lane.b32.xlu0 %v1450, 124
      %v4263 = vpop.permute.xlu0 %4262
      %4264 = vrot.lane.b32.xlu0 %v1451, 124
      %v4265 = vpop.permute.xlu0 %4264
      %4266 = vrot.lane.b32.xlu0 %v1452, 124
      %v4267 = vpop.permute.xlu0 %4266
      %4268 = vrot.lane.b32.xlu0 %v1453, 124
      %v4269 = vpop.permute.xlu0 %4268
      %4270 = vrot.lane.b32.xlu0 %v1454, 124
      %v4271 = vpop.permute.xlu0 %4270
      %4272 = vrot.lane.b32.xlu0 %v1455, 124
      %v4273 = vpop.permute.xlu0 %4272
      %4274 = vrot.lane.b32.xlu0 %v1456, 124
      %v4275 = vpop.permute.xlu0 %4274
      %4276 = vrot.lane.b32.xlu0 %v1457, 124
      %v4277 = vpop.permute.xlu0 %4276
      %4278 = vrot.lane.b32.xlu0 %v1458, 124
      %v4279 = vpop.permute.xlu0 %4278
      %v4312 = vsel %vm2419, %v4121, %v4217
      %v4313 = vsel %vm2419, %v4123, %v4219
      %v4314 = vsel %vm2419, %v4125, %v4221
      %v4315 = vsel %vm2419, %v4127, %v4223
      %v4316 = vsel %vm2419, %v4129, %v4225
      %v4317 = vsel %vm2419, %v4131, %v4227
      %v4318 = vsel %vm2419, %v4133, %v4229
      %v4319 = vsel %vm2419, %v4135, %v4231
      %v4320 = vsel %vm2419, %v4137, %v4233
      %v4321 = vsel %vm2419, %v4139, %v4235
      %v4322 = vsel %vm2419, %v4141, %v4237
      %v4323 = vsel %vm2419, %v4143, %v4239
      %v4324 = vsel %vm2419, %v4145, %v4241
      %v4325 = vsel %vm2419, %v4147, %v4243
      %v4326 = vsel %vm2419, %v4149, %v4245
      %v4327 = vsel %vm2419, %v4151, %v4247
      %v4328 = vsel %vm2419, %v4153, %v4249
      %v4329 = vsel %vm2419, %v4155, %v4251
      %v4330 = vsel %vm2419, %v4157, %v4253
      %v4331 = vsel %vm2419, %v4159, %v4255
      %v4332 = vsel %vm2419, %v4161, %v4257
      %v4333 = vsel %vm2419, %v4163, %v4259
      %v4334 = vsel %vm2419, %v4165, %v4261
      %v4335 = vsel %vm2419, %v4167, %v4263
      %v4336 = vsel %vm2419, %v4169, %v4265
      %v4337 = vsel %vm2419, %v4171, %v4267
      %v4338 = vsel %vm2419, %v4173, %v4269
      %v4339 = vsel %vm2419, %v4175, %v4271
      %v4340 = vsel %vm2419, %v4177, %v4273
      %v4341 = vsel %vm2419, %v4179, %v4275
      %v4342 = vsel %vm2419, %v4181, %v4277
      %v4343 = vsel %vm2419, %v4183, %v4279
      %v4344 = vpack.c.bf16 %v4313, %v4312
      %v4345 = vpack.c.bf16 %v4315, %v4314
      %v4346 = vpack.c.bf16 %v4317, %v4316
      %v4347 = vpack.c.bf16 %v4319, %v4318
      %v4348 = vpack.c.bf16 %v4321, %v4320
      %v4349 = vpack.c.bf16 %v4323, %v4322
      %v4350 = vpack.c.bf16 %v4325, %v4324
      %v4351 = vpack.c.bf16 %v4327, %v4326
      %v4352 = vpack.c.bf16 %v4329, %v4328
      %v4353 = vpack.c.bf16 %v4331, %v4330
      %v4354 = vpack.c.bf16 %v4333, %v4332
      %v4355 = vpack.c.bf16 %v4335, %v4334
      %v4356 = vpack.c.bf16 %v4337, %v4336
      %v4357 = vpack.c.bf16 %v4339, %v4338
      %v4358 = vpack.c.bf16 %v4341, %v4340
      %v4359 = vpack.c.bf16 %v4343, %v4342
      %v4376 = vunpack.c.l.b16 %v4344
      %v4377 = vunpack.c.h.b16 %v4344
      %v4378 = vunpack.c.l.b16 %v4345
      %v4379 = vunpack.c.h.b16 %v4345
      %v4380 = vunpack.c.l.b16 %v4346
      %v4381 = vunpack.c.h.b16 %v4346
      %v4382 = vunpack.c.l.b16 %v4347
      %v4383 = vunpack.c.h.b16 %v4347
      %v4384 = vunpack.c.l.b16 %v4348
      %v4385 = vunpack.c.h.b16 %v4348
      %v4386 = vunpack.c.l.b16 %v4349
      %v4387 = vunpack.c.h.b16 %v4349
      %v4388 = vunpack.c.l.b16 %v4350
      %v4389 = vunpack.c.h.b16 %v4350
      %v4390 = vunpack.c.l.b16 %v4351
      %v4391 = vunpack.c.h.b16 %v4351
      %v4392 = vunpack.c.l.b16 %v4352
      %v4393 = vunpack.c.h.b16 %v4352
      %v4394 = vunpack.c.l.b16 %v4353
      %v4395 = vunpack.c.h.b16 %v4353
      %v4396 = vunpack.c.l.b16 %v4354
      %v4397 = vunpack.c.h.b16 %v4354
      %v4398 = vunpack.c.l.b16 %v4355
      %v4399 = vunpack.c.h.b16 %v4355
      %v4400 = vunpack.c.l.b16 %v4356
      %v4401 = vunpack.c.h.b16 %v4356
      %v4402 = vunpack.c.l.b16 %v4357
      %v4403 = vunpack.c.h.b16 %v4357
      %v4404 = vunpack.c.l.b16 %v4358
      %v4405 = vunpack.c.h.b16 %v4358
      %v4406 = vunpack.c.l.b16 %v4359
      %v4407 = vunpack.c.h.b16 %v4359
      %v4408 = vpack.c.b16 %v4376, %v4376
      %v4409 = vpack.c.b16 %v4377, %v4377
      %v4410 = vpack.c.b16 %v4378, %v4378
      %v4411 = vpack.c.b16 %v4379, %v4379
      %v4412 = vpack.c.b16 %v4380, %v4380
      %v4413 = vpack.c.b16 %v4381, %v4381
      %v4414 = vpack.c.b16 %v4382, %v4382
      %v4415 = vpack.c.b16 %v4383, %v4383
      %v4416 = vpack.c.b16 %v4384, %v4384
      %v4417 = vpack.c.b16 %v4385, %v4385
      %v4418 = vpack.c.b16 %v4386, %v4386
      %v4419 = vpack.c.b16 %v4387, %v4387
      %v4420 = vpack.c.b16 %v4388, %v4388
      %v4421 = vpack.c.b16 %v4389, %v4389
      %v4422 = vpack.c.b16 %v4390, %v4390
      %v4423 = vpack.c.b16 %v4391, %v4391
      %v4424 = vpack.c.b16 %v4392, %v4392
      %v4425 = vpack.c.b16 %v4393, %v4393
      %v4426 = vpack.c.b16 %v4394, %v4394
      %v4427 = vpack.c.b16 %v4395, %v4395
      %v4428 = vpack.c.b16 %v4396, %v4396
      %v4429 = vpack.c.b16 %v4397, %v4397
      %v4430 = vpack.c.b16 %v4398, %v4398
      %v4431 = vpack.c.b16 %v4399, %v4399
      %v4432 = vpack.c.b16 %v4400, %v4400
      %v4433 = vpack.c.b16 %v4401, %v4401
      %v4434 = vpack.c.b16 %v4402, %v4402
      %v4435 = vpack.c.b16 %v4403, %v4403
      %v4436 = vpack.c.b16 %v4404, %v4404
      %v4437 = vpack.c.b16 %v4405, %v4405
      %v4438 = vpack.c.b16 %v4406, %v4406
      %v4439 = vpack.c.b16 %v4407, %v4407
      %s4472 = scalar_lea.vmem %s387, 256
      %4473 = vst.msk [vmem:[%s4472] sm:$0xf] %vm2580, %v4408
      %4474 = vst.msk [vmem:[%s4472 + $0x4] sm:$0xf] %vm2580, %v4409
      %4475 = vst.msk [vmem:[%s4472 + $0x8] sm:$0xf] %vm2580, %v4410
      %4476 = vst.msk [vmem:[%s4472 + $0xc] sm:$0xf] %vm2580, %v4411
      %4477 = vst.msk [vmem:[%s4472 + $0x10] sm:$0xf] %vm2580, %v4412
      %4478 = vst.msk [vmem:[%s4472 + $0x14] sm:$0xf] %vm2580, %v4413
      %4479 = vst.msk [vmem:[%s4472 + $0x18] sm:$0xf] %vm2580, %v4414
      %4480 = vst.msk [vmem:[%s4472 + $0x1c] sm:$0xf] %vm2580, %v4415
      %4481 = vst.msk [vmem:[%s4472 + $0x20] sm:$0xf] %vm2580, %v4416
      %4482 = vst.msk [vmem:[%s4472 + $0x24] sm:$0xf] %vm2580, %v4417
      %4483 = vst.msk [vmem:[%s4472 + $0x28] sm:$0xf] %vm2580, %v4418
      %4484 = vst.msk [vmem:[%s4472 + $0x2c] sm:$0xf] %vm2580, %v4419
      %4485 = vst.msk [vmem:[%s4472 + $0x30] sm:$0xf] %vm2580, %v4420
      %4486 = vst.msk [vmem:[%s4472 + $0x34] sm:$0xf] %vm2580, %v4421
      %4487 = vst.msk [vmem:[%s4472 + $0x38] sm:$0xf] %vm2580, %v4422
      %4488 = vst.msk [vmem:[%s4472 + $0x3c] sm:$0xf] %vm2580, %v4423
      %4489 = vst.msk [vmem:[%s4472 + $0x40] sm:$0xf] %vm2580, %v4424
      %4490 = vst.msk [vmem:[%s4472 + $0x44] sm:$0xf] %vm2580, %v4425
      %4491 = vst.msk [vmem:[%s4472 + $0x48] sm:$0xf] %vm2580, %v4426
      %4492 = vst.msk [vmem:[%s4472 + $0x4c] sm:$0xf] %vm2580, %v4427
      %4493 = vst.msk [vmem:[%s4472 + $0x50] sm:$0xf] %vm2580, %v4428
      %4494 = vst.msk [vmem:[%s4472 + $0x54] sm:$0xf] %vm2580, %v4429
      %4495 = vst.msk [vmem:[%s4472 + $0x58] sm:$0xf] %vm2580, %v4430
      %4496 = vst.msk [vmem:[%s4472 + $0x5c] sm:$0xf] %vm2580, %v4431
      %4497 = vst.msk [vmem:[%s4472 + $0x60] sm:$0xf] %vm2580, %v4432
      %4498 = vst.msk [vmem:[%s4472 + $0x64] sm:$0xf] %vm2580, %v4433
      %4499 = vst.msk [vmem:[%s4472 + $0x68] sm:$0xf] %vm2580, %v4434
      %4500 = vst.msk [vmem:[%s4472 + $0x6c] sm:$0xf] %vm2580, %v4435
      %4501 = vst.msk [vmem:[%s4472 + $0x70] sm:$0xf] %vm2580, %v4436
      %4502 = vst.msk [vmem:[%s4472 + $0x74] sm:$0xf] %vm2580, %v4437
      %4503 = vst.msk [vmem:[%s4472 + $0x78] sm:$0xf] %vm2580, %v4438
      %4504 = vst.msk [vmem:[%s4472 + $0x7c] sm:$0xf] %vm2580, %v4439
      %4505 = vrot.lane.b32.xlu0 %v1843, 88
      %v4506 = vpop.permute.xlu0 %4505
      %4507 = vrot.lane.b32.xlu0 %v1844, 88
      %v4508 = vpop.permute.xlu0 %4507
      %4509 = vrot.lane.b32.xlu0 %v1845, 88
      %v4510 = vpop.permute.xlu0 %4509
      %4511 = vrot.lane.b32.xlu0 %v1846, 88
      %v4512 = vpop.permute.xlu0 %4511
      %4513 = vrot.lane.b32.xlu0 %v1847, 88
      %v4514 = vpop.permute.xlu0 %4513
      %4515 = vrot.lane.b32.xlu0 %v1848, 88
      %v4516 = vpop.permute.xlu0 %4515
      %4517 = vrot.lane.b32.xlu0 %v1849, 88
      %v4518 = vpop.permute.xlu0 %4517
      %4519 = vrot.lane.b32.xlu0 %v1850, 88
      %v4520 = vpop.permute.xlu0 %4519
      %4521 = vrot.lane.b32.xlu0 %v1851, 88
      %v4522 = vpop.permute.xlu0 %4521
      %4523 = vrot.lane.b32.xlu0 %v1852, 88
      %v4524 = vpop.permute.xlu0 %4523
      %4525 = vrot.lane.b32.xlu0 %v1853, 88
      %v4526 = vpop.permute.xlu0 %4525
      %4527 = vrot.lane.b32.xlu0 %v1854, 88
      %v4528 = vpop.permute.xlu0 %4527
      %4529 = vrot.lane.b32.xlu0 %v1855, 88
      %v4530 = vpop.permute.xlu0 %4529
      %4531 = vrot.lane.b32.xlu0 %v1856, 88
      %v4532 = vpop.permute.xlu0 %4531
      %4533 = vrot.lane.b32.xlu0 %v1857, 88
      %v4534 = vpop.permute.xlu0 %4533
      %4535 = vrot.lane.b32.xlu0 %v1858, 88
      %v4536 = vpop.permute.xlu0 %4535
      %4537 = vrot.lane.b32.xlu0 %v1859, 88
      %v4538 = vpop.permute.xlu0 %4537
      %4539 = vrot.lane.b32.xlu0 %v1860, 88
      %v4540 = vpop.permute.xlu0 %4539
      %4541 = vrot.lane.b32.xlu0 %v1861, 88
      %v4542 = vpop.permute.xlu0 %4541
      %4543 = vrot.lane.b32.xlu0 %v1862, 88
      %v4544 = vpop.permute.xlu0 %4543
      %4545 = vrot.lane.b32.xlu0 %v1863, 88
      %v4546 = vpop.permute.xlu0 %4545
      %4547 = vrot.lane.b32.xlu0 %v1864, 88
      %v4548 = vpop.permute.xlu0 %4547
      %4549 = vrot.lane.b32.xlu0 %v1865, 88
      %v4550 = vpop.permute.xlu0 %4549
      %4551 = vrot.lane.b32.xlu0 %v1866, 88
      %v4552 = vpop.permute.xlu0 %4551
      %4553 = vrot.lane.b32.xlu0 %v1867, 88
      %v4554 = vpop.permute.xlu0 %4553
      %4555 = vrot.lane.b32.xlu0 %v1868, 88
      %v4556 = vpop.permute.xlu0 %4555
      %4557 = vrot.lane.b32.xlu0 %v1869, 88
      %v4558 = vpop.permute.xlu0 %4557
      %4559 = vrot.lane.b32.xlu0 %v1870, 88
      %v4560 = vpop.permute.xlu0 %4559
      %4561 = vrot.lane.b32.xlu0 %v1871, 88
      %v4562 = vpop.permute.xlu0 %4561
      %4563 = vrot.lane.b32.xlu0 %v1872, 88
      %v4564 = vpop.permute.xlu0 %4563
      %4565 = vrot.lane.b32.xlu0 %v1873, 88
      %v4566 = vpop.permute.xlu0 %4565
      %4567 = vrot.lane.b32.xlu0 %v1874, 88
      %v4568 = vpop.permute.xlu0 %4567
      %4601 = vrot.lane.b32.xlu0 %v2259, 92
      %v4602 = vpop.permute.xlu0 %4601
      %4603 = vrot.lane.b32.xlu0 %v2260, 92
      %v4604 = vpop.permute.xlu0 %4603
      %4605 = vrot.lane.b32.xlu0 %v2261, 92
      %v4606 = vpop.permute.xlu0 %4605
      %4607 = vrot.lane.b32.xlu0 %v2262, 92
      %v4608 = vpop.permute.xlu0 %4607
      %4609 = vrot.lane.b32.xlu0 %v2263, 92
      %v4610 = vpop.permute.xlu0 %4609
      %4611 = vrot.lane.b32.xlu0 %v2264, 92
      %v4612 = vpop.permute.xlu0 %4611
      %4613 = vrot.lane.b32.xlu0 %v2265, 92
      %v4614 = vpop.permute.xlu0 %4613
      %4615 = vrot.lane.b32.xlu0 %v2266, 92
      %v4616 = vpop.permute.xlu0 %4615
      %4617 = vrot.lane.b32.xlu0 %v2267, 92
      %v4618 = vpop.permute.xlu0 %4617
      %4619 = vrot.lane.b32.xlu0 %v2268, 92
      %v4620 = vpop.permute.xlu0 %4619
      %4621 = vrot.lane.b32.xlu0 %v2269, 92
      %v4622 = vpop.permute.xlu0 %4621
      %4623 = vrot.lane.b32.xlu0 %v2270, 92
      %v4624 = vpop.permute.xlu0 %4623
      %4625 = vrot.lane.b32.xlu0 %v2271, 92
      %v4626 = vpop.permute.xlu0 %4625
      %4627 = vrot.lane.b32.xlu0 %v2272, 92
      %v4628 = vpop.permute.xlu0 %4627
      %4629 = vrot.lane.b32.xlu0 %v2273, 92
      %v4630 = vpop.permute.xlu0 %4629
      %4631 = vrot.lane.b32.xlu0 %v2274, 92
      %v4632 = vpop.permute.xlu0 %4631
      %4633 = vrot.lane.b32.xlu0 %v2275, 92
      %v4634 = vpop.permute.xlu0 %4633
      %4635 = vrot.lane.b32.xlu0 %v2276, 92
      %v4636 = vpop.permute.xlu0 %4635
      %4637 = vrot.lane.b32.xlu0 %v2277, 92
      %v4638 = vpop.permute.xlu0 %4637
      %4639 = vrot.lane.b32.xlu0 %v2278, 92
      %v4640 = vpop.permute.xlu0 %4639
      %4641 = vrot.lane.b32.xlu0 %v2279, 92
      %v4642 = vpop.permute.xlu0 %4641
      %4643 = vrot.lane.b32.xlu0 %v2280, 92
      %v4644 = vpop.permute.xlu0 %4643
      %4645 = vrot.lane.b32.xlu0 %v2281, 92
      %v4646 = vpop.permute.xlu0 %4645
      %4647 = vrot.lane.b32.xlu0 %v2282, 92
      %v4648 = vpop.permute.xlu0 %4647
      %4649 = vrot.lane.b32.xlu0 %v2283, 92
      %v4650 = vpop.permute.xlu0 %4649
      %4651 = vrot.lane.b32.xlu0 %v2284, 92
      %v4652 = vpop.permute.xlu0 %4651
      %4653 = vrot.lane.b32.xlu0 %v2285, 92
      %v4654 = vpop.permute.xlu0 %4653
      %4655 = vrot.lane.b32.xlu0 %v2286, 92
      %v4656 = vpop.permute.xlu0 %4655
      %4657 = vrot.lane.b32.xlu0 %v2287, 92
      %v4658 = vpop.permute.xlu0 %4657
      %4659 = vrot.lane.b32.xlu0 %v2288, 92
      %v4660 = vpop.permute.xlu0 %4659
      %4661 = vrot.lane.b32.xlu0 %v2289, 92
      %v4662 = vpop.permute.xlu0 %4661
      %4663 = vrot.lane.b32.xlu0 %v2290, 92
      %v4664 = vpop.permute.xlu0 %4663
      %v4697 = vsel %vm2419, %v4506, %v4602
      %v4698 = vsel %vm2419, %v4508, %v4604
      %v4699 = vsel %vm2419, %v4510, %v4606
      %v4700 = vsel %vm2419, %v4512, %v4608
      %v4701 = vsel %vm2419, %v4514, %v4610
      %v4702 = vsel %vm2419, %v4516, %v4612
      %v4703 = vsel %vm2419, %v4518, %v4614
      %v4704 = vsel %vm2419, %v4520, %v4616
      %v4705 = vsel %vm2419, %v4522, %v4618
      %v4706 = vsel %vm2419, %v4524, %v4620
      %v4707 = vsel %vm2419, %v4526, %v4622
      %v4708 = vsel %vm2419, %v4528, %v4624
      %v4709 = vsel %vm2419, %v4530, %v4626
      %v4710 = vsel %vm2419, %v4532, %v4628
      %v4711 = vsel %vm2419, %v4534, %v4630
      %v4712 = vsel %vm2419, %v4536, %v4632
      %v4713 = vsel %vm2419, %v4538, %v4634
      %v4714 = vsel %vm2419, %v4540, %v4636
      %v4715 = vsel %vm2419, %v4542, %v4638
      %v4716 = vsel %vm2419, %v4544, %v4640
      %v4717 = vsel %vm2419, %v4546, %v4642
      %v4718 = vsel %vm2419, %v4548, %v4644
      %v4719 = vsel %vm2419, %v4550, %v4646
      %v4720 = vsel %vm2419, %v4552, %v4648
      %v4721 = vsel %vm2419, %v4554, %v4650
      %v4722 = vsel %vm2419, %v4556, %v4652
      %v4723 = vsel %vm2419, %v4558, %v4654
      %v4724 = vsel %vm2419, %v4560, %v4656
      %v4725 = vsel %vm2419, %v4562, %v4658
      %v4726 = vsel %vm2419, %v4564, %v4660
      %v4727 = vsel %vm2419, %v4566, %v4662
      %v4728 = vsel %vm2419, %v4568, %v4664
      %v4729 = vpack.c.bf16 %v4698, %v4697
      %v4730 = vpack.c.bf16 %v4700, %v4699
      %v4731 = vpack.c.bf16 %v4702, %v4701
      %v4732 = vpack.c.bf16 %v4704, %v4703
      %v4733 = vpack.c.bf16 %v4706, %v4705
      %v4734 = vpack.c.bf16 %v4708, %v4707
      %v4735 = vpack.c.bf16 %v4710, %v4709
      %v4736 = vpack.c.bf16 %v4712, %v4711
      %v4737 = vpack.c.bf16 %v4714, %v4713
      %v4738 = vpack.c.bf16 %v4716, %v4715
      %v4739 = vpack.c.bf16 %v4718, %v4717
      %v4740 = vpack.c.bf16 %v4720, %v4719
      %v4741 = vpack.c.bf16 %v4722, %v4721
      %v4742 = vpack.c.bf16 %v4724, %v4723
      %v4743 = vpack.c.bf16 %v4726, %v4725
      %v4744 = vpack.c.bf16 %v4728, %v4727
      %v4761 = vunpack.c.l.b16 %v4729
      %v4762 = vunpack.c.h.b16 %v4729
      %v4763 = vunpack.c.l.b16 %v4730
      %v4764 = vunpack.c.h.b16 %v4730
      %v4765 = vunpack.c.l.b16 %v4731
      %v4766 = vunpack.c.h.b16 %v4731
      %v4767 = vunpack.c.l.b16 %v4732
      %v4768 = vunpack.c.h.b16 %v4732
      %v4769 = vunpack.c.l.b16 %v4733
      %v4770 = vunpack.c.h.b16 %v4733
      %v4771 = vunpack.c.l.b16 %v4734
      %v4772 = vunpack.c.h.b16 %v4734
      %v4773 = vunpack.c.l.b16 %v4735
      %v4774 = vunpack.c.h.b16 %v4735
      %v4775 = vunpack.c.l.b16 %v4736
      %v4776 = vunpack.c.h.b16 %v4736
      %v4777 = vunpack.c.l.b16 %v4737
      %v4778 = vunpack.c.h.b16 %v4737
      %v4779 = vunpack.c.l.b16 %v4738
      %v4780 = vunpack.c.h.b16 %v4738
      %v4781 = vunpack.c.l.b16 %v4739
      %v4782 = vunpack.c.h.b16 %v4739
      %v4783 = vunpack.c.l.b16 %v4740
      %v4784 = vunpack.c.h.b16 %v4740
      %v4785 = vunpack.c.l.b16 %v4741
      %v4786 = vunpack.c.h.b16 %v4741
      %v4787 = vunpack.c.l.b16 %v4742
      %v4788 = vunpack.c.h.b16 %v4742
      %v4789 = vunpack.c.l.b16 %v4743
      %v4790 = vunpack.c.h.b16 %v4743
      %v4791 = vunpack.c.l.b16 %v4744
      %v4792 = vunpack.c.h.b16 %v4744
      %v4793 = vpack.c.b16 %v4761, %v4761
      %v4794 = vpack.c.b16 %v4762, %v4762
      %v4795 = vpack.c.b16 %v4763, %v4763
      %v4796 = vpack.c.b16 %v4764, %v4764
      %v4797 = vpack.c.b16 %v4765, %v4765
      %v4798 = vpack.c.b16 %v4766, %v4766
      %v4799 = vpack.c.b16 %v4767, %v4767
      %v4800 = vpack.c.b16 %v4768, %v4768
      %v4801 = vpack.c.b16 %v4769, %v4769
      %v4802 = vpack.c.b16 %v4770, %v4770
      %v4803 = vpack.c.b16 %v4771, %v4771
      %v4804 = vpack.c.b16 %v4772, %v4772
      %v4805 = vpack.c.b16 %v4773, %v4773
      %v4806 = vpack.c.b16 %v4774, %v4774
      %v4807 = vpack.c.b16 %v4775, %v4775
      %v4808 = vpack.c.b16 %v4776, %v4776
      %v4809 = vpack.c.b16 %v4777, %v4777
      %v4810 = vpack.c.b16 %v4778, %v4778
      %v4811 = vpack.c.b16 %v4779, %v4779
      %v4812 = vpack.c.b16 %v4780, %v4780
      %v4813 = vpack.c.b16 %v4781, %v4781
      %v4814 = vpack.c.b16 %v4782, %v4782
      %v4815 = vpack.c.b16 %v4783, %v4783
      %v4816 = vpack.c.b16 %v4784, %v4784
      %v4817 = vpack.c.b16 %v4785, %v4785
      %v4818 = vpack.c.b16 %v4786, %v4786
      %v4819 = vpack.c.b16 %v4787, %v4787
      %v4820 = vpack.c.b16 %v4788, %v4788
      %v4821 = vpack.c.b16 %v4789, %v4789
      %v4822 = vpack.c.b16 %v4790, %v4790
      %v4823 = vpack.c.b16 %v4791, %v4791
      %v4824 = vpack.c.b16 %v4792, %v4792
      %s4857 = scalar_lea.vmem %s397, 256
      %4858 = vst.msk [vmem:[%s4857] sm:$0xf] %vm2580, %v4793
      %4859 = vst.msk [vmem:[%s4857 + $0x4] sm:$0xf] %vm2580, %v4794
      %4860 = vst.msk [vmem:[%s4857 + $0x8] sm:$0xf] %vm2580, %v4795
      %4861 = vst.msk [vmem:[%s4857 + $0xc] sm:$0xf] %vm2580, %v4796
      %4862 = vst.msk [vmem:[%s4857 + $0x10] sm:$0xf] %vm2580, %v4797
      %4863 = vst.msk [vmem:[%s4857 + $0x14] sm:$0xf] %vm2580, %v4798
      %4864 = vst.msk [vmem:[%s4857 + $0x18] sm:$0xf] %vm2580, %v4799
      %4865 = vst.msk [vmem:[%s4857 + $0x1c] sm:$0xf] %vm2580, %v4800
      %4866 = vst.msk [vmem:[%s4857 + $0x20] sm:$0xf] %vm2580, %v4801
      %4867 = vst.msk [vmem:[%s4857 + $0x24] sm:$0xf] %vm2580, %v4802
      %4868 = vst.msk [vmem:[%s4857 + $0x28] sm:$0xf] %vm2580, %v4803
      %4869 = vst.msk [vmem:[%s4857 + $0x2c] sm:$0xf] %vm2580, %v4804
      %4870 = vst.msk [vmem:[%s4857 + $0x30] sm:$0xf] %vm2580, %v4805
      %4871 = vst.msk [vmem:[%s4857 + $0x34] sm:$0xf] %vm2580, %v4806
      %4872 = vst.msk [vmem:[%s4857 + $0x38] sm:$0xf] %vm2580, %v4807
      %4873 = vst.msk [vmem:[%s4857 + $0x3c] sm:$0xf] %vm2580, %v4808
      %4874 = vst.msk [vmem:[%s4857 + $0x40] sm:$0xf] %vm2580, %v4809
      %4875 = vst.msk [vmem:[%s4857 + $0x44] sm:$0xf] %vm2580, %v4810
      %4876 = vst.msk [vmem:[%s4857 + $0x48] sm:$0xf] %vm2580, %v4811
      %4877 = vst.msk [vmem:[%s4857 + $0x4c] sm:$0xf] %vm2580, %v4812
      %4878 = vst.msk [vmem:[%s4857 + $0x50] sm:$0xf] %vm2580, %v4813
      %4879 = vst.msk [vmem:[%s4857 + $0x54] sm:$0xf] %vm2580, %v4814
      %4880 = vst.msk [vmem:[%s4857 + $0x58] sm:$0xf] %vm2580, %v4815
      %4881 = vst.msk [vmem:[%s4857 + $0x5c] sm:$0xf] %vm2580, %v4816
      %4882 = vst.msk [vmem:[%s4857 + $0x60] sm:$0xf] %vm2580, %v4817
      %4883 = vst.msk [vmem:[%s4857 + $0x64] sm:$0xf] %vm2580, %v4818
      %4884 = vst.msk [vmem:[%s4857 + $0x68] sm:$0xf] %vm2580, %v4819
      %4885 = vst.msk [vmem:[%s4857 + $0x6c] sm:$0xf] %vm2580, %v4820
      %4886 = vst.msk [vmem:[%s4857 + $0x70] sm:$0xf] %vm2580, %v4821
      %4887 = vst.msk [vmem:[%s4857 + $0x74] sm:$0xf] %vm2580, %v4822
      %4888 = vst.msk [vmem:[%s4857 + $0x78] sm:$0xf] %vm2580, %v4823
      %4889 = vst.msk [vmem:[%s4857 + $0x7c] sm:$0xf] %vm2580, %v4824
      %4890 = vrot.lane.b32.xlu0 %v3125, 48
      %v4891 = vpop.permute.xlu0 %4890
      %4892 = vrot.lane.b32.xlu0 %v3126, 48
      %v4893 = vpop.permute.xlu0 %4892
      %4894 = vrot.lane.b32.xlu0 %v3127, 48
      %v4895 = vpop.permute.xlu0 %4894
      %4896 = vrot.lane.b32.xlu0 %v3128, 48
      %v4897 = vpop.permute.xlu0 %4896
      %4898 = vrot.lane.b32.xlu0 %v3129, 48
      %v4899 = vpop.permute.xlu0 %4898
      %4900 = vrot.lane.b32.xlu0 %v3130, 48
      %v4901 = vpop.permute.xlu0 %4900
      %4902 = vrot.lane.b32.xlu0 %v3131, 48
      %v4903 = vpop.permute.xlu0 %4902
      %4904 = vrot.lane.b32.xlu0 %v3132, 48
      %v4905 = vpop.permute.xlu0 %4904
      %4906 = vrot.lane.b32.xlu0 %v3133, 48
      %v4907 = vpop.permute.xlu0 %4906
      %4908 = vrot.lane.b32.xlu0 %v3134, 48
      %v4909 = vpop.permute.xlu0 %4908
      %4910 = vrot.lane.b32.xlu0 %v3135, 48
      %v4911 = vpop.permute.xlu0 %4910
      %4912 = vrot.lane.b32.xlu0 %v3136, 48
      %v4913 = vpop.permute.xlu0 %4912
      %4914 = vrot.lane.b32.xlu0 %v3137, 48
      %v4915 = vpop.permute.xlu0 %4914
      %4916 = vrot.lane.b32.xlu0 %v3138, 48
      %v4917 = vpop.permute.xlu0 %4916
      %4918 = vrot.lane.b32.xlu0 %v3139, 48
      %v4919 = vpop.permute.xlu0 %4918
      %4920 = vrot.lane.b32.xlu0 %v3140, 48
      %v4921 = vpop.permute.xlu0 %4920
      %4922 = vrot.lane.b32.xlu0 %v3141, 48
      %v4923 = vpop.permute.xlu0 %4922
      %4924 = vrot.lane.b32.xlu0 %v3142, 48
      %v4925 = vpop.permute.xlu0 %4924
      %4926 = vrot.lane.b32.xlu0 %v3143, 48
      %v4927 = vpop.permute.xlu0 %4926
      %4928 = vrot.lane.b32.xlu0 %v3144, 48
      %v4929 = vpop.permute.xlu0 %4928
      %4930 = vrot.lane.b32.xlu0 %v3145, 48
      %v4931 = vpop.permute.xlu0 %4930
      %4932 = vrot.lane.b32.xlu0 %v3146, 48
      %v4933 = vpop.permute.xlu0 %4932
      %4934 = vrot.lane.b32.xlu0 %v3147, 48
      %v4935 = vpop.permute.xlu0 %4934
      %4936 = vrot.lane.b32.xlu0 %v3148, 48
      %v4937 = vpop.permute.xlu0 %4936
      %4938 = vrot.lane.b32.xlu0 %v3149, 48
      %v4939 = vpop.permute.xlu0 %4938
      %4940 = vrot.lane.b32.xlu0 %v3150, 48
      %v4941 = vpop.permute.xlu0 %4940
      %4942 = vrot.lane.b32.xlu0 %v3151, 48
      %v4943 = vpop.permute.xlu0 %4942
      %4944 = vrot.lane.b32.xlu0 %v3152, 48
      %v4945 = vpop.permute.xlu0 %4944
      %4946 = vrot.lane.b32.xlu0 %v3153, 48
      %v4947 = vpop.permute.xlu0 %4946
      %4948 = vrot.lane.b32.xlu0 %v3154, 48
      %v4949 = vpop.permute.xlu0 %4948
      %4950 = vrot.lane.b32.xlu0 %v3155, 48
      %v4951 = vpop.permute.xlu0 %4950
      %4952 = vrot.lane.b32.xlu0 %v3156, 48
      %v4953 = vpop.permute.xlu0 %4952
      %s4986 = scalar_lea.vmem %s407, 256
      %4987 = vst.msk [vmem:[%s4986] sm:$0xf] %vm2580, %v4891
      %4988 = vst.msk [vmem:[%s4986 + $0x4] sm:$0xf] %vm2580, %v4893
      %4989 = vst.msk [vmem:[%s4986 + $0x8] sm:$0xf] %vm2580, %v4895
      %4990 = vst.msk [vmem:[%s4986 + $0xc] sm:$0xf] %vm2580, %v4897
      %4991 = vst.msk [vmem:[%s4986 + $0x10] sm:$0xf] %vm2580, %v4899
      %4992 = vst.msk [vmem:[%s4986 + $0x14] sm:$0xf] %vm2580, %v4901
      %4993 = vst.msk [vmem:[%s4986 + $0x18] sm:$0xf] %vm2580, %v4903
      %4994 = vst.msk [vmem:[%s4986 + $0x1c] sm:$0xf] %vm2580, %v4905
      %4995 = vst.msk [vmem:[%s4986 + $0x20] sm:$0xf] %vm2580, %v4907
      %4996 = vst.msk [vmem:[%s4986 + $0x24] sm:$0xf] %vm2580, %v4909
      %4997 = vst.msk [vmem:[%s4986 + $0x28] sm:$0xf] %vm2580, %v4911
      %4998 = vst.msk [vmem:[%s4986 + $0x2c] sm:$0xf] %vm2580, %v4913
      %4999 = vst.msk [vmem:[%s4986 + $0x30] sm:$0xf] %vm2580, %v4915
      %5000 = vst.msk [vmem:[%s4986 + $0x34] sm:$0xf] %vm2580, %v4917
      %5001 = vst.msk [vmem:[%s4986 + $0x38] sm:$0xf] %vm2580, %v4919
      %5002 = vst.msk [vmem:[%s4986 + $0x3c] sm:$0xf] %vm2580, %v4921
      %5003 = vst.msk [vmem:[%s4986 + $0x40] sm:$0xf] %vm2580, %v4923
      %5004 = vst.msk [vmem:[%s4986 + $0x44] sm:$0xf] %vm2580, %v4925
      %5005 = vst.msk [vmem:[%s4986 + $0x48] sm:$0xf] %vm2580, %v4927
      %5006 = vst.msk [vmem:[%s4986 + $0x4c] sm:$0xf] %vm2580, %v4929
      %5007 = vst.msk [vmem:[%s4986 + $0x50] sm:$0xf] %vm2580, %v4931
      %5008 = vst.msk [vmem:[%s4986 + $0x54] sm:$0xf] %vm2580, %v4933
      %5009 = vst.msk [vmem:[%s4986 + $0x58] sm:$0xf] %vm2580, %v4935
      %5010 = vst.msk [vmem:[%s4986 + $0x5c] sm:$0xf] %vm2580, %v4937
      %5011 = vst.msk [vmem:[%s4986 + $0x60] sm:$0xf] %vm2580, %v4939
      %5012 = vst.msk [vmem:[%s4986 + $0x64] sm:$0xf] %vm2580, %v4941
      %5013 = vst.msk [vmem:[%s4986 + $0x68] sm:$0xf] %vm2580, %v4943
      %5014 = vst.msk [vmem:[%s4986 + $0x6c] sm:$0xf] %vm2580, %v4945
      %5015 = vst.msk [vmem:[%s4986 + $0x70] sm:$0xf] %vm2580, %v4947
      %5016 = vst.msk [vmem:[%s4986 + $0x74] sm:$0xf] %vm2580, %v4949
      %5017 = vst.msk [vmem:[%s4986 + $0x78] sm:$0xf] %vm2580, %v4951
      %5018 = vst.msk [vmem:[%s4986 + $0x7c] sm:$0xf] %vm2580, %v4953
      %5019 = vrot.lane.b32.xlu0 %v1075, 116
      %v5020 = vpop.permute.xlu0 %5019
      %5021 = vrot.lane.b32.xlu0 %v1076, 116
      %v5022 = vpop.permute.xlu0 %5021
      %5023 = vrot.lane.b32.xlu0 %v1077, 116
      %v5024 = vpop.permute.xlu0 %5023
      %5025 = vrot.lane.b32.xlu0 %v1078, 116
      %v5026 = vpop.permute.xlu0 %5025
      %5027 = vrot.lane.b32.xlu0 %v1079, 116
      %v5028 = vpop.permute.xlu0 %5027
      %5029 = vrot.lane.b32.xlu0 %v1080, 116
      %v5030 = vpop.permute.xlu0 %5029
      %5031 = vrot.lane.b32.xlu0 %v1081, 116
      %v5032 = vpop.permute.xlu0 %5031
      %5033 = vrot.lane.b32.xlu0 %v1082, 116
      %v5034 = vpop.permute.xlu0 %5033
      %5035 = vrot.lane.b32.xlu0 %v1083, 116
      %v5036 = vpop.permute.xlu0 %5035
      %5037 = vrot.lane.b32.xlu0 %v1084, 116
      %v5038 = vpop.permute.xlu0 %5037
      %5039 = vrot.lane.b32.xlu0 %v1085, 116
      %v5040 = vpop.permute.xlu0 %5039
      %5041 = vrot.lane.b32.xlu0 %v1086, 116
      %v5042 = vpop.permute.xlu0 %5041
      %5043 = vrot.lane.b32.xlu0 %v1087, 116
      %v5044 = vpop.permute.xlu0 %5043
      %5045 = vrot.lane.b32.xlu0 %v1088, 116
      %v5046 = vpop.permute.xlu0 %5045
      %5047 = vrot.lane.b32.xlu0 %v1089, 116
      %v5048 = vpop.permute.xlu0 %5047
      %5049 = vrot.lane.b32.xlu0 %v1090, 116
      %v5050 = vpop.permute.xlu0 %5049
      %5051 = vrot.lane.b32.xlu0 %v1091, 116
      %v5052 = vpop.permute.xlu0 %5051
      %5053 = vrot.lane.b32.xlu0 %v1092, 116
      %v5054 = vpop.permute.xlu0 %5053
      %5055 = vrot.lane.b32.xlu0 %v1093, 116
      %v5056 = vpop.permute.xlu0 %5055
      %5057 = vrot.lane.b32.xlu0 %v1094, 116
      %v5058 = vpop.permute.xlu0 %5057
      %5059 = vrot.lane.b32.xlu0 %v1095, 116
      %v5060 = vpop.permute.xlu0 %5059
      %5061 = vrot.lane.b32.xlu0 %v1096, 116
      %v5062 = vpop.permute.xlu0 %5061
      %5063 = vrot.lane.b32.xlu0 %v1097, 116
      %v5064 = vpop.permute.xlu0 %5063
      %5065 = vrot.lane.b32.xlu0 %v1098, 116
      %v5066 = vpop.permute.xlu0 %5065
      %5067 = vrot.lane.b32.xlu0 %v1099, 116
      %v5068 = vpop.permute.xlu0 %5067
      %5069 = vrot.lane.b32.xlu0 %v1100, 116
      %v5070 = vpop.permute.xlu0 %5069
      %5071 = vrot.lane.b32.xlu0 %v1101, 116
      %v5072 = vpop.permute.xlu0 %5071
      %5073 = vrot.lane.b32.xlu0 %v1102, 116
      %v5074 = vpop.permute.xlu0 %5073
      %5075 = vrot.lane.b32.xlu0 %v1103, 116
      %v5076 = vpop.permute.xlu0 %5075
      %5077 = vrot.lane.b32.xlu0 %v1104, 116
      %v5078 = vpop.permute.xlu0 %5077
      %5079 = vrot.lane.b32.xlu0 %v1105, 116
      %v5080 = vpop.permute.xlu0 %5079
      %5081 = vrot.lane.b32.xlu0 %v1106, 116
      %v5082 = vpop.permute.xlu0 %5081
      %5115 = vrot.lane.b32.xlu0 %v1427, 120
      %v5116 = vpop.permute.xlu0 %5115
      %5117 = vrot.lane.b32.xlu0 %v1428, 120
      %v5118 = vpop.permute.xlu0 %5117
      %5119 = vrot.lane.b32.xlu0 %v1429, 120
      %v5120 = vpop.permute.xlu0 %5119
      %5121 = vrot.lane.b32.xlu0 %v1430, 120
      %v5122 = vpop.permute.xlu0 %5121
      %5123 = vrot.lane.b32.xlu0 %v1431, 120
      %v5124 = vpop.permute.xlu0 %5123
      %5125 = vrot.lane.b32.xlu0 %v1432, 120
      %v5126 = vpop.permute.xlu0 %5125
      %5127 = vrot.lane.b32.xlu0 %v1433, 120
      %v5128 = vpop.permute.xlu0 %5127
      %5129 = vrot.lane.b32.xlu0 %v1434, 120
      %v5130 = vpop.permute.xlu0 %5129
      %5131 = vrot.lane.b32.xlu0 %v1435, 120
      %v5132 = vpop.permute.xlu0 %5131
      %5133 = vrot.lane.b32.xlu0 %v1436, 120
      %v5134 = vpop.permute.xlu0 %5133
      %5135 = vrot.lane.b32.xlu0 %v1437, 120
      %v5136 = vpop.permute.xlu0 %5135
      %5137 = vrot.lane.b32.xlu0 %v1438, 120
      %v5138 = vpop.permute.xlu0 %5137
      %5139 = vrot.lane.b32.xlu0 %v1439, 120
      %v5140 = vpop.permute.xlu0 %5139
      %5141 = vrot.lane.b32.xlu0 %v1440, 120
      %v5142 = vpop.permute.xlu0 %5141
      %5143 = vrot.lane.b32.xlu0 %v1441, 120
      %v5144 = vpop.permute.xlu0 %5143
      %5145 = vrot.lane.b32.xlu0 %v1442, 120
      %v5146 = vpop.permute.xlu0 %5145
      %5147 = vrot.lane.b32.xlu0 %v1443, 120
      %v5148 = vpop.permute.xlu0 %5147
      %5149 = vrot.lane.b32.xlu0 %v1444, 120
      %v5150 = vpop.permute.xlu0 %5149
      %5151 = vrot.lane.b32.xlu0 %v1445, 120
      %v5152 = vpop.permute.xlu0 %5151
      %5153 = vrot.lane.b32.xlu0 %v1446, 120
      %v5154 = vpop.permute.xlu0 %5153
      %5155 = vrot.lane.b32.xlu0 %v1447, 120
      %v5156 = vpop.permute.xlu0 %5155
      %5157 = vrot.lane.b32.xlu0 %v1448, 120
      %v5158 = vpop.permute.xlu0 %5157
      %5159 = vrot.lane.b32.xlu0 %v1449, 120
      %v5160 = vpop.permute.xlu0 %5159
      %5161 = vrot.lane.b32.xlu0 %v1450, 120
      %v5162 = vpop.permute.xlu0 %5161
      %5163 = vrot.lane.b32.xlu0 %v1451, 120
      %v5164 = vpop.permute.xlu0 %5163
      %5165 = vrot.lane.b32.xlu0 %v1452, 120
      %v5166 = vpop.permute.xlu0 %5165
      %5167 = vrot.lane.b32.xlu0 %v1453, 120
      %v5168 = vpop.permute.xlu0 %5167
      %5169 = vrot.lane.b32.xlu0 %v1454, 120
      %v5170 = vpop.permute.xlu0 %5169
      %5171 = vrot.lane.b32.xlu0 %v1455, 120
      %v5172 = vpop.permute.xlu0 %5171
      %5173 = vrot.lane.b32.xlu0 %v1456, 120
      %v5174 = vpop.permute.xlu0 %5173
      %5175 = vrot.lane.b32.xlu0 %v1457, 120
      %v5176 = vpop.permute.xlu0 %5175
      %5177 = vrot.lane.b32.xlu0 %v1458, 120
      %v5178 = vpop.permute.xlu0 %5177
      %v5211 = vsel %vm2419, %v5020, %v5116
      %v5212 = vsel %vm2419, %v5022, %v5118
      %v5213 = vsel %vm2419, %v5024, %v5120
      %v5214 = vsel %vm2419, %v5026, %v5122
      %v5215 = vsel %vm2419, %v5028, %v5124
      %v5216 = vsel %vm2419, %v5030, %v5126
      %v5217 = vsel %vm2419, %v5032, %v5128
      %v5218 = vsel %vm2419, %v5034, %v5130
      %v5219 = vsel %vm2419, %v5036, %v5132
      %v5220 = vsel %vm2419, %v5038, %v5134
      %v5221 = vsel %vm2419, %v5040, %v5136
      %v5222 = vsel %vm2419, %v5042, %v5138
      %v5223 = vsel %vm2419, %v5044, %v5140
      %v5224 = vsel %vm2419, %v5046, %v5142
      %v5225 = vsel %vm2419, %v5048, %v5144
      %v5226 = vsel %vm2419, %v5050, %v5146
      %v5227 = vsel %vm2419, %v5052, %v5148
      %v5228 = vsel %vm2419, %v5054, %v5150
      %v5229 = vsel %vm2419, %v5056, %v5152
      %v5230 = vsel %vm2419, %v5058, %v5154
      %v5231 = vsel %vm2419, %v5060, %v5156
      %v5232 = vsel %vm2419, %v5062, %v5158
      %v5233 = vsel %vm2419, %v5064, %v5160
      %v5234 = vsel %vm2419, %v5066, %v5162
      %v5235 = vsel %vm2419, %v5068, %v5164
      %v5236 = vsel %vm2419, %v5070, %v5166
      %v5237 = vsel %vm2419, %v5072, %v5168
      %v5238 = vsel %vm2419, %v5074, %v5170
      %v5239 = vsel %vm2419, %v5076, %v5172
      %v5240 = vsel %vm2419, %v5078, %v5174
      %v5241 = vsel %vm2419, %v5080, %v5176
      %v5242 = vsel %vm2419, %v5082, %v5178
      %v5243 = vpack.c.bf16 %v5212, %v5211
      %v5244 = vpack.c.bf16 %v5214, %v5213
      %v5245 = vpack.c.bf16 %v5216, %v5215
      %v5246 = vpack.c.bf16 %v5218, %v5217
      %v5247 = vpack.c.bf16 %v5220, %v5219
      %v5248 = vpack.c.bf16 %v5222, %v5221
      %v5249 = vpack.c.bf16 %v5224, %v5223
      %v5250 = vpack.c.bf16 %v5226, %v5225
      %v5251 = vpack.c.bf16 %v5228, %v5227
      %v5252 = vpack.c.bf16 %v5230, %v5229
      %v5253 = vpack.c.bf16 %v5232, %v5231
      %v5254 = vpack.c.bf16 %v5234, %v5233
      %v5255 = vpack.c.bf16 %v5236, %v5235
      %v5256 = vpack.c.bf16 %v5238, %v5237
      %v5257 = vpack.c.bf16 %v5240, %v5239
      %v5258 = vpack.c.bf16 %v5242, %v5241
      %v5275 = vunpack.c.l.b16 %v5243
      %v5276 = vunpack.c.h.b16 %v5243
      %v5277 = vunpack.c.l.b16 %v5244
      %v5278 = vunpack.c.h.b16 %v5244
      %v5279 = vunpack.c.l.b16 %v5245
      %v5280 = vunpack.c.h.b16 %v5245
      %v5281 = vunpack.c.l.b16 %v5246
      %v5282 = vunpack.c.h.b16 %v5246
      %v5283 = vunpack.c.l.b16 %v5247
      %v5284 = vunpack.c.h.b16 %v5247
      %v5285 = vunpack.c.l.b16 %v5248
      %v5286 = vunpack.c.h.b16 %v5248
      %v5287 = vunpack.c.l.b16 %v5249
      %v5288 = vunpack.c.h.b16 %v5249
      %v5289 = vunpack.c.l.b16 %v5250
      %v5290 = vunpack.c.h.b16 %v5250
      %v5291 = vunpack.c.l.b16 %v5251
      %v5292 = vunpack.c.h.b16 %v5251
      %v5293 = vunpack.c.l.b16 %v5252
      %v5294 = vunpack.c.h.b16 %v5252
      %v5295 = vunpack.c.l.b16 %v5253
      %v5296 = vunpack.c.h.b16 %v5253
      %v5297 = vunpack.c.l.b16 %v5254
      %v5298 = vunpack.c.h.b16 %v5254
      %v5299 = vunpack.c.l.b16 %v5255
      %v5300 = vunpack.c.h.b16 %v5255
      %v5301 = vunpack.c.l.b16 %v5256
      %v5302 = vunpack.c.h.b16 %v5256
      %v5303 = vunpack.c.l.b16 %v5257
      %v5304 = vunpack.c.h.b16 %v5257
      %v5305 = vunpack.c.l.b16 %v5258
      %v5306 = vunpack.c.h.b16 %v5258
      %v5307 = vpack.c.b16 %v5275, %v5275
      %v5308 = vpack.c.b16 %v5276, %v5276
      %v5309 = vpack.c.b16 %v5277, %v5277
      %v5310 = vpack.c.b16 %v5278, %v5278
      %v5311 = vpack.c.b16 %v5279, %v5279
      %v5312 = vpack.c.b16 %v5280, %v5280
      %v5313 = vpack.c.b16 %v5281, %v5281
      %v5314 = vpack.c.b16 %v5282, %v5282
      %v5315 = vpack.c.b16 %v5283, %v5283
      %v5316 = vpack.c.b16 %v5284, %v5284
      %v5317 = vpack.c.b16 %v5285, %v5285
      %v5318 = vpack.c.b16 %v5286, %v5286
      %v5319 = vpack.c.b16 %v5287, %v5287
      %v5320 = vpack.c.b16 %v5288, %v5288
      %v5321 = vpack.c.b16 %v5289, %v5289
      %v5322 = vpack.c.b16 %v5290, %v5290
      %v5323 = vpack.c.b16 %v5291, %v5291
      %v5324 = vpack.c.b16 %v5292, %v5292
      %v5325 = vpack.c.b16 %v5293, %v5293
      %v5326 = vpack.c.b16 %v5294, %v5294
      %v5327 = vpack.c.b16 %v5295, %v5295
      %v5328 = vpack.c.b16 %v5296, %v5296
      %v5329 = vpack.c.b16 %v5297, %v5297
      %v5330 = vpack.c.b16 %v5298, %v5298
      %v5331 = vpack.c.b16 %v5299, %v5299
      %v5332 = vpack.c.b16 %v5300, %v5300
      %v5333 = vpack.c.b16 %v5301, %v5301
      %v5334 = vpack.c.b16 %v5302, %v5302
      %v5335 = vpack.c.b16 %v5303, %v5303
      %v5336 = vpack.c.b16 %v5304, %v5304
      %v5337 = vpack.c.b16 %v5305, %v5305
      %v5338 = vpack.c.b16 %v5306, %v5306
      %s5371 = scalar_lea.vmem %s387, 384
      %5372 = vst.msk [vmem:[%s5371] sm:$0xf] %vm2580, %v5307
      %5373 = vst.msk [vmem:[%s5371 + $0x4] sm:$0xf] %vm2580, %v5308
      %5374 = vst.msk [vmem:[%s5371 + $0x8] sm:$0xf] %vm2580, %v5309
      %5375 = vst.msk [vmem:[%s5371 + $0xc] sm:$0xf] %vm2580, %v5310
      %5376 = vst.msk [vmem:[%s5371 + $0x10] sm:$0xf] %vm2580, %v5311
      %5377 = vst.msk [vmem:[%s5371 + $0x14] sm:$0xf] %vm2580, %v5312
      %5378 = vst.msk [vmem:[%s5371 + $0x18] sm:$0xf] %vm2580, %v5313
      %5379 = vst.msk [vmem:[%s5371 + $0x1c] sm:$0xf] %vm2580, %v5314
      %5380 = vst.msk [vmem:[%s5371 + $0x20] sm:$0xf] %vm2580, %v5315
      %5381 = vst.msk [vmem:[%s5371 + $0x24] sm:$0xf] %vm2580, %v5316
      %5382 = vst.msk [vmem:[%s5371 + $0x28] sm:$0xf] %vm2580, %v5317
      %5383 = vst.msk [vmem:[%s5371 + $0x2c] sm:$0xf] %vm2580, %v5318
      %5384 = vst.msk [vmem:[%s5371 + $0x30] sm:$0xf] %vm2580, %v5319
      %5385 = vst.msk [vmem:[%s5371 + $0x34] sm:$0xf] %vm2580, %v5320
      %5386 = vst.msk [vmem:[%s5371 + $0x38] sm:$0xf] %vm2580, %v5321
      %5387 = vst.msk [vmem:[%s5371 + $0x3c] sm:$0xf] %vm2580, %v5322
      %5388 = vst.msk [vmem:[%s5371 + $0x40] sm:$0xf] %vm2580, %v5323
      %5389 = vst.msk [vmem:[%s5371 + $0x44] sm:$0xf] %vm2580, %v5324
      %5390 = vst.msk [vmem:[%s5371 + $0x48] sm:$0xf] %vm2580, %v5325
      %5391 = vst.msk [vmem:[%s5371 + $0x4c] sm:$0xf] %vm2580, %v5326
      %5392 = vst.msk [vmem:[%s5371 + $0x50] sm:$0xf] %vm2580, %v5327
      %5393 = vst.msk [vmem:[%s5371 + $0x54] sm:$0xf] %vm2580, %v5328
      %5394 = vst.msk [vmem:[%s5371 + $0x58] sm:$0xf] %vm2580, %v5329
      %5395 = vst.msk [vmem:[%s5371 + $0x5c] sm:$0xf] %vm2580, %v5330
      %5396 = vst.msk [vmem:[%s5371 + $0x60] sm:$0xf] %vm2580, %v5331
      %5397 = vst.msk [vmem:[%s5371 + $0x64] sm:$0xf] %vm2580, %v5332
      %5398 = vst.msk [vmem:[%s5371 + $0x68] sm:$0xf] %vm2580, %v5333
      %5399 = vst.msk [vmem:[%s5371 + $0x6c] sm:$0xf] %vm2580, %v5334
      %5400 = vst.msk [vmem:[%s5371 + $0x70] sm:$0xf] %vm2580, %v5335
      %5401 = vst.msk [vmem:[%s5371 + $0x74] sm:$0xf] %vm2580, %v5336
      %5402 = vst.msk [vmem:[%s5371 + $0x78] sm:$0xf] %vm2580, %v5337
      %5403 = vst.msk [vmem:[%s5371 + $0x7c] sm:$0xf] %vm2580, %v5338
      %5404 = vrot.lane.b32.xlu0 %v1843, 84
      %v5405 = vpop.permute.xlu0 %5404
      %5406 = vrot.lane.b32.xlu0 %v1844, 84
      %v5407 = vpop.permute.xlu0 %5406
      %5408 = vrot.lane.b32.xlu0 %v1845, 84
      %v5409 = vpop.permute.xlu0 %5408
      %5410 = vrot.lane.b32.xlu0 %v1846, 84
      %v5411 = vpop.permute.xlu0 %5410
      %5412 = vrot.lane.b32.xlu0 %v1847, 84
      %v5413 = vpop.permute.xlu0 %5412
      %5414 = vrot.lane.b32.xlu0 %v1848, 84
      %v5415 = vpop.permute.xlu0 %5414
      %5416 = vrot.lane.b32.xlu0 %v1849, 84
      %v5417 = vpop.permute.xlu0 %5416
      %5418 = vrot.lane.b32.xlu0 %v1850, 84
      %v5419 = vpop.permute.xlu0 %5418
      %5420 = vrot.lane.b32.xlu0 %v1851, 84
      %v5421 = vpop.permute.xlu0 %5420
      %5422 = vrot.lane.b32.xlu0 %v1852, 84
      %v5423 = vpop.permute.xlu0 %5422
      %5424 = vrot.lane.b32.xlu0 %v1853, 84
      %v5425 = vpop.permute.xlu0 %5424
      %5426 = vrot.lane.b32.xlu0 %v1854, 84
      %v5427 = vpop.permute.xlu0 %5426
      %5428 = vrot.lane.b32.xlu0 %v1855, 84
      %v5429 = vpop.permute.xlu0 %5428
      %5430 = vrot.lane.b32.xlu0 %v1856, 84
      %v5431 = vpop.permute.xlu0 %5430
      %5432 = vrot.lane.b32.xlu0 %v1857, 84
      %v5433 = vpop.permute.xlu0 %5432
      %5434 = vrot.lane.b32.xlu0 %v1858, 84
      %v5435 = vpop.permute.xlu0 %5434
      %5436 = vrot.lane.b32.xlu0 %v1859, 84
      %v5437 = vpop.permute.xlu0 %5436
      %5438 = vrot.lane.b32.xlu0 %v1860, 84
      %v5439 = vpop.permute.xlu0 %5438
      %5440 = vrot.lane.b32.xlu0 %v1861, 84
      %v5441 = vpop.permute.xlu0 %5440
      %5442 = vrot.lane.b32.xlu0 %v1862, 84
      %v5443 = vpop.permute.xlu0 %5442
      %5444 = vrot.lane.b32.xlu0 %v1863, 84
      %v5445 = vpop.permute.xlu0 %5444
      %5446 = vrot.lane.b32.xlu0 %v1864, 84
      %v5447 = vpop.permute.xlu0 %5446
      %5448 = vrot.lane.b32.xlu0 %v1865, 84
      %v5449 = vpop.permute.xlu0 %5448
      %5450 = vrot.lane.b32.xlu0 %v1866, 84
      %v5451 = vpop.permute.xlu0 %5450
      %5452 = vrot.lane.b32.xlu0 %v1867, 84
      %v5453 = vpop.permute.xlu0 %5452
      %5454 = vrot.lane.b32.xlu0 %v1868, 84
      %v5455 = vpop.permute.xlu0 %5454
      %5456 = vrot.lane.b32.xlu0 %v1869, 84
      %v5457 = vpop.permute.xlu0 %5456
      %5458 = vrot.lane.b32.xlu0 %v1870, 84
      %v5459 = vpop.permute.xlu0 %5458
      %5460 = vrot.lane.b32.xlu0 %v1871, 84
      %v5461 = vpop.permute.xlu0 %5460
      %5462 = vrot.lane.b32.xlu0 %v1872, 84
      %v5463 = vpop.permute.xlu0 %5462
      %5464 = vrot.lane.b32.xlu0 %v1873, 84
      %v5465 = vpop.permute.xlu0 %5464
      %5466 = vrot.lane.b32.xlu0 %v1874, 84
      %v5467 = vpop.permute.xlu0 %5466
      %5500 = vrot.lane.b32.xlu0 %v2259, 88
      %v5501 = vpop.permute.xlu0 %5500
      %5502 = vrot.lane.b32.xlu0 %v2260, 88
      %v5503 = vpop.permute.xlu0 %5502
      %5504 = vrot.lane.b32.xlu0 %v2261, 88
      %v5505 = vpop.permute.xlu0 %5504
      %5506 = vrot.lane.b32.xlu0 %v2262, 88
      %v5507 = vpop.permute.xlu0 %5506
      %5508 = vrot.lane.b32.xlu0 %v2263, 88
      %v5509 = vpop.permute.xlu0 %5508
      %5510 = vrot.lane.b32.xlu0 %v2264, 88
      %v5511 = vpop.permute.xlu0 %5510
      %5512 = vrot.lane.b32.xlu0 %v2265, 88
      %v5513 = vpop.permute.xlu0 %5512
      %5514 = vrot.lane.b32.xlu0 %v2266, 88
      %v5515 = vpop.permute.xlu0 %5514
      %5516 = vrot.lane.b32.xlu0 %v2267, 88
      %v5517 = vpop.permute.xlu0 %5516
      %5518 = vrot.lane.b32.xlu0 %v2268, 88
      %v5519 = vpop.permute.xlu0 %5518
      %5520 = vrot.lane.b32.xlu0 %v2269, 88
      %v5521 = vpop.permute.xlu0 %5520
      %5522 = vrot.lane.b32.xlu0 %v2270, 88
      %v5523 = vpop.permute.xlu0 %5522
      %5524 = vrot.lane.b32.xlu0 %v2271, 88
      %v5525 = vpop.permute.xlu0 %5524
      %5526 = vrot.lane.b32.xlu0 %v2272, 88
      %v5527 = vpop.permute.xlu0 %5526
      %5528 = vrot.lane.b32.xlu0 %v2273, 88
      %v5529 = vpop.permute.xlu0 %5528
      %5530 = vrot.lane.b32.xlu0 %v2274, 88
      %v5531 = vpop.permute.xlu0 %5530
      %5532 = vrot.lane.b32.xlu0 %v2275, 88
      %v5533 = vpop.permute.xlu0 %5532
      %5534 = vrot.lane.b32.xlu0 %v2276, 88
      %v5535 = vpop.permute.xlu0 %5534
      %5536 = vrot.lane.b32.xlu0 %v2277, 88
      %v5537 = vpop.permute.xlu0 %5536
      %5538 = vrot.lane.b32.xlu0 %v2278, 88
      %v5539 = vpop.permute.xlu0 %5538
      %5540 = vrot.lane.b32.xlu0 %v2279, 88
      %v5541 = vpop.permute.xlu0 %5540
      %5542 = vrot.lane.b32.xlu0 %v2280, 88
      %v5543 = vpop.permute.xlu0 %5542
      %5544 = vrot.lane.b32.xlu0 %v2281, 88
      %v5545 = vpop.permute.xlu0 %5544
      %5546 = vrot.lane.b32.xlu0 %v2282, 88
      %v5547 = vpop.permute.xlu0 %5546
      %5548 = vrot.lane.b32.xlu0 %v2283, 88
      %v5549 = vpop.permute.xlu0 %5548
      %5550 = vrot.lane.b32.xlu0 %v2284, 88
      %v5551 = vpop.permute.xlu0 %5550
      %5552 = vrot.lane.b32.xlu0 %v2285, 88
      %v5553 = vpop.permute.xlu0 %5552
      %5554 = vrot.lane.b32.xlu0 %v2286, 88
      %v5555 = vpop.permute.xlu0 %5554
      %5556 = vrot.lane.b32.xlu0 %v2287, 88
      %v5557 = vpop.permute.xlu0 %5556
      %5558 = vrot.lane.b32.xlu0 %v2288, 88
      %v5559 = vpop.permute.xlu0 %5558
      %5560 = vrot.lane.b32.xlu0 %v2289, 88
      %v5561 = vpop.permute.xlu0 %5560
      %5562 = vrot.lane.b32.xlu0 %v2290, 88
      %v5563 = vpop.permute.xlu0 %5562
      %v5596 = vsel %vm2419, %v5405, %v5501
      %v5597 = vsel %vm2419, %v5407, %v5503
      %v5598 = vsel %vm2419, %v5409, %v5505
      %v5599 = vsel %vm2419, %v5411, %v5507
      %v5600 = vsel %vm2419, %v5413, %v5509
      %v5601 = vsel %vm2419, %v5415, %v5511
      %v5602 = vsel %vm2419, %v5417, %v5513
      %v5603 = vsel %vm2419, %v5419, %v5515
      %v5604 = vsel %vm2419, %v5421, %v5517
      %v5605 = vsel %vm2419, %v5423, %v5519
      %v5606 = vsel %vm2419, %v5425, %v5521
      %v5607 = vsel %vm2419, %v5427, %v5523
      %v5608 = vsel %vm2419, %v5429, %v5525
      %v5609 = vsel %vm2419, %v5431, %v5527
      %v5610 = vsel %vm2419, %v5433, %v5529
      %v5611 = vsel %vm2419, %v5435, %v5531
      %v5612 = vsel %vm2419, %v5437, %v5533
      %v5613 = vsel %vm2419, %v5439, %v5535
      %v5614 = vsel %vm2419, %v5441, %v5537
      %v5615 = vsel %vm2419, %v5443, %v5539
      %v5616 = vsel %vm2419, %v5445, %v5541
      %v5617 = vsel %vm2419, %v5447, %v5543
      %v5618 = vsel %vm2419, %v5449, %v5545
      %v5619 = vsel %vm2419, %v5451, %v5547
      %v5620 = vsel %vm2419, %v5453, %v5549
      %v5621 = vsel %vm2419, %v5455, %v5551
      %v5622 = vsel %vm2419, %v5457, %v5553
      %v5623 = vsel %vm2419, %v5459, %v5555
      %v5624 = vsel %vm2419, %v5461, %v5557
      %v5625 = vsel %vm2419, %v5463, %v5559
      %v5626 = vsel %vm2419, %v5465, %v5561
      %v5627 = vsel %vm2419, %v5467, %v5563
      %v5628 = vpack.c.bf16 %v5597, %v5596
      %v5629 = vpack.c.bf16 %v5599, %v5598
      %v5630 = vpack.c.bf16 %v5601, %v5600
      %v5631 = vpack.c.bf16 %v5603, %v5602
      %v5632 = vpack.c.bf16 %v5605, %v5604
      %v5633 = vpack.c.bf16 %v5607, %v5606
      %v5634 = vpack.c.bf16 %v5609, %v5608
      %v5635 = vpack.c.bf16 %v5611, %v5610
      %v5636 = vpack.c.bf16 %v5613, %v5612
      %v5637 = vpack.c.bf16 %v5615, %v5614
      %v5638 = vpack.c.bf16 %v5617, %v5616
      %v5639 = vpack.c.bf16 %v5619, %v5618
      %v5640 = vpack.c.bf16 %v5621, %v5620
      %v5641 = vpack.c.bf16 %v5623, %v5622
      %v5642 = vpack.c.bf16 %v5625, %v5624
      %v5643 = vpack.c.bf16 %v5627, %v5626
      %v5660 = vunpack.c.l.b16 %v5628
      %v5661 = vunpack.c.h.b16 %v5628
      %v5662 = vunpack.c.l.b16 %v5629
      %v5663 = vunpack.c.h.b16 %v5629
      %v5664 = vunpack.c.l.b16 %v5630
      %v5665 = vunpack.c.h.b16 %v5630
      %v5666 = vunpack.c.l.b16 %v5631
      %v5667 = vunpack.c.h.b16 %v5631
      %v5668 = vunpack.c.l.b16 %v5632
      %v5669 = vunpack.c.h.b16 %v5632
      %v5670 = vunpack.c.l.b16 %v5633
      %v5671 = vunpack.c.h.b16 %v5633
      %v5672 = vunpack.c.l.b16 %v5634
      %v5673 = vunpack.c.h.b16 %v5634
      %v5674 = vunpack.c.l.b16 %v5635
      %v5675 = vunpack.c.h.b16 %v5635
      %v5676 = vunpack.c.l.b16 %v5636
      %v5677 = vunpack.c.h.b16 %v5636
      %v5678 = vunpack.c.l.b16 %v5637
      %v5679 = vunpack.c.h.b16 %v5637
      %v5680 = vunpack.c.l.b16 %v5638
      %v5681 = vunpack.c.h.b16 %v5638
      %v5682 = vunpack.c.l.b16 %v5639
      %v5683 = vunpack.c.h.b16 %v5639
      %v5684 = vunpack.c.l.b16 %v5640
      %v5685 = vunpack.c.h.b16 %v5640
      %v5686 = vunpack.c.l.b16 %v5641
      %v5687 = vunpack.c.h.b16 %v5641
      %v5688 = vunpack.c.l.b16 %v5642
      %v5689 = vunpack.c.h.b16 %v5642
      %v5690 = vunpack.c.l.b16 %v5643
      %v5691 = vunpack.c.h.b16 %v5643
      %v5692 = vpack.c.b16 %v5660, %v5660
      %v5693 = vpack.c.b16 %v5661, %v5661
      %v5694 = vpack.c.b16 %v5662, %v5662
      %v5695 = vpack.c.b16 %v5663, %v5663
      %v5696 = vpack.c.b16 %v5664, %v5664
      %v5697 = vpack.c.b16 %v5665, %v5665
      %v5698 = vpack.c.b16 %v5666, %v5666
      %v5699 = vpack.c.b16 %v5667, %v5667
      %v5700 = vpack.c.b16 %v5668, %v5668
      %v5701 = vpack.c.b16 %v5669, %v5669
      %v5702 = vpack.c.b16 %v5670, %v5670
      %v5703 = vpack.c.b16 %v5671, %v5671
      %v5704 = vpack.c.b16 %v5672, %v5672
      %v5705 = vpack.c.b16 %v5673, %v5673
      %v5706 = vpack.c.b16 %v5674, %v5674
      %v5707 = vpack.c.b16 %v5675, %v5675
      %v5708 = vpack.c.b16 %v5676, %v5676
      %v5709 = vpack.c.b16 %v5677, %v5677
      %v5710 = vpack.c.b16 %v5678, %v5678
      %v5711 = vpack.c.b16 %v5679, %v5679
      %v5712 = vpack.c.b16 %v5680, %v5680
      %v5713 = vpack.c.b16 %v5681, %v5681
      %v5714 = vpack.c.b16 %v5682, %v5682
      %v5715 = vpack.c.b16 %v5683, %v5683
      %v5716 = vpack.c.b16 %v5684, %v5684
      %v5717 = vpack.c.b16 %v5685, %v5685
      %v5718 = vpack.c.b16 %v5686, %v5686
      %v5719 = vpack.c.b16 %v5687, %v5687
      %v5720 = vpack.c.b16 %v5688, %v5688
      %v5721 = vpack.c.b16 %v5689, %v5689
      %v5722 = vpack.c.b16 %v5690, %v5690
      %v5723 = vpack.c.b16 %v5691, %v5691
      %s5756 = scalar_lea.vmem %s397, 384
      %5757 = vst.msk [vmem:[%s5756] sm:$0xf] %vm2580, %v5692
      %5758 = vst.msk [vmem:[%s5756 + $0x4] sm:$0xf] %vm2580, %v5693
      %5759 = vst.msk [vmem:[%s5756 + $0x8] sm:$0xf] %vm2580, %v5694
      %5760 = vst.msk [vmem:[%s5756 + $0xc] sm:$0xf] %vm2580, %v5695
      %5761 = vst.msk [vmem:[%s5756 + $0x10] sm:$0xf] %vm2580, %v5696
      %5762 = vst.msk [vmem:[%s5756 + $0x14] sm:$0xf] %vm2580, %v5697
      %5763 = vst.msk [vmem:[%s5756 + $0x18] sm:$0xf] %vm2580, %v5698
      %5764 = vst.msk [vmem:[%s5756 + $0x1c] sm:$0xf] %vm2580, %v5699
      %5765 = vst.msk [vmem:[%s5756 + $0x20] sm:$0xf] %vm2580, %v5700
      %5766 = vst.msk [vmem:[%s5756 + $0x24] sm:$0xf] %vm2580, %v5701
      %5767 = vst.msk [vmem:[%s5756 + $0x28] sm:$0xf] %vm2580, %v5702
      %5768 = vst.msk [vmem:[%s5756 + $0x2c] sm:$0xf] %vm2580, %v5703
      %5769 = vst.msk [vmem:[%s5756 + $0x30] sm:$0xf] %vm2580, %v5704
      %5770 = vst.msk [vmem:[%s5756 + $0x34] sm:$0xf] %vm2580, %v5705
      %5771 = vst.msk [vmem:[%s5756 + $0x38] sm:$0xf] %vm2580, %v5706
      %5772 = vst.msk [vmem:[%s5756 + $0x3c] sm:$0xf] %vm2580, %v5707
      %5773 = vst.msk [vmem:[%s5756 + $0x40] sm:$0xf] %vm2580, %v5708
      %5774 = vst.msk [vmem:[%s5756 + $0x44] sm:$0xf] %vm2580, %v5709
      %5775 = vst.msk [vmem:[%s5756 + $0x48] sm:$0xf] %vm2580, %v5710
      %5776 = vst.msk [vmem:[%s5756 + $0x4c] sm:$0xf] %vm2580, %v5711
      %5777 = vst.msk [vmem:[%s5756 + $0x50] sm:$0xf] %vm2580, %v5712
      %5778 = vst.msk [vmem:[%s5756 + $0x54] sm:$0xf] %vm2580, %v5713
      %5779 = vst.msk [vmem:[%s5756 + $0x58] sm:$0xf] %vm2580, %v5714
      %5780 = vst.msk [vmem:[%s5756 + $0x5c] sm:$0xf] %vm2580, %v5715
      %5781 = vst.msk [vmem:[%s5756 + $0x60] sm:$0xf] %vm2580, %v5716
      %5782 = vst.msk [vmem:[%s5756 + $0x64] sm:$0xf] %vm2580, %v5717
      %5783 = vst.msk [vmem:[%s5756 + $0x68] sm:$0xf] %vm2580, %v5718
      %5784 = vst.msk [vmem:[%s5756 + $0x6c] sm:$0xf] %vm2580, %v5719
      %5785 = vst.msk [vmem:[%s5756 + $0x70] sm:$0xf] %vm2580, %v5720
      %5786 = vst.msk [vmem:[%s5756 + $0x74] sm:$0xf] %vm2580, %v5721
      %5787 = vst.msk [vmem:[%s5756 + $0x78] sm:$0xf] %vm2580, %v5722
      %5788 = vst.msk [vmem:[%s5756 + $0x7c] sm:$0xf] %vm2580, %v5723
      %5789 = vrot.lane.b32.xlu0 %v3125, 40
      %v5790 = vpop.permute.xlu0 %5789
      %5791 = vrot.lane.b32.xlu0 %v3126, 40
      %v5792 = vpop.permute.xlu0 %5791
      %5793 = vrot.lane.b32.xlu0 %v3127, 40
      %v5794 = vpop.permute.xlu0 %5793
      %5795 = vrot.lane.b32.xlu0 %v3128, 40
      %v5796 = vpop.permute.xlu0 %5795
      %5797 = vrot.lane.b32.xlu0 %v3129, 40
      %v5798 = vpop.permute.xlu0 %5797
      %5799 = vrot.lane.b32.xlu0 %v3130, 40
      %v5800 = vpop.permute.xlu0 %5799
      %5801 = vrot.lane.b32.xlu0 %v3131, 40
      %v5802 = vpop.permute.xlu0 %5801
      %5803 = vrot.lane.b32.xlu0 %v3132, 40
      %v5804 = vpop.permute.xlu0 %5803
      %5805 = vrot.lane.b32.xlu0 %v3133, 40
      %v5806 = vpop.permute.xlu0 %5805
      %5807 = vrot.lane.b32.xlu0 %v3134, 40
      %v5808 = vpop.permute.xlu0 %5807
      %5809 = vrot.lane.b32.xlu0 %v3135, 40
      %v5810 = vpop.permute.xlu0 %5809
      %5811 = vrot.lane.b32.xlu0 %v3136, 40
      %v5812 = vpop.permute.xlu0 %5811
      %5813 = vrot.lane.b32.xlu0 %v3137, 40
      %v5814 = vpop.permute.xlu0 %5813
      %5815 = vrot.lane.b32.xlu0 %v3138, 40
      %v5816 = vpop.permute.xlu0 %5815
      %5817 = vrot.lane.b32.xlu0 %v3139, 40
      %v5818 = vpop.permute.xlu0 %5817
      %5819 = vrot.lane.b32.xlu0 %v3140, 40
      %v5820 = vpop.permute.xlu0 %5819
      %5821 = vrot.lane.b32.xlu0 %v3141, 40
      %v5822 = vpop.permute.xlu0 %5821
      %5823 = vrot.lane.b32.xlu0 %v3142, 40
      %v5824 = vpop.permute.xlu0 %5823
      %5825 = vrot.lane.b32.xlu0 %v3143, 40
      %v5826 = vpop.permute.xlu0 %5825
      %5827 = vrot.lane.b32.xlu0 %v3144, 40
      %v5828 = vpop.permute.xlu0 %5827
      %5829 = vrot.lane.b32.xlu0 %v3145, 40
      %v5830 = vpop.permute.xlu0 %5829
      %5831 = vrot.lane.b32.xlu0 %v3146, 40
      %v5832 = vpop.permute.xlu0 %5831
      %5833 = vrot.lane.b32.xlu0 %v3147, 40
      %v5834 = vpop.permute.xlu0 %5833
      %5835 = vrot.lane.b32.xlu0 %v3148, 40
      %v5836 = vpop.permute.xlu0 %5835
      %5837 = vrot.lane.b32.xlu0 %v3149, 40
      %v5838 = vpop.permute.xlu0 %5837
      %5839 = vrot.lane.b32.xlu0 %v3150, 40
      %v5840 = vpop.permute.xlu0 %5839
      %5841 = vrot.lane.b32.xlu0 %v3151, 40
      %v5842 = vpop.permute.xlu0 %5841
      %5843 = vrot.lane.b32.xlu0 %v3152, 40
      %v5844 = vpop.permute.xlu0 %5843
      %5845 = vrot.lane.b32.xlu0 %v3153, 40
      %v5846 = vpop.permute.xlu0 %5845
      %5847 = vrot.lane.b32.xlu0 %v3154, 40
      %v5848 = vpop.permute.xlu0 %5847
      %5849 = vrot.lane.b32.xlu0 %v3155, 40
      %v5850 = vpop.permute.xlu0 %5849
      %5851 = vrot.lane.b32.xlu0 %v3156, 40
      %v5852 = vpop.permute.xlu0 %5851
      %s5885 = scalar_lea.vmem %s407, 384
      %5886 = vst.msk [vmem:[%s5885] sm:$0xf] %vm2580, %v5790
      %5887 = vst.msk [vmem:[%s5885 + $0x4] sm:$0xf] %vm2580, %v5792
      %5888 = vst.msk [vmem:[%s5885 + $0x8] sm:$0xf] %vm2580, %v5794
      %5889 = vst.msk [vmem:[%s5885 + $0xc] sm:$0xf] %vm2580, %v5796
      %5890 = vst.msk [vmem:[%s5885 + $0x10] sm:$0xf] %vm2580, %v5798
      %5891 = vst.msk [vmem:[%s5885 + $0x14] sm:$0xf] %vm2580, %v5800
      %5892 = vst.msk [vmem:[%s5885 + $0x18] sm:$0xf] %vm2580, %v5802
      %5893 = vst.msk [vmem:[%s5885 + $0x1c] sm:$0xf] %vm2580, %v5804
      %5894 = vst.msk [vmem:[%s5885 + $0x20] sm:$0xf] %vm2580, %v5806
      %5895 = vst.msk [vmem:[%s5885 + $0x24] sm:$0xf] %vm2580, %v5808
      %5896 = vst.msk [vmem:[%s5885 + $0x28] sm:$0xf] %vm2580, %v5810
      %5897 = vst.msk [vmem:[%s5885 + $0x2c] sm:$0xf] %vm2580, %v5812
      %5898 = vst.msk [vmem:[%s5885 + $0x30] sm:$0xf] %vm2580, %v5814
      %5899 = vst.msk [vmem:[%s5885 + $0x34] sm:$0xf] %vm2580, %v5816
      %5900 = vst.msk [vmem:[%s5885 + $0x38] sm:$0xf] %vm2580, %v5818
      %5901 = vst.msk [vmem:[%s5885 + $0x3c] sm:$0xf] %vm2580, %v5820
      %5902 = vst.msk [vmem:[%s5885 + $0x40] sm:$0xf] %vm2580, %v5822
      %5903 = vst.msk [vmem:[%s5885 + $0x44] sm:$0xf] %vm2580, %v5824
      %5904 = vst.msk [vmem:[%s5885 + $0x48] sm:$0xf] %vm2580, %v5826
      %5905 = vst.msk [vmem:[%s5885 + $0x4c] sm:$0xf] %vm2580, %v5828
      %5906 = vst.msk [vmem:[%s5885 + $0x50] sm:$0xf] %vm2580, %v5830
      %5907 = vst.msk [vmem:[%s5885 + $0x54] sm:$0xf] %vm2580, %v5832
      %5908 = vst.msk [vmem:[%s5885 + $0x58] sm:$0xf] %vm2580, %v5834
      %5909 = vst.msk [vmem:[%s5885 + $0x5c] sm:$0xf] %vm2580, %v5836
      %5910 = vst.msk [vmem:[%s5885 + $0x60] sm:$0xf] %vm2580, %v5838
      %5911 = vst.msk [vmem:[%s5885 + $0x64] sm:$0xf] %vm2580, %v5840
      %5912 = vst.msk [vmem:[%s5885 + $0x68] sm:$0xf] %vm2580, %v5842
      %5913 = vst.msk [vmem:[%s5885 + $0x6c] sm:$0xf] %vm2580, %v5844
      %5914 = vst.msk [vmem:[%s5885 + $0x70] sm:$0xf] %vm2580, %v5846
      %5915 = vst.msk [vmem:[%s5885 + $0x74] sm:$0xf] %vm2580, %v5848
      %5916 = vst.msk [vmem:[%s5885 + $0x78] sm:$0xf] %vm2580, %v5850
      %5917 = vst.msk [vmem:[%s5885 + $0x7c] sm:$0xf] %vm2580, %v5852
      %s5918 = smul.u32 32, %s24
      %p5919 = scmp.lt.s32.totalorder %s23, 1
      %s5920 = scalar_select %p5919, %s23, 1
      %p5921 = scmp.lt.s32.totalorder %s5918, 31
      %s5922 = scalar_select %p5921, %s5918, 31
      %s5923 = smul.addr %s5920, 128
      %s5924 = sadd.s32 %s5922, %s5923
      %s5925 = smul.addr %s5924, 4
      %s5926 = scalar_lea.vmem %s5, %s5925
      %s5927 = smul.u32 32, %s24
      %p5928 = scmp.lt.s32.totalorder %s23, 1
      %s5929 = scalar_select %p5928, %s23, 1
      %p5930 = scmp.lt.s32.totalorder %s5927, 31
      %s5931 = scalar_select %p5930, %s5927, 31
      %s5932 = smul.addr %s5929, 128
      %s5933 = sadd.s32 %s5931, %s5932
      %s5934 = smul.addr %s5933, 4
      %s5935 = scalar_lea.vmem %s6, %s5934
      %s5936 = smul.u32 32, %s24
      %p5937 = scmp.lt.s32.totalorder %s23, 1
      %s5938 = scalar_select %p5937, %s23, 1
      %p5939 = scmp.lt.s32.totalorder %s5936, 31
      %s5940 = scalar_select %p5939, %s5936, 31
      %s5941 = smul.addr %s5938, 128
      %s5942 = sadd.s32 %s5940, %s5941
      %s5943 = smul.addr %s5942, 4
      %s5944 = scalar_lea.vmem %s7, %s5943
      // Predicated region
      $region41: #{tpu_custom_call.1} parent=39 // pred_check
        %p5945 = pneg %p173
      $region42: #{tpu_custom_call.1} parent=39 // pred_check_branch
        %5947 = sbr.rel (%p5945) target = $region44
      $region43: #{tpu_custom_call.1} parent=39 // pred_region
        %s5948 = smul.u32 32, %s24
      $region44: #{tpu_custom_call.1} parent=39 // pred_fallthru
        _
      // Predicated region
      $region45: #{tpu_custom_call.1} parent=39 // pred_check
        %p5949 = pneg %p201
      $region46: #{tpu_custom_call.1} parent=39 // pred_check_branch
        %5951 = sbr.rel (%p5949) target = $region48
      $region47: #{tpu_custom_call.1} parent=39 // pred_region
        %s5952 = smul.u32 32, %s24
      $region48: #{tpu_custom_call.1} parent=39 // pred_fallthru
        _
      // Predicated region
      $region49: #{tpu_custom_call.1} parent=39 // pred_check
        %p5953 = pneg %p229
      $region50: #{tpu_custom_call.1} parent=39 // pred_check_branch
        %5955 = sbr.rel (%p5953) target = $region52
      $region51: #{tpu_custom_call.1} parent=39 // pred_region
        %s5956 = smul.u32 32, %s24
      $region52: #{tpu_custom_call.1} parent=39 // pred_fallthru
        _
    $region40: #{tpu_custom_call.1} parent=5 // pred_fallthru
      _
    %p5957 = scmp.le.s32.totalorder 2, %s14
    // Predicated region
    $region53: #{tpu_custom_call.1} parent=5 // pred_check
      %p5958 = pneg %p5957
    $region54: #{tpu_custom_call.1} parent=5 // pred_check_branch
      %5960 = sbr.rel (%p5958) target = $region56
    $region55: #{tpu_custom_call.1} parent=5 // pred_region
      %s5961 = ssub.s32 %s14, 2
      // Predicated region
      $region57: #{tpu_custom_call.1} parent=55 // pred_check
        %p5962 = pneg %p179
      $region58: #{tpu_custom_call.1} parent=55 // pred_check_branch
        %5964 = sbr.rel (%p5962) target = $region60
      $region59: #{tpu_custom_call.1} parent=55 // pred_region
        %s5965 = smul.u32 32, %s26
        %p5966 = scmp.lt.s32.totalorder %s25, 1
        %s5967 = scalar_select %p5966, %s25, 1
        %p5968 = scmp.lt.s32.totalorder %s5965, 31
        %s5969 = scalar_select %p5968, %s5965, 31
        %s5970 = smul.addr %s5967, 128
        %s5971 = sadd.s32 %s5969, %s5970
        %s5972 = smul.addr %s5971, 4
        %s5973 = scalar_lea.vmem %s5, %s5972
      $region60: #{tpu_custom_call.1} parent=55 // pred_fallthru
        _
      // Predicated region
      $region61: #{tpu_custom_call.1} parent=55 // pred_check
        %p5974 = pneg %p207
      $region62: #{tpu_custom_call.1} parent=55 // pred_check_branch
        %5976 = sbr.rel (%p5974) target = $region64
      $region63: #{tpu_custom_call.1} parent=55 // pred_region
        %s5977 = smul.u32 32, %s26
        %p5978 = scmp.lt.s32.totalorder %s25, 1
        %s5979 = scalar_select %p5978, %s25, 1
        %p5980 = scmp.lt.s32.totalorder %s5977, 31
        %s5981 = scalar_select %p5980, %s5977, 31
        %s5982 = smul.addr %s5979, 128
        %s5983 = sadd.s32 %s5981, %s5982
        %s5984 = smul.addr %s5983, 4
        %s5985 = scalar_lea.vmem %s6, %s5984
      $region64: #{tpu_custom_call.1} parent=55 // pred_fallthru
        _
      // Predicated region
      $region65: #{tpu_custom_call.1} parent=55 // pred_check
        %p5986 = pneg %p235
      $region66: #{tpu_custom_call.1} parent=55 // pred_check_branch
        %5988 = sbr.rel (%p5986) target = $region68
      $region67: #{tpu_custom_call.1} parent=55 // pred_region
        %s5989 = smul.u32 32, %s26
        %p5990 = scmp.lt.s32.totalorder %s25, 1
        %s5991 = scalar_select %p5990, %s25, 1
        %p5992 = scmp.lt.s32.totalorder %s5989, 31
        %s5993 = scalar_select %p5992, %s5989, 31
        %s5994 = smul.addr %s5991, 128
        %s5995 = sadd.s32 %s5993, %s5994
        %s5996 = smul.addr %s5995, 4
        %s5997 = scalar_lea.vmem %s7, %s5996
      $region68: #{tpu_custom_call.1} parent=55 // pred_fallthru
        _
    $region56: #{tpu_custom_call.1} parent=5 // pred_fallthru
      _
  $region6: #{tpu_custom_call.1} parent=0 // loop_footer
    %s18 = sadd.s32 1, %s14
  $region7: #{tpu_custom_call.1} parent=0 // loop_footer_branch
    %13 = sbr.rel target = $region3
  $region8: #{tpu_custom_call.1} parent=0 // loop_exit
    _

</llo_original>
